<compile_context>
chip_gen: v6e
topology: v6e:2x2x1
jax: 0.10.0
libtpu: 0.0.40
codegen_flags: <defaults>
</compile_context>

<pallas_src>
import jax
import jax.numpy as jnp
from jax import lax
from jax.experimental import pallas as pl
from jax.experimental.pallas import tpu as pltpu

EPS = 1e-5
_VMEM_LIMIT = 48 * 1024 * 1024  # fits v7x's 64 MiB physical VMEM with headroom


def _pick_tile(m):
    """Largest convenient row-tile over the flattened pixel axis."""
    for t in (1024, 512, 256, 128, 64, 32, 16, 8):
        if m % t == 0 and m // t >= 2:
            return t
    for t in (1024, 512, 256, 128, 64, 32, 16, 8):
        if m % t == 0:
            return t
    return m


# ---------------------------------------------------------------------------
# Stage 1: fused conv1 (1x1) + shortcut conv (1x1)  -> y1, y_sc, partial stats
# ---------------------------------------------------------------------------
def _conv1x1_fused_kernel(x_ref, w_ref, y1_ref, ysc_ref, st_ref):
    c1 = y1_ref.shape[1]
    y = jnp.dot(x_ref[...], w_ref[...], preferred_element_type=jnp.float32)
    y1_ref[...] = y[:, :c1]
    ysc_ref[...] = y[:, c1:]
    s1 = jnp.sum(y, axis=0, keepdims=True)
    s2 = jnp.sum(y * y, axis=0, keepdims=True)
    st_ref[...] = jnp.concatenate([s1, s2], axis=0).reshape(1, 2, y.shape[1])


# ---------------------------------------------------------------------------
# Stage 2: BN1+ReLU -> 3x3 conv (width-im2col, 3 fat matmuls) -> y2, stats
# ---------------------------------------------------------------------------
def _bn_relu_conv3x3_kernel(y1_ref, sc_ref, sh_ref, w2_ref, y2_ref, st_ref, pw_ref):
    _, H, W, C1 = y1_ref.shape

    # BN (folded to one FMA) + ReLU, all in f32.
    s = sc_ref[...].reshape(1, 1, C1)
    b = sh_ref[...].reshape(1, 1, C1)
    a = jnp.maximum(y1_ref[0] * s + b, 0.0)                       # (H, W, C1)

    # Width halo scratch: zero only the two halo columns, and only once —
    # the scratch persists across grid steps and the interior is rewritten below.
    @pl.when(pl.program_id(0) == 0)
    def _():
        pw_ref[:, 0:1, :] = jnp.zeros((H, 1, C1), jnp.float32)
        pw_ref[:, W + 1:W + 2, :] = jnp.zeros((H, 1, C1), jnp.float32)

    pw_ref[:, 1:W + 1, :] = a

    # Width-im2col: p[y, x] = [in[y, x-1], in[y, x], in[y, x+1]]   (kx-major)
    p = jnp.concatenate(
        [pw_ref[:, 0:W, :], a, pw_ref[:, 2:W + 2, :]], axis=-1)   # (H, W, 3*C1)
    pb = p.astype(jnp.bfloat16)

    # Row (dy) shifts via cheap major-axis concatenation with a zero row.
    zrow = jnp.zeros((1, W, 3 * C1), jnp.bfloat16)
    p_top = jnp.concatenate([zrow, pb[:H - 1]], axis=0)           # rows y-1 (ky = 0)
    p_bot = jnp.concatenate([pb[1:], zrow], axis=0)               # rows y+1 (ky = 2)

    m = H * W
    acc = jnp.dot(p_top.reshape(m, 3 * C1), w2_ref[0],
                  preferred_element_type=jnp.float32)
    acc = acc + jnp.dot(pb.reshape(m, 3 * C1), w2_ref[1],
                        preferred_element_type=jnp.float32)
    acc = acc + jnp.dot(p_bot.reshape(m, 3 * C1), w2_ref[2],
                        preferred_element_type=jnp.float32)

    y2_ref[...] = acc.reshape(1, H, W, C1)
    s1 = jnp.sum(acc, axis=0, keepdims=True)
    s2 = jnp.sum(acc * acc, axis=0, keepdims=True)
    st_ref[...] = jnp.concatenate([s1, s2], axis=0).reshape(1, 2, C1)


# ---------------------------------------------------------------------------
# Stage 3: BN2+ReLU -> conv3 (1x1) -> y3, partial stats
# ---------------------------------------------------------------------------
def _bn_relu_conv1x1_kernel(y_ref, sc_ref, sh_ref, w_ref, o_ref, st_ref):
    a = jnp.maximum(y_ref[...] * sc_ref[...] + sh_ref[...], 0.0)
    y = jnp.dot(a.astype(jnp.bfloat16), w_ref[...],
                preferred_element_type=jnp.float32)
    o_ref[...] = y
    s1 = jnp.sum(y, axis=0, keepdims=True)
    s2 = jnp.sum(y * y, axis=0, keepdims=True)
    st_ref[...] = jnp.concatenate([s1, s2], axis=0).reshape(1, 2, y.shape[1])


# ---------------------------------------------------------------------------
# Stage 4: BN3 + BN_shortcut + residual add + ReLU (pure fused elementwise)
# ---------------------------------------------------------------------------
def _bn_add_relu_kernel(y3_ref, ysc_ref, sc3_ref, sh3_ref, scs_ref, shs_ref, o_ref):
    main = y3_ref[...] * sc3_ref[...] + sh3_ref[...]
    short = ysc_ref[...] * scs_ref[...] + shs_ref[...]
    o_ref[...] = jnp.maximum(main + short, 0.0)


# ---------------------------------------------------------------------------
# Wrapper
# ---------------------------------------------------------------------------
def _bn_affine(stats, count, gamma, beta):
    """Fold per-tile (sum, sumsq) partials into a single BN scale/shift FMA."""
    s1 = jnp.sum(stats[:, 0, :], axis=0)
    s2 = jnp.sum(stats[:, 1, :], axis=0)
    mean = s1 / count
    var = s2 / count - mean * mean          # biased variance, training-mode BN
    scale = gamma * lax.rsqrt(var + EPS)
    shift = beta - mean * scale
    return (scale.reshape(1, -1).astype(jnp.float32),
            shift.reshape(1, -1).astype(jnp.float32))


@jax.jit
def bottleneck_block_nhwc(x, params):
    """Bottleneck forward, NHWC in / NHWC out (preferred, transpose-free API)."""
    N, H, W, Cin = x.shape
    C1 = params["w1"].shape[1]
    C4 = params["w3"].shape[1]
    Ct = C1 + C4
    M = N * H * W
    TM = _pick_tile(M)
    GM = M // TM

    cp = pltpu.CompilerParams(dimension_semantics=("parallel",),
                              vmem_limit_bytes=_VMEM_LIMIT)

    # bf16 operands for the MXU; f32 accumulation happens inside the kernels.
    x2d = x.reshape(M, Cin).astype(jnp.bfloat16)
    wcat = jnp.concatenate([params["w1"], params["ws"]], axis=1).astype(jnp.bfloat16)
    w2k = params["w2"].reshape(3, 3 * C1, C1).astype(jnp.bfloat16)   # per-ky (3*C1, C1)
    w3b = params["w3"].astype(jnp.bfloat16)

    # --- stage 1: fused conv1 + shortcut conv ------------------------------
    y1, ysc, st1 = pl.pallas_call(
        _conv1x1_fused_kernel,
        grid=(GM,),
        in_specs=[pl.BlockSpec((TM, Cin), lambda i: (i, 0)),
                  pl.BlockSpec((Cin, Ct), lambda i: (0, 0))],
        out_specs=[pl.BlockSpec((TM, C1), lambda i: (i, 0)),
                   pl.BlockSpec((TM, C4), lambda i: (i, 0)),
                   pl.BlockSpec((1, 2, Ct), lambda i: (i, 0, 0))],
        out_shape=[jax.ShapeDtypeStruct((M, C1), jnp.float32),
                   jax.ShapeDtypeStruct((M, C4), jnp.float32),
                   jax.ShapeDtypeStruct((GM, 2, Ct), jnp.float32)],
        compiler_params=cp,
    )(x2d, wcat)

    sc1, sh1 = _bn_affine(st1[:, :, :C1], M, params["g1"], params["be1"])
    scs, shs = _bn_affine(st1[:, :, C1:], M, params["gs"], params["bes"])

    # --- stage 2: bn1+relu -> 3x3 conv --------------------------------------
    # TODO(synk): for realistic H*W also tile the row axis (with a 1-row halo)
    # instead of one whole image per grid step; and add the stride>1 variant.
    y2, st2 = pl.pallas_call(
        _bn_relu_conv3x3_kernel,
        grid=(N,),
        in_specs=[pl.BlockSpec((1, H, W, C1), lambda n: (n, 0, 0, 0)),
                  pl.BlockSpec((1, C1), lambda n: (0, 0)),
                  pl.BlockSpec((1, C1), lambda n: (0, 0)),
                  pl.BlockSpec((3, 3 * C1, C1), lambda n: (0, 0, 0))],
        out_specs=[pl.BlockSpec((1, H, W, C1), lambda n: (n, 0, 0, 0)),
                   pl.BlockSpec((1, 2, C1), lambda n: (n, 0, 0))],
        out_shape=[jax.ShapeDtypeStruct((N, H, W, C1), jnp.float32),
                   jax.ShapeDtypeStruct((N, 2, C1), jnp.float32)],
        scratch_shapes=[pltpu.VMEM((H, W + 2, C1), jnp.float32)],
        compiler_params=cp,
    )(y1.reshape(N, H, W, C1), sc1, sh1, w2k)

    sc2, sh2 = _bn_affine(st2, M, params["g2"], params["be2"])

    # --- stage 3: bn2+relu -> conv3 ------------------------------------------
    y3, st3 = pl.pallas_call(
        _bn_relu_conv1x1_kernel,
        grid=(GM,),
        in_specs=[pl.BlockSpec((TM, C1), lambda i: (i, 0)),
                  pl.BlockSpec((1, C1), lambda i: (0, 0)),
                  pl.BlockSpec((1, C1), lambda i: (0, 0)),
                  pl.BlockSpec((C1, C4), lambda i: (0, 0))],
        out_specs=[pl.BlockSpec((TM, C4), lambda i: (i, 0)),
                   pl.BlockSpec((1, 2, C4), lambda i: (i, 0, 0))],
        out_shape=[jax.ShapeDtypeStruct((M, C4), jnp.float32),
                   jax.ShapeDtypeStruct((GM, 2, C4), jnp.float32)],
        compiler_params=cp,
    )(y2.reshape(M, C1), sc2, sh2, w3b)

    sc3, sh3 = _bn_affine(st3, M, params["g3"], params["be3"])

    # --- stage 4: bn3 + bn_shortcut + add + relu ------------------------------
    out = pl.pallas_call(
        _bn_add_relu_kernel,
        grid=(GM,),
        in_specs=[pl.BlockSpec((TM, C4), lambda i: (i, 0)),
                  pl.BlockSpec((TM, C4), lambda i: (i, 0))]
                 + [pl.BlockSpec((1, C4), lambda i: (0, 0))] * 4,
        out_specs=pl.BlockSpec((TM, C4), lambda i: (i, 0)),
        out_shape=jax.ShapeDtypeStruct((M, C4), jnp.float32),
        compiler_params=cp,
    )(y3, ysc, sc3, sh3, scs, shs)

    return out.reshape(N, H, W, C4)


def bottleneck_block(x_nchw, params, stride=1):
    """PyTorch-layout (NCHW) convenience wrapper around the NHWC pipeline."""
    assert stride == 1  # TODO(synk): stride>1 (strided 3x3 + strided shortcut) not implemented
    x = jnp.transpose(x_nchw, (0, 2, 3, 1))
    out = bottleneck_block_nhwc(x, params)
    return jnp.transpose(out, (0, 3, 1, 2))


# ---------------------------------------------------------------------------
# Parameters & pure-JAX reference (same bf16-matmul / f32-accumulate precision)
# ---------------------------------------------------------------------------
def init_params(key, cin, cmid):
    c4 = 4 * cmid
    keys = jax.random.split(key, 16)

    def u(k, shape, s=0.2):
        return jax.random.uniform(k, shape, jnp.float32, -s, s)

    p = {}
    p["w1"], p["b1"] = u(keys[0], (cin, cmid)), u(keys[1], (cmid,))
    p["g1"], p["be1"] = 1.0 + u(keys[2], (cmid,)), u(keys[3], (cmid,))
    p["w2"] = u(keys[4], (3, 3, cmid, cmid))            # HWIO
    p["b2"] = u(keys[5], (cmid,))
    p["g2"], p["be2"] = 1.0 + u(keys[6], (cmid,)), u(keys[7], (cmid,))
    p["w3"], p["b3"] = u(keys[8], (cmid, c4)), u(keys[9], (c4,))
    p["g3"], p["be3"] = 1.0 + u(keys[10], (c4,)), u(keys[11], (c4,))
    p["ws"], p["bs"] = u(keys[12], (cin, c4)), u(keys[13], (c4,))
    p["gs"], p["bes"] = 1.0 + u(keys[14], (c4,)), u(keys[15], (c4,))
    return p


@jax.jit
def reference_nhwc(x, p):
    # NOTE: the conv biases are kept here (full module fidelity); the Pallas
    # kernels drop them because training-mode BN's mean subtraction cancels
    # them exactly, so both paths agree.
    def bn(t, g, b):
        mean = t.mean(axis=(0, 1, 2), keepdims=True)
        var = ((t - mean) ** 2).mean(axis=(0, 1, 2), keepdims=True)
        return (t - mean) * lax.rsqrt(var + EPS) * g.reshape(1, 1, 1, -1) \
            + b.reshape(1, 1, 1, -1)

    bf = jnp.bfloat16
    xb = x.astype(bf)
    h1 = jnp.einsum("nhwc,cd->nhwd", xb, p["w1"].astype(bf),
                    preferred_element_type=jnp.float32) + p["b1"].reshape(1, 1, 1, -1)
    a1 = jax.nn.relu(bn(h1, p["g1"], p["be1"]))
    h2 = lax.conv_general_dilated(a1.astype(bf), p["w2"].astype(bf),
                                  (1, 1), ((1, 1), (1, 1)),
                                  dimension_numbers=("NHWC", "HWIO", "NHWC"),
                                  preferred_element_type=jnp.float32)
    a2 = jax.nn.relu(bn(h2 + p["b2"].reshape(1, 1, 1, -1), p["g2"], p["be2"]))
    h3 = jnp.einsum("nhwc,cd->nhwd", a2.astype(bf), p["w3"].astype(bf),
                    preferred_element_type=jnp.float32) + p["b3"].reshape(1, 1, 1, -1)
    h3 = bn(h3, p["g3"], p["be3"])
    s = jnp.einsum("nhwc,cd->nhwd", xb, p["ws"].astype(bf),
                   preferred_element_type=jnp.float32) + p["bs"].reshape(1, 1, 1, -1)
    s = bn(s, p["gs"], p["bes"])
    return jax.nn.relu(h3 + s)


if __name__ == "__main__":
    key = jax.random.PRNGKey(0)
    k_x, k_p = jax.random.split(key)

    N, Cin, H, W = 2, 4, 16, 16            # in_channels = 4
    cmid = 4                               # out_channels = 4 -> output channels 16
    x_nchw = jax.random.normal(k_x, (N, Cin, H, W), jnp.float32)
    params = init_params(k_p, Cin, cmid)

    x_nhwc = jnp.transpose(x_nchw, (0, 2, 3, 1))
    out = jax.block_until_ready(bottleneck_block_nhwc(x_nhwc, params))
    ref = jax.block_until_ready(reference_nhwc(x_nhwc, params))

    assert out.shape == (N, H, W, 4 * cmid), out.shape
    assert jnp.allclose(out, ref, rtol=5e-3, atol=5e-3), \
        float(jnp.max(jnp.abs(out - ref)))

    # Also exercise the NCHW (PyTorch-layout) convenience wrapper.
    out_nchw = jax.block_until_ready(bottleneck_block(x_nchw, params))
    assert out_nchw.shape == (N, 4 * cmid, H, W), out_nchw.shape
    assert jnp.allclose(out_nchw, jnp.transpose(ref, (0, 3, 1, 2)),
                        rtol=5e-3, atol=5e-3)

    print("KERNEL_OK")
</pallas_src>

<mosaic_0001>
module attributes {stable_mosaic.version = 11 : i64} {
  func.func @_bn_relu_conv1x1_kernel(%arg0: i32, %arg1: memref<256x4xf32, #tpu.memory_space<vmem>>, %arg2: memref<1x4xf32, #tpu.memory_space<vmem>>, %arg3: memref<1x4xf32, #tpu.memory_space<vmem>>, %arg4: memref<4x16xbf16, #tpu.memory_space<vmem>>, %arg5: memref<256x16xf32, #tpu.memory_space<vmem>>, %arg6: memref<1x2x16xf32, #tpu.memory_space<vmem>>) attributes {dimension_semantics = [#tpu.dimension_semantics<parallel>], iteration_bounds = array<i64: 2>, scalar_prefetch = 0 : i64, scratch_operands = 0 : i64, tpu.core_type = #tpu.core_type<tc>, window_params = [{transform_indices = @transform_0, window_bounds = array<i64: 256, 4>}, {pipeline_mode = #tpu.pipeline_mode<synchronous>, transform_indices = @transform_1, window_bounds = array<i64: 1, 4>}, {pipeline_mode = #tpu.pipeline_mode<synchronous>, transform_indices = @transform_2, window_bounds = array<i64: 1, 4>}, {pipeline_mode = #tpu.pipeline_mode<synchronous>, transform_indices = @transform_3, window_bounds = array<i64: 4, 16>}, {transform_indices = @transform_4, window_bounds = array<i64: 256, 16>}, {transform_indices = @transform_5, window_bounds = array<i64: 1, 2, 16>}]} {
    %c0 = arith.constant 0 : index
    %c0_0 = arith.constant 0 : index
    %0 = vector.load %arg1[%c0, %c0_0] : memref<256x4xf32, #tpu.memory_space<vmem>>, vector<256x4xf32>
    %c0_1 = arith.constant 0 : index
    %c0_2 = arith.constant 0 : index
    %1 = vector.load %arg2[%c0_1, %c0_2] : memref<1x4xf32, #tpu.memory_space<vmem>>, vector<1x4xf32>
    %2 = vector.broadcast %1 : vector<1x4xf32> to vector<256x4xf32>
    %3 = arith.mulf %0, %2 : vector<256x4xf32>
    %c0_3 = arith.constant 0 : index
    %c0_4 = arith.constant 0 : index
    %4 = vector.load %arg3[%c0_3, %c0_4] : memref<1x4xf32, #tpu.memory_space<vmem>>, vector<1x4xf32>
    %5 = vector.broadcast %4 : vector<1x4xf32> to vector<256x4xf32>
    %6 = arith.addf %3, %5 : vector<256x4xf32>
    %cst = arith.constant 0.000000e+00 : f32
    %7 = vector.broadcast %cst : f32 to vector<256x4xf32>
    %8 = arith.maximumf %6, %7 : vector<256x4xf32>
    %9 = arith.truncf %8 : vector<256x4xf32> to vector<256x4xbf16>
    %c0_5 = arith.constant 0 : index
    %c0_6 = arith.constant 0 : index
    %10 = vector.load %arg4[%c0_5, %c0_6] : memref<4x16xbf16, #tpu.memory_space<vmem>>, vector<4x16xbf16>
    %cst_7 = arith.constant dense<0.000000e+00> : vector<256x16xf32>
    %11 = tpu.matmul %9, %10, %cst_7 {dimension_numbers = #tpu.dot_dimension_numbers<[1], [0], [0], [1], [0, 0, 1, 1], [], []>} : vector<256x4xbf16>, vector<4x16xbf16>, vector<256x16xf32> -> vector<256x16xf32>
    %c0_8 = arith.constant 0 : index
    %c0_9 = arith.constant 0 : index
    %12 = vector.load %arg5[%c0_8, %c0_9] : memref<256x16xf32, #tpu.memory_space<vmem>>, vector<256x16xf32>
    tpu.vector_store %arg5[%c0_8, %c0_9], %11 {strides = array<i32>} : memref<256x16xf32, #tpu.memory_space<vmem>>, vector<256x16xf32>,
    %cst_10 = arith.constant dense<0.000000e+00> : vector<16xf32>
    %13 = vector.multi_reduction <add>, %11, %cst_10 [0] : vector<256x16xf32> to vector<16xf32>
    %14 = vector.shape_cast %13 : vector<16xf32> to vector<1x16xf32>
    %15 = arith.mulf %11, %11 : vector<256x16xf32>
    %cst_11 = arith.constant dense<0.000000e+00> : vector<16xf32>
    %16 = vector.multi_reduction <add>, %15, %cst_11 [0] : vector<256x16xf32> to vector<16xf32>
    %17 = vector.shape_cast %16 : vector<16xf32> to vector<1x16xf32>
    %18 = tpu.concatenate %14, %17 in 0 : vector<1x16xf32>, vector<1x16xf32> -> vector<2x16xf32>
    %19 = vector.shape_cast %18 : vector<2x16xf32> to vector<1x2x16xf32>
    %c0_12 = arith.constant 0 : index
    %c0_13 = arith.constant 0 : index
    %c0_14 = arith.constant 0 : index
    %20 = vector.load %arg6[%c0_12, %c0_13, %c0_14] : memref<1x2x16xf32, #tpu.memory_space<vmem>>, vector<1x2x16xf32>
    tpu.vector_store %arg6[%c0_12, %c0_13, %c0_14], %19 {strides = array<i32>} : memref<1x2x16xf32, #tpu.memory_space<vmem>>, vector<1x2x16xf32>,
    return
  }
  func.func @transform_0(%arg0: i32) -> (i32, i32) {
    %c0_i32 = arith.constant 0 : i32
    %c0_i32_0 = arith.constant 0 : i32
    return %arg0, %c0_i32 : i32, i32
  }
  func.func @transform_1(%arg0: i32) -> (i32, i32) {
    %c0_i32 = arith.constant 0 : i32
    %c0_i32_0 = arith.constant 0 : i32
    %c0_i32_1 = arith.constant 0 : i32
    return %c0_i32, %c0_i32_0 : i32, i32
  }
  func.func @transform_2(%arg0: i32) -> (i32, i32) {
    %c0_i32 = arith.constant 0 : i32
    %c0_i32_0 = arith.constant 0 : i32
    %c0_i32_1 = arith.constant 0 : i32
    return %c0_i32, %c0_i32_0 : i32, i32
  }
  func.func @transform_3(%arg0: i32) -> (i32, i32) {
    %c0_i32 = arith.constant 0 : i32
    %c0_i32_0 = arith.constant 0 : i32
    %c0_i32_1 = arith.constant 0 : i32
    return %c0_i32, %c0_i32_0 : i32, i32
  }
  func.func @transform_4(%arg0: i32) -> (i32, i32) {
    %c0_i32 = arith.constant 0 : i32
    %c0_i32_0 = arith.constant 0 : i32
    return %arg0, %c0_i32 : i32, i32
  }
  func.func @transform_5(%arg0: i32) -> (i32, i32, i32) {
    %c0_i32 = arith.constant 0 : i32
    %c0_i32_0 = arith.constant 0 : i32
    %c0_i32_1 = arith.constant 0 : i32
    return %arg0, %c0_i32, %c0_i32_0 : i32, i32, i32
  }
}

module attributes {stable_mosaic.version = 11 : i64} {
  func.func @_conv1x1_fused_kernel(%arg0: i32, %arg1: memref<256x4xbf16, #tpu.memory_space<vmem>>, %arg2: memref<4x20xbf16, #tpu.memory_space<vmem>>, %arg3: memref<256x4xf32, #tpu.memory_space<vmem>>, %arg4: memref<256x16xf32, #tpu.memory_space<vmem>>, %arg5: memref<1x2x20xf32, #tpu.memory_space<vmem>>) attributes {dimension_semantics = [#tpu.dimension_semantics<parallel>], iteration_bounds = array<i64: 2>, scalar_prefetch = 0 : i64, scratch_operands = 0 : i64, tpu.core_type = #tpu.core_type<tc>, window_params = [{transform_indices = @transform_0, window_bounds = array<i64: 256, 4>}, {pipeline_mode = #tpu.pipeline_mode<synchronous>, transform_indices = @transform_1, window_bounds = array<i64: 4, 20>}, {transform_indices = @transform_2, window_bounds = array<i64: 256, 4>}, {transform_indices = @transform_3, window_bounds = array<i64: 256, 16>}, {transform_indices = @transform_4, window_bounds = array<i64: 1, 2, 20>}]} {
    %c0 = arith.constant 0 : index
    %c0_0 = arith.constant 0 : index
    %0 = vector.load %arg1[%c0, %c0_0] : memref<256x4xbf16, #tpu.memory_space<vmem>>, vector<256x4xbf16>
    %c0_1 = arith.constant 0 : index
    %c0_2 = arith.constant 0 : index
    %1 = vector.load %arg2[%c0_1, %c0_2] : memref<4x20xbf16, #tpu.memory_space<vmem>>, vector<4x20xbf16>
    %cst = arith.constant dense<0.000000e+00> : vector<256x20xf32>
    %2 = tpu.matmul %0, %1, %cst {dimension_numbers = #tpu.dot_dimension_numbers<[1], [0], [0], [1], [0, 0, 1, 1], [], []>} : vector<256x4xbf16>, vector<4x20xbf16>, vector<256x20xf32> -> vector<256x20xf32>
    %3 = vector.extract_strided_slice %2 {offsets = [0, 0], sizes = [256, 4], strides = [1, 1]} : vector<256x20xf32> to vector<256x4xf32>
    %c0_3 = arith.constant 0 : index
    %c0_4 = arith.constant 0 : index
    %4 = vector.load %arg3[%c0_3, %c0_4] : memref<256x4xf32, #tpu.memory_space<vmem>>, vector<256x4xf32>
    tpu.vector_store %arg3[%c0_3, %c0_4], %3 {strides = array<i32>} : memref<256x4xf32, #tpu.memory_space<vmem>>, vector<256x4xf32>,
    %5 = vector.extract_strided_slice %2 {offsets = [0, 4], sizes = [256, 16], strides = [1, 1]} : vector<256x20xf32> to vector<256x16xf32>
    %c0_5 = arith.constant 0 : index
    %c0_6 = arith.constant 0 : index
    %6 = vector.load %arg4[%c0_5, %c0_6] : memref<256x16xf32, #tpu.memory_space<vmem>>, vector<256x16xf32>
    tpu.vector_store %arg4[%c0_5, %c0_6], %5 {strides = array<i32>} : memref<256x16xf32, #tpu.memory_space<vmem>>, vector<256x16xf32>,
    %cst_7 = arith.constant dense<0.000000e+00> : vector<20xf32>
    %7 = vector.multi_reduction <add>, %2, %cst_7 [0] : vector<256x20xf32> to vector<20xf32>
    %8 = vector.shape_cast %7 : vector<20xf32> to vector<1x20xf32>
    %9 = arith.mulf %2, %2 : vector<256x20xf32>
    %cst_8 = arith.constant dense<0.000000e+00> : vector<20xf32>
    %10 = vector.multi_reduction <add>, %9, %cst_8 [0] : vector<256x20xf32> to vector<20xf32>
    %11 = vector.shape_cast %10 : vector<20xf32> to vector<1x20xf32>
    %12 = tpu.concatenate %8, %11 in 0 : vector<1x20xf32>, vector<1x20xf32> -> vector<2x20xf32>
    %13 = vector.shape_cast %12 : vector<2x20xf32> to vector<1x2x20xf32>
    %c0_9 = arith.constant 0 : index
    %c0_10 = arith.constant 0 : index
    %c0_11 = arith.constant 0 : index
    %14 = vector.load %arg5[%c0_9, %c0_10, %c0_11] : memref<1x2x20xf32, #tpu.memory_space<vmem>>, vector<1x2x20xf32>
    tpu.vector_store %arg5[%c0_9, %c0_10, %c0_11], %13 {strides = array<i32>} : memref<1x2x20xf32, #tpu.memory_space<vmem>>, vector<1x2x20xf32>,
    return
  }
  func.func @transform_0(%arg0: i32) -> (i32, i32) {
    %c0_i32 = arith.constant 0 : i32
    %c0_i32_0 = arith.constant 0 : i32
    return %arg0, %c0_i32 : i32, i32
  }
  func.func @transform_1(%arg0: i32) -> (i32, i32) {
    %c0_i32 = arith.constant 0 : i32
    %c0_i32_0 = arith.constant 0 : i32
    %c0_i32_1 = arith.constant 0 : i32
    return %c0_i32, %c0_i32_0 : i32, i32
  }
  func.func @transform_2(%arg0: i32) -> (i32, i32) {
    %c0_i32 = arith.constant 0 : i32
    %c0_i32_0 = arith.constant 0 : i32
    return %arg0, %c0_i32 : i32, i32
  }
  func.func @transform_3(%arg0: i32) -> (i32, i32) {
    %c0_i32 = arith.constant 0 : i32
    %c0_i32_0 = arith.constant 0 : i32
    return %arg0, %c0_i32 : i32, i32
  }
  func.func @transform_4(%arg0: i32) -> (i32, i32, i32) {
    %c0_i32 = arith.constant 0 : i32
    %c0_i32_0 = arith.constant 0 : i32
    %c0_i32_1 = arith.constant 0 : i32
    return %arg0, %c0_i32, %c0_i32_0 : i32, i32, i32
  }
}

module attributes {stable_mosaic.version = 11 : i64} {
  func.func @_bn_relu_conv3x3_kernel(%arg0: i32, %arg1: memref<1x16x16x4xf32, #tpu.memory_space<vmem>>, %arg2: memref<1x4xf32, #tpu.memory_space<vmem>>, %arg3: memref<1x4xf32, #tpu.memory_space<vmem>>, %arg4: memref<3x12x4xbf16, #tpu.memory_space<vmem>>, %arg5: memref<1x16x16x4xf32, #tpu.memory_space<vmem>>, %arg6: memref<1x2x4xf32, #tpu.memory_space<vmem>>, %arg7: memref<16x18x4xf32, #tpu.memory_space<vmem>>) attributes {dimension_semantics = [#tpu.dimension_semantics<parallel>], iteration_bounds = array<i64: 2>, scalar_prefetch = 0 : i64, scratch_operands = 1 : i64, tpu.core_type = #tpu.core_type<tc>, window_params = [{transform_indices = @transform_0, window_bounds = array<i64: 1, 16, 16, 4>}, {pipeline_mode = #tpu.pipeline_mode<synchronous>, transform_indices = @transform_1, window_bounds = array<i64: 1, 4>}, {pipeline_mode = #tpu.pipeline_mode<synchronous>, transform_indices = @transform_2, window_bounds = array<i64: 1, 4>}, {pipeline_mode = #tpu.pipeline_mode<synchronous>, transform_indices = @transform_3, window_bounds = array<i64: 3, 12, 4>}, {transform_indices = @transform_4, window_bounds = array<i64: 1, 16, 16, 4>}, {transform_indices = @transform_5, window_bounds = array<i64: 1, 2, 4>}]} {
    %c0 = arith.constant 0 : index
    %c0_0 = arith.constant 0 : index
    %0 = vector.load %arg2[%c0, %c0_0] : memref<1x4xf32, #tpu.memory_space<vmem>>, vector<1x4xf32>
    %1 = vector.shape_cast %0 : vector<1x4xf32> to vector<1x1x4xf32>
    %c0_1 = arith.constant 0 : index
    %c0_2 = arith.constant 0 : index
    %2 = vector.load %arg3[%c0_1, %c0_2] : memref<1x4xf32, #tpu.memory_space<vmem>>, vector<1x4xf32>
    %3 = vector.shape_cast %2 : vector<1x4xf32> to vector<1x1x4xf32>
    %c0_3 = arith.constant 0 : index
    %c0_4 = arith.constant 0 : index
    %c0_5 = arith.constant 0 : index
    %c0_6 = arith.constant 0 : index
    %4 = vector.load %arg1[%c0_3, %c0_4, %c0_5, %c0_6] : memref<1x16x16x4xf32, #tpu.memory_space<vmem>>, vector<1x16x16x4xf32>
    %5 = vector.shape_cast %4 : vector<1x16x16x4xf32> to vector<16x16x4xf32>
    %6 = vector.broadcast %1 : vector<1x1x4xf32> to vector<16x16x4xf32>
    %7 = arith.mulf %5, %6 : vector<16x16x4xf32>
    %8 = vector.broadcast %3 : vector<1x1x4xf32> to vector<16x16x4xf32>
    %9 = arith.addf %7, %8 : vector<16x16x4xf32>
    %cst = arith.constant 0.000000e+00 : f32
    %10 = vector.broadcast %cst : f32 to vector<16x16x4xf32>
    %11 = arith.maximumf %9, %10 : vector<16x16x4xf32>
    %c0_i32 = arith.constant 0 : i32
    %12 = arith.cmpi eq, %arg0, %c0_i32 : i32
    %13 = arith.extui %12 : i1 to i32
    %c0_i32_7 = arith.constant 0 : i32
    %14 = arith.cmpi ne, %13, %c0_i32_7 : i32
    scf.if %14 {
      %cst_37 = arith.constant 0.000000e+00 : f32
      %49 = vector.broadcast %cst_37 : f32 to vector<16x1x4xf32>
      %c0_38 = arith.constant 0 : index
      %c0_39 = arith.constant 0 : index
      %c0_40 = arith.constant 0 : index
      %50 = vector.load %arg7[%c0_38, %c0_39, %c0_40] : memref<16x18x4xf32, #tpu.memory_space<vmem>>, vector<16x1x4xf32>
      tpu.vector_store %arg7[%c0_38, %c0_39, %c0_40], %49 {strides = array<i32>} : memref<16x18x4xf32, #tpu.memory_space<vmem>>, vector<16x1x4xf32>,
      %cst_41 = arith.constant 0.000000e+00 : f32
      %51 = vector.broadcast %cst_41 : f32 to vector<16x1x4xf32>
      %c0_42 = arith.constant 0 : index
      %c17 = arith.constant 17 : index
      %c0_43 = arith.constant 0 : index
      %52 = vector.load %arg7[%c0_42, %c17, %c0_43] : memref<16x18x4xf32, #tpu.memory_space<vmem>>, vector<16x1x4xf32>
      tpu.vector_store %arg7[%c0_42, %c17, %c0_43], %51 {strides = array<i32>} : memref<16x18x4xf32, #tpu.memory_space<vmem>>, vector<16x1x4xf32>,
    } else {
    }
    %c0_8 = arith.constant 0 : index
    %c1 = arith.constant 1 : index
    %c0_9 = arith.constant 0 : index
    %15 = vector.load %arg7[%c0_8, %c1, %c0_9] : memref<16x18x4xf32, #tpu.memory_space<vmem>>, vector<16x16x4xf32>
    tpu.vector_store %arg7[%c0_8, %c1, %c0_9], %11 {strides = array<i32>} : memref<16x18x4xf32, #tpu.memory_space<vmem>>, vector<16x16x4xf32>,
    %c0_10 = arith.constant 0 : index
    %c0_11 = arith.constant 0 : index
    %c0_12 = arith.constant 0 : index
    %16 = vector.load %arg7[%c0_10, %c0_11, %c0_12] : memref<16x18x4xf32, #tpu.memory_space<vmem>>, vector<16x16x4xf32>
    %c0_13 = arith.constant 0 : index
    %c2 = arith.constant 2 : index
    %c0_14 = arith.constant 0 : index
    %17 = vector.load %arg7[%c0_13, %c2, %c0_14] : memref<16x18x4xf32, #tpu.memory_space<vmem>>, vector<16x16x4xf32>
    %18 = tpu.concatenate %16, %11, %17 in 2 : vector<16x16x4xf32>, vector<16x16x4xf32>, vector<16x16x4xf32> -> vector<16x16x12xf32>
    %19 = arith.truncf %18 : vector<16x16x12xf32> to vector<16x16x12xbf16>
    %cst_15 = arith.constant 0.000000e+00 : bf16
    %20 = vector.broadcast %cst_15 : bf16 to vector<1x16x12xbf16>
    %21 = vector.extract_strided_slice %19 {offsets = [0, 0, 0], sizes = [15, 16, 12], strides = [1, 1, 1]} : vector<16x16x12xbf16> to vector<15x16x12xbf16>
    %22 = tpu.concatenate %20, %21 in 0 : vector<1x16x12xbf16>, vector<15x16x12xbf16> -> vector<16x16x12xbf16>
    %23 = vector.extract_strided_slice %19 {offsets = [1, 0, 0], sizes = [15, 16, 12], strides = [1, 1, 1]} : vector<16x16x12xbf16> to vector<15x16x12xbf16>
    %24 = tpu.concatenate %23, %20 in 0 : vector<15x16x12xbf16>, vector<1x16x12xbf16> -> vector<16x16x12xbf16>
    %25 = vector.shape_cast %22 : vector<16x16x12xbf16> to vector<256x12xbf16>
    %c0_16 = arith.constant 0 : index
    %c0_17 = arith.constant 0 : index
    %c0_18 = arith.constant 0 : index
    %26 = vector.load %arg4[%c0_16, %c0_17, %c0_18] : memref<3x12x4xbf16, #tpu.memory_space<vmem>>, vector<1x12x4xbf16>
    %27 = vector.shape_cast %26 : vector<1x12x4xbf16> to vector<12x4xbf16>
    %cst_19 = arith.constant dense<0.000000e+00> : vector<256x4xf32>
    %28 = tpu.matmul %25, %27, %cst_19 {dimension_numbers = #tpu.dot_dimension_numbers<[1], [0], [0], [1], [0, 0, 1, 1], [], []>} : vector<256x12xbf16>, vector<12x4xbf16>, vector<256x4xf32> -> vector<256x4xf32>
    %29 = vector.shape_cast %19 : vector<16x16x12xbf16> to vector<256x12xbf16>
    %c1_20 = arith.constant 1 : index
    %c0_21 = arith.constant 0 : index
    %c0_22 = arith.constant 0 : index
    %30 = vector.load %arg4[%c1_20, %c0_21, %c0_22] : memref<3x12x4xbf16, #tpu.memory_space<vmem>>, vector<1x12x4xbf16>
    %31 = vector.shape_cast %30 : vector<1x12x4xbf16> to vector<12x4xbf16>
    %cst_23 = arith.constant dense<0.000000e+00> : vector<256x4xf32>
    %32 = tpu.matmul %29, %31, %cst_23 {dimension_numbers = #tpu.dot_dimension_numbers<[1], [0], [0], [1], [0, 0, 1, 1], [], []>} : vector<256x12xbf16>, vector<12x4xbf16>, vector<256x4xf32> -> vector<256x4xf32>
    %33 = arith.addf %28, %32 : vector<256x4xf32>
    %34 = vector.shape_cast %24 : vector<16x16x12xbf16> to vector<256x12xbf16>
    %c2_24 = arith.constant 2 : index
    %c0_25 = arith.constant 0 : index
    %c0_26 = arith.constant 0 : index
    %35 = vector.load %arg4[%c2_24, %c0_25, %c0_26] : memref<3x12x4xbf16, #tpu.memory_space<vmem>>, vector<1x12x4xbf16>
    %36 = vector.shape_cast %35 : vector<1x12x4xbf16> to vector<12x4xbf16>
    %cst_27 = arith.constant dense<0.000000e+00> : vector<256x4xf32>
    %37 = tpu.matmul %34, %36, %cst_27 {dimension_numbers = #tpu.dot_dimension_numbers<[1], [0], [0], [1], [0, 0, 1, 1], [], []>} : vector<256x12xbf16>, vector<12x4xbf16>, vector<256x4xf32> -> vector<256x4xf32>
    %38 = arith.addf %33, %37 : vector<256x4xf32>
    %39 = vector.shape_cast %38 : vector<256x4xf32> to vector<1x16x16x4xf32>
    %c0_28 = arith.constant 0 : index
    %c0_29 = arith.constant 0 : index
    %c0_30 = arith.constant 0 : index
    %c0_31 = arith.constant 0 : index
    %40 = vector.load %arg5[%c0_28, %c0_29, %c0_30, %c0_31] : memref<1x16x16x4xf32, #tpu.memory_space<vmem>>, vector<1x16x16x4xf32>
    tpu.vector_store %arg5[%c0_28, %c0_29, %c0_30, %c0_31], %39 {strides = array<i32>} : memref<1x16x16x4xf32, #tpu.memory_space<vmem>>, vector<1x16x16x4xf32>,
    %cst_32 = arith.constant dense<0.000000e+00> : vector<4xf32>
    %41 = vector.multi_reduction <add>, %38, %cst_32 [0] : vector<256x4xf32> to vector<4xf32>
    %42 = vector.shape_cast %41 : vector<4xf32> to vector<1x4xf32>
    %43 = arith.mulf %38, %38 : vector<256x4xf32>
    %cst_33 = arith.constant dense<0.000000e+00> : vector<4xf32>
    %44 = vector.multi_reduction <add>, %43, %cst_33 [0] : vector<256x4xf32> to vector<4xf32>
    %45 = vector.shape_cast %44 : vector<4xf32> to vector<1x4xf32>
    %46 = tpu.concatenate %42, %45 in 0 : vector<1x4xf32>, vector<1x4xf32> -> vector<2x4xf32>
    %47 = vector.shape_cast %46 : vector<2x4xf32> to vector<1x2x4xf32>
    %c0_34 = arith.constant 0 : index
    %c0_35 = arith.constant 0 : index
    %c0_36 = arith.constant 0 : index
    %48 = vector.load %arg6[%c0_34, %c0_35, %c0_36] : memref<1x2x4xf32, #tpu.memory_space<vmem>>, vector<1x2x4xf32>
    tpu.vector_store %arg6[%c0_34, %c0_35, %c0_36], %47 {strides = array<i32>} : memref<1x2x4xf32, #tpu.memory_space<vmem>>, vector<1x2x4xf32>,
    return
  }
  func.func @transform_0(%arg0: i32) -> (i32, i32, i32, i32) {
    %c0_i32 = arith.constant 0 : i32
    %c0_i32_0 = arith.constant 0 : i32
    %c0_i32_1 = arith.constant 0 : i32
    %c0_i32_2 = arith.constant 0 : i32
    return %arg0, %c0_i32, %c0_i32_0, %c0_i32_1 : i32, i32, i32, i32
  }
  func.func @transform_1(%arg0: i32) -> (i32, i32) {
    %c0_i32 = arith.constant 0 : i32
    %c0_i32_0 = arith.constant 0 : i32
    %c0_i32_1 = arith.constant 0 : i32
    return %c0_i32, %c0_i32_0 : i32, i32
  }
  func.func @transform_2(%arg0: i32) -> (i32, i32) {
    %c0_i32 = arith.constant 0 : i32
    %c0_i32_0 = arith.constant 0 : i32
    %c0_i32_1 = arith.constant 0 : i32
    return %c0_i32, %c0_i32_0 : i32, i32
  }
  func.func @transform_3(%arg0: i32) -> (i32, i32, i32) {
    %c0_i32 = arith.constant 0 : i32
    %c0_i32_0 = arith.constant 0 : i32
    %c0_i32_1 = arith.constant 0 : i32
    %c0_i32_2 = arith.constant 0 : i32
    return %c0_i32, %c0_i32_0, %c0_i32_1 : i32, i32, i32
  }
  func.func @transform_4(%arg0: i32) -> (i32, i32, i32, i32) {
    %c0_i32 = arith.constant 0 : i32
    %c0_i32_0 = arith.constant 0 : i32
    %c0_i32_1 = arith.constant 0 : i32
    %c0_i32_2 = arith.constant 0 : i32
    return %arg0, %c0_i32, %c0_i32_0, %c0_i32_1 : i32, i32, i32, i32
  }
  func.func @transform_5(%arg0: i32) -> (i32, i32, i32) {
    %c0_i32 = arith.constant 0 : i32
    %c0_i32_0 = arith.constant 0 : i32
    %c0_i32_1 = arith.constant 0 : i32
    return %arg0, %c0_i32, %c0_i32_0 : i32, i32, i32
  }
}

module attributes {stable_mosaic.version = 11 : i64} {
  func.func @_bn_add_relu_kernel(%arg0: i32, %arg1: memref<256x16xf32, #tpu.memory_space<vmem>>, %arg2: memref<256x16xf32, #tpu.memory_space<vmem>>, %arg3: memref<1x16xf32, #tpu.memory_space<vmem>>, %arg4: memref<1x16xf32, #tpu.memory_space<vmem>>, %arg5: memref<1x16xf32, #tpu.memory_space<vmem>>, %arg6: memref<1x16xf32, #tpu.memory_space<vmem>>, %arg7: memref<256x16xf32, #tpu.memory_space<vmem>>) attributes {dimension_semantics = [#tpu.dimension_semantics<parallel>], iteration_bounds = array<i64: 2>, scalar_prefetch = 0 : i64, scratch_operands = 0 : i64, tpu.core_type = #tpu.core_type<tc>, window_params = [{transform_indices = @transform_0, window_bounds = array<i64: 256, 16>}, {transform_indices = @transform_1, window_bounds = array<i64: 256, 16>}, {pipeline_mode = #tpu.pipeline_mode<synchronous>, transform_indices = @transform_2, window_bounds = array<i64: 1, 16>}, {pipeline_mode = #tpu.pipeline_mode<synchronous>, transform_indices = @transform_3, window_bounds = array<i64: 1, 16>}, {pipeline_mode = #tpu.pipeline_mode<synchronous>, transform_indices = @transform_4, window_bounds = array<i64: 1, 16>}, {pipeline_mode = #tpu.pipeline_mode<synchronous>, transform_indices = @transform_5, window_bounds = array<i64: 1, 16>}, {transform_indices = @transform_6, window_bounds = array<i64: 256, 16>}]} {
    %c0 = arith.constant 0 : index
    %c0_0 = arith.constant 0 : index
    %0 = vector.load %arg1[%c0, %c0_0] : memref<256x16xf32, #tpu.memory_space<vmem>>, vector<256x16xf32>
    %c0_1 = arith.constant 0 : index
    %c0_2 = arith.constant 0 : index
    %1 = vector.load %arg3[%c0_1, %c0_2] : memref<1x16xf32, #tpu.memory_space<vmem>>, vector<1x16xf32>
    %2 = vector.broadcast %1 : vector<1x16xf32> to vector<256x16xf32>
    %3 = arith.mulf %0, %2 : vector<256x16xf32>
    %c0_3 = arith.constant 0 : index
    %c0_4 = arith.constant 0 : index
    %4 = vector.load %arg4[%c0_3, %c0_4] : memref<1x16xf32, #tpu.memory_space<vmem>>, vector<1x16xf32>
    %5 = vector.broadcast %4 : vector<1x16xf32> to vector<256x16xf32>
    %6 = arith.addf %3, %5 : vector<256x16xf32>
    %c0_5 = arith.constant 0 : index
    %c0_6 = arith.constant 0 : index
    %7 = vector.load %arg2[%c0_5, %c0_6] : memref<256x16xf32, #tpu.memory_space<vmem>>, vector<256x16xf32>
    %c0_7 = arith.constant 0 : index
    %c0_8 = arith.constant 0 : index
    %8 = vector.load %arg5[%c0_7, %c0_8] : memref<1x16xf32, #tpu.memory_space<vmem>>, vector<1x16xf32>
    %9 = vector.broadcast %8 : vector<1x16xf32> to vector<256x16xf32>
    %10 = arith.mulf %7, %9 : vector<256x16xf32>
    %c0_9 = arith.constant 0 : index
    %c0_10 = arith.constant 0 : index
    %11 = vector.load %arg6[%c0_9, %c0_10] : memref<1x16xf32, #tpu.memory_space<vmem>>, vector<1x16xf32>
    %12 = vector.broadcast %11 : vector<1x16xf32> to vector<256x16xf32>
    %13 = arith.addf %10, %12 : vector<256x16xf32>
    %14 = arith.addf %6, %13 : vector<256x16xf32>
    %cst = arith.constant 0.000000e+00 : f32
    %15 = vector.broadcast %cst : f32 to vector<256x16xf32>
    %16 = arith.maximumf %14, %15 : vector<256x16xf32>
    %c0_11 = arith.constant 0 : index
    %c0_12 = arith.constant 0 : index
    %17 = vector.load %arg7[%c0_11, %c0_12] : memref<256x16xf32, #tpu.memory_space<vmem>>, vector<256x16xf32>
    tpu.vector_store %arg7[%c0_11, %c0_12], %16 {strides = array<i32>} : memref<256x16xf32, #tpu.memory_space<vmem>>, vector<256x16xf32>,
    return
  }
  func.func @transform_0(%arg0: i32) -> (i32, i32) {
    %c0_i32 = arith.constant 0 : i32
    %c0_i32_0 = arith.constant 0 : i32
    return %arg0, %c0_i32 : i32, i32
  }
  func.func @transform_1(%arg0: i32) -> (i32, i32) {
    %c0_i32 = arith.constant 0 : i32
    %c0_i32_0 = arith.constant 0 : i32
    return %arg0, %c0_i32 : i32, i32
  }
  func.func @transform_2(%arg0: i32) -> (i32, i32) {
    %c0_i32 = arith.constant 0 : i32
    %c0_i32_0 = arith.constant 0 : i32
    %c0_i32_1 = arith.constant 0 : i32
    return %c0_i32, %c0_i32_0 : i32, i32
  }
  func.func @transform_3(%arg0: i32) -> (i32, i32) {
    %c0_i32 = arith.constant 0 : i32
    %c0_i32_0 = arith.constant 0 : i32
    %c0_i32_1 = arith.constant 0 : i32
    return %c0_i32, %c0_i32_0 : i32, i32
  }
  func.func @transform_4(%arg0: i32) -> (i32, i32) {
    %c0_i32 = arith.constant 0 : i32
    %c0_i32_0 = arith.constant 0 : i32
    %c0_i32_1 = arith.constant 0 : i32
    return %c0_i32, %c0_i32_0 : i32, i32
  }
  func.func @transform_5(%arg0: i32) -> (i32, i32) {
    %c0_i32 = arith.constant 0 : i32
    %c0_i32_0 = arith.constant 0 : i32
    %c0_i32_1 = arith.constant 0 : i32
    return %c0_i32, %c0_i32_0 : i32, i32
  }
  func.func @transform_6(%arg0: i32) -> (i32, i32) {
    %c0_i32 = arith.constant 0 : i32
    %c0_i32_0 = arith.constant 0 : i32
    return %arg0, %c0_i32 : i32, i32
  }
}

</mosaic_0001>

<llo_original>
// kernel: bottleneck_block_nhwc.6
$region0: #{bottleneck_block_nhwc.6}
  #allocation0 [shape = 'u32[]', space=smem, size = 0x4, offset = 0x4, fixed_abs, tag = 'smem constant byte address 0x4 - core index']
  #allocation1 [shape = 'u32[144,128]{1,0:T(1,128)}', space=vmem, size = 0x12000, scoped, tag = 'internal scratch']
  %s0 = inlined_call_operand.vmem [shape: f32[512,4], index: 0, kind: input, shape index: {}]
  %s1 = inlined_call_operand.vmem [shape: f32[1,4], index: 1, kind: input, shape index: {}]
  %s2 = inlined_call_operand.vmem [shape: f32[1,4], index: 2, kind: input, shape index: {}]
  %s3 = inlined_call_operand.vmem [shape: bf16[4,16], index: 3, kind: input, shape index: {}]
  %s4 = inlined_call_operand.vmem [shape: f32[512,16], index: 4, kind: output, shape index: {0}]
  %s5 = inlined_call_operand.vmem [shape: f32[2,2,16], index: 5, kind: output, shape index: {1}]
  %6 = xla_tuple %s4, %s5
  %s7 = sld [smem:[#allocation0]]
  $region57: #{bottleneck_block_nhwc.6} parent=0
    _
  %s9 = ssub.s32 1, %s7
  %s10 = scalar_select 0, %s9, %s7
  loop: start=0, step=1, limit=4
  $region2: #{bottleneck_block_nhwc.6} parent=0 // loop_pre_header
    _
  $region3: #{bottleneck_block_nhwc.6} parent=0 // loop_header
    %s12 = sphi 0, %s16
    %p13 = scmp.ge.s32.totalorder %s12, 4
    %s22 = sphi 0, %s24
    %s25 = sphi 0, %s22
    %s26 = sphi 0, %s25
    %s42 = sphi 0, %s26
    %s46 = sphi 0, %s46
    %s48 = sphi 0, %s46
    %s49 = sphi 0, %s48
    %s63 = sphi 0, %s49
    %s67 = sphi 0, %s67
    %s69 = sphi 0, %s67
    %s70 = sphi 0, %s69
    %s84 = sphi 0, %s70
    %s88 = sphi 0, %s88
    %s90 = sphi 0, %s88
    %s91 = sphi 0, %s90
    %s105 = sphi 0, %s91
    %s111 = sphi 0, %s113
    %s114 = sphi 0, %s111
    %s115 = sphi 0, %s114
    %s131 = sphi 0, %s115
    %s137 = sphi 0, %s139
    %s140 = sphi 0, %s137
    %s141 = sphi 0, %s140
    %s157 = sphi 0, %s141
  $region4: #{bottleneck_block_nhwc.6} parent=0 // loop_header_branch
    %15 = sbr.rel (%p13) target = $region8
  $region5: #{bottleneck_block_nhwc.6} parent=0 // loop_body
    %s17 = ssub.s32 %s12, 1
    %s18 = ssub.s32 %s12, 2
    %s19 = sadd.s32 %s12, 1
    %s20 = ssub.s32 %s12, %s19
    %p21 = scmp.eq.s32.totalorder %s20, 0
    %s23 = sadd.s32 %s22, 1
    %s24 = scalar_select %p21, %s22, %s23
    %p27 = pneg %p21
    %p28 = scmp.eq.s32.totalorder %s12, 1
    %p29 = por %p27, %p28
    %p30 = scmp.ne.s32.totalorder %s22, %s25
    %p31 = scmp.eq.s32.totalorder %s12, 0
    %p32 = por %p30, %p31
    %p33 = scmp.ne.s32.totalorder %s22, %s25
    %p34 = scmp.eq.s32.totalorder %s17, 1
    %p35 = por %p33, %p34
    %p36 = scmp.ne.s32.totalorder %s25, %s26
    %p37 = scmp.eq.s32.totalorder %s17, 0
    %p38 = por %p36, %p37
    %p39 = scmp.ne.s32.totalorder %s25, %s26
    %p40 = scmp.eq.s32.totalorder %s18, 1
    %p41 = por %p39, %p40
    %p43 = scmp.ne.s32.totalorder %s26, %s42
    %p44 = scmp.eq.s32.totalorder %s18, 0
    %p45 = por %p43, %p44
    %s47 = sadd.s32 %s46, 1
    %p50 = scmp.eq.s32.totalorder %s12, 1
    %p51 = scmp.ne.s32.totalorder %s46, %s48
    %p52 = scmp.eq.s32.totalorder %s12, 0
    %p53 = por %p51, %p52
    %p54 = scmp.ne.s32.totalorder %s46, %s48
    %p55 = scmp.eq.s32.totalorder %s17, 1
    %p56 = por %p54, %p55
    %p57 = scmp.ne.s32.totalorder %s48, %s49
    %p58 = scmp.eq.s32.totalorder %s17, 0
    %p59 = por %p57, %p58
    %p60 = scmp.ne.s32.totalorder %s48, %s49
    %p61 = scmp.eq.s32.totalorder %s18, 1
    %p62 = por %p60, %p61
    %p64 = scmp.ne.s32.totalorder %s49, %s63
    %p65 = scmp.eq.s32.totalorder %s18, 0
    %p66 = por %p64, %p65
    %s68 = sadd.s32 %s67, 1
    %p71 = scmp.eq.s32.totalorder %s12, 1
    %p72 = scmp.ne.s32.totalorder %s67, %s69
    %p73 = scmp.eq.s32.totalorder %s12, 0
    %p74 = por %p72, %p73
    %p75 = scmp.ne.s32.totalorder %s67, %s69
    %p76 = scmp.eq.s32.totalorder %s17, 1
    %p77 = por %p75, %p76
    %p78 = scmp.ne.s32.totalorder %s69, %s70
    %p79 = scmp.eq.s32.totalorder %s17, 0
    %p80 = por %p78, %p79
    %p81 = scmp.ne.s32.totalorder %s69, %s70
    %p82 = scmp.eq.s32.totalorder %s18, 1
    %p83 = por %p81, %p82
    %p85 = scmp.ne.s32.totalorder %s70, %s84
    %p86 = scmp.eq.s32.totalorder %s18, 0
    %p87 = por %p85, %p86
    %s89 = sadd.s32 %s88, 1
    %p92 = scmp.eq.s32.totalorder %s12, 1
    %p93 = scmp.ne.s32.totalorder %s88, %s90
    %p94 = scmp.eq.s32.totalorder %s12, 0
    %p95 = por %p93, %p94
    %p96 = scmp.ne.s32.totalorder %s88, %s90
    %p97 = scmp.eq.s32.totalorder %s17, 1
    %p98 = por %p96, %p97
    %p99 = scmp.ne.s32.totalorder %s90, %s91
    %p100 = scmp.eq.s32.totalorder %s17, 0
    %p101 = por %p99, %p100
    %p102 = scmp.ne.s32.totalorder %s90, %s91
    %p103 = scmp.eq.s32.totalorder %s18, 1
    %p104 = por %p102, %p103
    %p106 = scmp.ne.s32.totalorder %s91, %s105
    %p107 = scmp.eq.s32.totalorder %s18, 0
    %p108 = por %p106, %p107
    %s109 = ssub.s32 %s12, %s19
    %p110 = scmp.eq.s32.totalorder %s109, 0
    %s112 = sadd.s32 %s111, 1
    %s113 = scalar_select %p110, %s111, %s112
    %p116 = pneg %p110
    %p117 = scmp.eq.s32.totalorder %s12, 1
    %p118 = por %p116, %p117
    %p119 = scmp.ne.s32.totalorder %s111, %s114
    %p120 = scmp.eq.s32.totalorder %s12, 0
    %p121 = por %p119, %p120
    %p122 = scmp.ne.s32.totalorder %s111, %s114
    %p123 = scmp.eq.s32.totalorder %s17, 1
    %p124 = por %p122, %p123
    %p125 = scmp.ne.s32.totalorder %s114, %s115
    %p126 = scmp.eq.s32.totalorder %s17, 0
    %p127 = por %p125, %p126
    %p128 = scmp.ne.s32.totalorder %s114, %s115
    %p129 = scmp.eq.s32.totalorder %s18, 1
    %p130 = por %p128, %p129
    %p132 = scmp.ne.s32.totalorder %s115, %s131
    %p133 = scmp.eq.s32.totalorder %s18, 0
    %p134 = por %p132, %p133
    %s135 = ssub.s32 %s12, %s19
    %p136 = scmp.eq.s32.totalorder %s135, 0
    %s138 = sadd.s32 %s137, 1
    %s139 = scalar_select %p136, %s137, %s138
    %p142 = pneg %p136
    %p143 = scmp.eq.s32.totalorder %s12, 1
    %p144 = por %p142, %p143
    %p145 = scmp.ne.s32.totalorder %s137, %s140
    %p146 = scmp.eq.s32.totalorder %s12, 0
    %p147 = por %p145, %p146
    %p148 = scmp.ne.s32.totalorder %s137, %s140
    %p149 = scmp.eq.s32.totalorder %s17, 1
    %p150 = por %p148, %p149
    %p151 = scmp.ne.s32.totalorder %s140, %s141
    %p152 = scmp.eq.s32.totalorder %s17, 0
    %p153 = por %p151, %p152
    %p154 = scmp.ne.s32.totalorder %s140, %s141
    %p155 = scmp.eq.s32.totalorder %s18, 1
    %p156 = por %p154, %p155
    %p158 = scmp.ne.s32.totalorder %s141, %s157
    %p159 = scmp.eq.s32.totalorder %s18, 0
    %p160 = por %p158, %p159
    %p161 = scmp.le.s32.totalorder 1, %s12
    %p162 = scmp.lt.s32.totalorder %s12, 3
    %p163 = pnand %p161, %p162
    %p164 = pneg %p163
    // Predicated region
    $region9: #{bottleneck_block_nhwc.6} parent=5 // pred_check
      _
    $region10: #{bottleneck_block_nhwc.6} parent=5 // pred_check_branch
      %166 = sbr.rel (%p163) target = $region12
    $region11: #{bottleneck_block_nhwc.6} parent=5 // pred_region
      %s167 = ssub.s32 %s12, 1
      // Predicated region
      $region13: #{bottleneck_block_nhwc.6} parent=11 // pred_check
        %p168 = pneg %p59
      $region14: #{bottleneck_block_nhwc.6} parent=11 // pred_check_branch
        %170 = sbr.rel (%p168) target = $region16
      $region15: #{bottleneck_block_nhwc.6} parent=11 // pred_region
        _
      $region16: #{bottleneck_block_nhwc.6} parent=11 // pred_fallthru
        _
      // Predicated region
      $region17: #{bottleneck_block_nhwc.6} parent=11 // pred_check
        %p171 = pneg %p80
      $region18: #{bottleneck_block_nhwc.6} parent=11 // pred_check_branch
        %173 = sbr.rel (%p171) target = $region20
      $region19: #{bottleneck_block_nhwc.6} parent=11 // pred_region
        _
      $region20: #{bottleneck_block_nhwc.6} parent=11 // pred_fallthru
        _
      // Predicated region
      $region21: #{bottleneck_block_nhwc.6} parent=11 // pred_check
        %p174 = pneg %p101
      $region22: #{bottleneck_block_nhwc.6} parent=11 // pred_check_branch
        %176 = sbr.rel (%p174) target = $region24
      $region23: #{bottleneck_block_nhwc.6} parent=11 // pred_region
        _
      $region24: #{bottleneck_block_nhwc.6} parent=11 // pred_fallthru
        _
    $region12: #{bottleneck_block_nhwc.6} parent=5 // pred_fallthru
      _
    %p177 = scmp.lt.s32.totalorder %s12, 2
    // Predicated region
    $region25: #{bottleneck_block_nhwc.6} parent=5 // pred_check
      %p178 = pneg %p177
    $region26: #{bottleneck_block_nhwc.6} parent=5 // pred_check_branch
      %180 = sbr.rel (%p178) target = $region28
    $region27: #{bottleneck_block_nhwc.6} parent=5 // pred_region
      // Predicated region
      $region29: #{bottleneck_block_nhwc.6} parent=27 // pred_check
        %p181 = pneg %p32
      $region30: #{bottleneck_block_nhwc.6} parent=27 // pred_check_branch
        %183 = sbr.rel (%p181) target = $region32
      $region31: #{bottleneck_block_nhwc.6} parent=27 // pred_region
        %s184 = smul.u32 32, %s12
        %p185 = scmp.lt.s32.totalorder %s184, 63
        %s186 = scalar_select %p185, %s184, 63
        %s187 = smul.addr %s186, 8
        %s188 = scalar_lea.vmem %s0, %s187
        %s189 = smul.u32 32, %s12
      $region32: #{bottleneck_block_nhwc.6} parent=27 // pred_fallthru
        _
    $region28: #{bottleneck_block_nhwc.6} parent=5 // pred_fallthru
      _
    %p190 = scmp.le.s32.totalorder 1, %s12
    %p191 = scmp.lt.s32.totalorder %s12, 3
    %p192 = pnand %p190, %p191
    %p193 = pneg %p192
    // Predicated region
    $region33: #{bottleneck_block_nhwc.6} parent=5 // pred_check
      _
    $region34: #{bottleneck_block_nhwc.6} parent=5 // pred_check_branch
      %195 = sbr.rel (%p192) target = $region36
    $region35: #{bottleneck_block_nhwc.6} parent=5 // pred_region
      %s196 = ssub.s32 %s12, 1
      %s197 = smul.u32 32, %s17
      %p198 = scmp.lt.s32.totalorder %s197, 63
      %s199 = scalar_select %p198, %s197, 63
      %s200 = smul.addr %s199, 8
      %s201 = scalar_lea.vmem %s0, %s200
      %p202 = pneg %p38
      %p203 = pneg %p35
      %p204 = pneg %p59
      %p205 = pneg %p56
      %p206 = pneg %p80
      %p207 = pneg %p77
      %p208 = pneg %p101
      %p209 = pneg %p98
      %p210 = pneg %p127
      %p211 = pneg %p124
      %s212 = smul.u32 32, %s17
      %p213 = scmp.lt.s32.totalorder %s212, 63
      %s214 = scalar_select %p213, %s212, 63
      %s215 = smul.addr %s214, 8
      %s216 = scalar_lea.vmem %s4, %s215
      %p217 = pneg %p153
      %p218 = pneg %p150
      %p219 = scmp.lt.s32.totalorder %s17, 1
      %s220 = scalar_select %p219, %s17, 1
      %s221 = smul.addr %s220, 2
      %s222 = scalar_lea.vmem %s5, %s221
      %s223 = smul.u32 32, %s17
      %p224 = scmp.lt.s32.totalorder %s223, 63
      %s225 = scalar_select %p224, %s223, 63
      %s226 = smul.addr %s225, 8
      %s227 = scalar_lea.vmem %s0, %s226
      %s228 = smul.u32 32, %s17
      %s229 = smul.u32 32, %s17
      %p230 = scmp.lt.s32.totalorder %s229, 63
      %s231 = scalar_select %p230, %s229, 63
      %s232 = smul.addr %s231, 8
      %s233 = scalar_lea.vmem %s4, %s232
      %s234 = smul.u32 32, %s17
      %p235 = scmp.lt.s32.totalorder %s17, 1
      %s236 = scalar_select %p235, %s17, 1
      %s237 = smul.addr %s236, 2
      %s238 = scalar_lea.vmem %s5, %s237
      %v240 = vld [vmem:[%s227] sm:$0xff]
      %v241 = vld [vmem:[%s227 + $0x8] sm:$0xff]
      %v242 = vld [vmem:[%s227 + $0x10] sm:$0xff]
      %v243 = vld [vmem:[%s227 + $0x18] sm:$0xff]
      %v244 = vld [vmem:[%s227 + $0x20] sm:$0xff]
      %v245 = vld [vmem:[%s227 + $0x28] sm:$0xff]
      %v246 = vld [vmem:[%s227 + $0x30] sm:$0xff]
      %v247 = vld [vmem:[%s227 + $0x38] sm:$0xff]
      %v248 = vld [vmem:[%s227 + $0x40] sm:$0xff]
      %v249 = vld [vmem:[%s227 + $0x48] sm:$0xff]
      %v250 = vld [vmem:[%s227 + $0x50] sm:$0xff]
      %v251 = vld [vmem:[%s227 + $0x58] sm:$0xff]
      %v252 = vld [vmem:[%s227 + $0x60] sm:$0xff]
      %v253 = vld [vmem:[%s227 + $0x68] sm:$0xff]
      %v254 = vld [vmem:[%s227 + $0x70] sm:$0xff]
      %v255 = vld [vmem:[%s227 + $0x78] sm:$0xff]
      %v256 = vld [vmem:[%s227 + $0x80] sm:$0xff]
      %v257 = vld [vmem:[%s227 + $0x88] sm:$0xff]
      %v258 = vld [vmem:[%s227 + $0x90] sm:$0xff]
      %v259 = vld [vmem:[%s227 + $0x98] sm:$0xff]
      %v260 = vld [vmem:[%s227 + $0xa0] sm:$0xff]
      %v261 = vld [vmem:[%s227 + $0xa8] sm:$0xff]
      %v262 = vld [vmem:[%s227 + $0xb0] sm:$0xff]
      %v263 = vld [vmem:[%s227 + $0xb8] sm:$0xff]
      %v264 = vld [vmem:[%s227 + $0xc0] sm:$0xff]
      %v265 = vld [vmem:[%s227 + $0xc8] sm:$0xff]
      %v266 = vld [vmem:[%s227 + $0xd0] sm:$0xff]
      %v267 = vld [vmem:[%s227 + $0xd8] sm:$0xff]
      %v268 = vld [vmem:[%s227 + $0xe0] sm:$0xff]
      %v269 = vld [vmem:[%s227 + $0xe8] sm:$0xff]
      %v270 = vld [vmem:[%s227 + $0xf0] sm:$0xff]
      %v271 = vld [vmem:[%s227 + $0xf8] sm:$0xff]
      %v272 = vld [vmem:[%s1] sm:$0x1]
      %v274 = vlaneseq
      %v275 = vshrl.u32 %v274, 7
      %v276 = vsub.s32 0, %v275
      %v277 = vrot.slane %v272, %v276
      %v279 = vmul.f32 %v240, %v277
      %v280 = vmul.f32 %v241, %v277
      %v281 = vmul.f32 %v242, %v277
      %v282 = vmul.f32 %v243, %v277
      %v283 = vmul.f32 %v244, %v277
      %v284 = vmul.f32 %v245, %v277
      %v285 = vmul.f32 %v246, %v277
      %v286 = vmul.f32 %v247, %v277
      %v287 = vmul.f32 %v248, %v277
      %v288 = vmul.f32 %v249, %v277
      %v289 = vmul.f32 %v250, %v277
      %v290 = vmul.f32 %v251, %v277
      %v291 = vmul.f32 %v252, %v277
      %v292 = vmul.f32 %v253, %v277
      %v293 = vmul.f32 %v254, %v277
      %v294 = vmul.f32 %v255, %v277
      %v295 = vmul.f32 %v256, %v277
      %v296 = vmul.f32 %v257, %v277
      %v297 = vmul.f32 %v258, %v277
      %v298 = vmul.f32 %v259, %v277
      %v299 = vmul.f32 %v260, %v277
      %v300 = vmul.f32 %v261, %v277
      %v301 = vmul.f32 %v262, %v277
      %v302 = vmul.f32 %v263, %v277
      %v303 = vmul.f32 %v264, %v277
      %v304 = vmul.f32 %v265, %v277
      %v305 = vmul.f32 %v266, %v277
      %v306 = vmul.f32 %v267, %v277
      %v307 = vmul.f32 %v268, %v277
      %v308 = vmul.f32 %v269, %v277
      %v309 = vmul.f32 %v270, %v277
      %v310 = vmul.f32 %v271, %v277
      %v311 = vld [vmem:[%s2] sm:$0x1]
      %v313 = vlaneseq
      %v314 = vshrl.u32 %v313, 7
      %v315 = vsub.s32 0, %v314
      %v316 = vrot.slane %v311, %v315
      %v318 = vadd.f32 %v279, %v316
      %v319 = vadd.f32 %v280, %v316
      %v320 = vadd.f32 %v281, %v316
      %v321 = vadd.f32 %v282, %v316
      %v322 = vadd.f32 %v283, %v316
      %v323 = vadd.f32 %v284, %v316
      %v324 = vadd.f32 %v285, %v316
      %v325 = vadd.f32 %v286, %v316
      %v326 = vadd.f32 %v287, %v316
      %v327 = vadd.f32 %v288, %v316
      %v328 = vadd.f32 %v289, %v316
      %v329 = vadd.f32 %v290, %v316
      %v330 = vadd.f32 %v291, %v316
      %v331 = vadd.f32 %v292, %v316
      %v332 = vadd.f32 %v293, %v316
      %v333 = vadd.f32 %v294, %v316
      %v334 = vadd.f32 %v295, %v316
      %v335 = vadd.f32 %v296, %v316
      %v336 = vadd.f32 %v297, %v316
      %v337 = vadd.f32 %v298, %v316
      %v338 = vadd.f32 %v299, %v316
      %v339 = vadd.f32 %v300, %v316
      %v340 = vadd.f32 %v301, %v316
      %v341 = vadd.f32 %v302, %v316
      %v342 = vadd.f32 %v303, %v316
      %v343 = vadd.f32 %v304, %v316
      %v344 = vadd.f32 %v305, %v316
      %v345 = vadd.f32 %v306, %v316
      %v346 = vadd.f32 %v307, %v316
      %v347 = vadd.f32 %v308, %v316
      %v348 = vadd.f32 %v309, %v316
      %v349 = vadd.f32 %v310, %v316
      %v350 = vmax.f32 %v318, 0.0
      %v351 = vmax.f32 %v319, 0.0
      %v352 = vmax.f32 %v320, 0.0
      %v353 = vmax.f32 %v321, 0.0
      %v354 = vmax.f32 %v322, 0.0
      %v355 = vmax.f32 %v323, 0.0
      %v356 = vmax.f32 %v324, 0.0
      %v357 = vmax.f32 %v325, 0.0
      %v358 = vmax.f32 %v326, 0.0
      %v359 = vmax.f32 %v327, 0.0
      %v360 = vmax.f32 %v328, 0.0
      %v361 = vmax.f32 %v329, 0.0
      %v362 = vmax.f32 %v330, 0.0
      %v363 = vmax.f32 %v331, 0.0
      %v364 = vmax.f32 %v332, 0.0
      %v365 = vmax.f32 %v333, 0.0
      %v366 = vmax.f32 %v334, 0.0
      %v367 = vmax.f32 %v335, 0.0
      %v368 = vmax.f32 %v336, 0.0
      %v369 = vmax.f32 %v337, 0.0
      %v370 = vmax.f32 %v338, 0.0
      %v371 = vmax.f32 %v339, 0.0
      %v372 = vmax.f32 %v340, 0.0
      %v373 = vmax.f32 %v341, 0.0
      %v374 = vmax.f32 %v342, 0.0
      %v375 = vmax.f32 %v343, 0.0
      %v376 = vmax.f32 %v344, 0.0
      %v377 = vmax.f32 %v345, 0.0
      %v378 = vmax.f32 %v346, 0.0
      %v379 = vmax.f32 %v347, 0.0
      %v380 = vmax.f32 %v348, 0.0
      %v381 = vmax.f32 %v349, 0.0
      %v382 = vpack.c.bf16 %v351, %v350
      %v383 = vpack.c.bf16 %v353, %v352
      %v384 = vpack.c.bf16 %v355, %v354
      %v385 = vpack.c.bf16 %v357, %v356
      %v386 = vpack.c.bf16 %v359, %v358
      %v387 = vpack.c.bf16 %v361, %v360
      %v388 = vpack.c.bf16 %v363, %v362
      %v389 = vpack.c.bf16 %v365, %v364
      %v390 = vpack.c.bf16 %v367, %v366
      %v391 = vpack.c.bf16 %v369, %v368
      %v392 = vpack.c.bf16 %v371, %v370
      %v393 = vpack.c.bf16 %v373, %v372
      %v394 = vpack.c.bf16 %v375, %v374
      %v395 = vpack.c.bf16 %v377, %v376
      %v396 = vpack.c.bf16 %v379, %v378
      %v397 = vpack.c.bf16 %v381, %v380
      %v398 = vld [vmem:[%s3] sm:$0x3]
      %vm399 = vcmask 31744
      %v401 = vsel %vm399, %v382, 0
      %v404 = vsel %vm399, %v383, 0
      %v407 = vsel %vm399, %v384, 0
      %v410 = vsel %vm399, %v385, 0
      %v413 = vsel %vm399, %v386, 0
      %v416 = vsel %vm399, %v387, 0
      %v419 = vsel %vm399, %v388, 0
      %v422 = vsel %vm399, %v389, 0
      %v425 = vsel %vm399, %v390, 0
      %v428 = vsel %vm399, %v391, 0
      %v431 = vsel %vm399, %v392, 0
      %v434 = vsel %vm399, %v393, 0
      %v437 = vsel %vm399, %v394, 0
      %v440 = vsel %vm399, %v395, 0
      %v443 = vsel %vm399, %v396, 0
      %v446 = vsel %vm399, %v397, 0
      %vm448 = vcmask 1041408
      %v450 = vsel %vm448, %v398, 0
      %452 = vmatprep.subr.bf16.mxu0 0
      %453 = vmatpush1.bf16.msra.mxu0 0
      %454 = vmatprep.subr.bf16.mxu0 0
      %455 = vmatpush1.bf16.msra.mxu0 0
      %456 = vmatprep.subr.bf16.mxu0 0
      %457 = vmatpush1.bf16.msra.mxu0 0
      %458 = vmatprep.subr.bf16.mxu0 0
      %459 = vmatpush1.bf16.msra.mxu0 0
      %460 = vmatprep.subr.bf16.mxu0 0
      %461 = vmatpush1.bf16.msra.mxu0 0
      %462 = vmatprep.subr.bf16.mxu0 0
      %463 = vmatpush1.bf16.msra.mxu0 0
      %464 = vmatprep.subr.bf16.mxu0 0
      %465 = vmatpush1.bf16.msra.mxu0 0
      %466 = vmatprep.subr.bf16.mxu0 0
      %467 = vmatpush1.bf16.msra.mxu0 %v450
      %468 = vmatprep.subr.bf16.mxu0 0
      %469 = vmatpush2.bf16.msra.mxu0 0
      %470 = vmatprep.subr.bf16.mxu0 0
      %471 = vmatpush2.bf16.msra.mxu0 0
      %472 = vmatprep.subr.bf16.mxu0 0
      %473 = vmatpush2.bf16.msra.mxu0 0
      %474 = vmatprep.subr.bf16.mxu0 0
      %475 = vmatpush2.bf16.msra.mxu0 0
      %476 = vmatprep.subr.bf16.mxu0 0
      %477 = vmatpush2.bf16.msra.mxu0 0
      %478 = vmatprep.subr.bf16.mxu0 0
      %479 = vmatpush2.bf16.msra.mxu0 0
      %480 = vmatprep.subr.bf16.mxu0 0
      %481 = vmatpush2.bf16.msra.mxu0 0
      %482 = vmatprep.subr.bf16.mxu0 0
      %483 = vmatpush2.bf16.msra.mxu0 0
      %484 = vmatprep.mubr.bf16.mxu0 0
      %485 = vmatmul.mubr.bf16.gmra.mxu0 %v401
      %v486 = vpop.f32.mrf.mxu0
      %v487 = vadd.f32 0.0, %v486
      %v488 = vpop.f32.mrf.mxu0
      %v489 = vpop.f32.mrf.mxu0
      %v490 = vadd.f32 0.0, %v489
      %v491 = vpop.f32.mrf.mxu0
      %492 = vmatprep.mubr.bf16.mxu0 0
      %493 = vmatmul.mubr.bf16.gmra.mxu0 %v404
      %v494 = vpop.f32.mrf.mxu0
      %v495 = vadd.f32 0.0, %v494
      %v496 = vpop.f32.mrf.mxu0
      %v497 = vpop.f32.mrf.mxu0
      %v498 = vadd.f32 0.0, %v497
      %v499 = vpop.f32.mrf.mxu0
      %500 = vmatprep.mubr.bf16.mxu0 0
      %501 = vmatmul.mubr.bf16.gmra.mxu0 %v407
      %v502 = vpop.f32.mrf.mxu0
      %v503 = vadd.f32 0.0, %v502
      %v504 = vpop.f32.mrf.mxu0
      %v505 = vpop.f32.mrf.mxu0
      %v506 = vadd.f32 0.0, %v505
      %v507 = vpop.f32.mrf.mxu0
      %508 = vmatprep.mubr.bf16.mxu0 0
      %509 = vmatmul.mubr.bf16.gmra.mxu0 %v410
      %v510 = vpop.f32.mrf.mxu0
      %v511 = vadd.f32 0.0, %v510
      %v512 = vpop.f32.mrf.mxu0
      %v513 = vpop.f32.mrf.mxu0
      %v514 = vadd.f32 0.0, %v513
      %v515 = vpop.f32.mrf.mxu0
      %516 = vmatprep.mubr.bf16.mxu0 0
      %517 = vmatmul.mubr.bf16.gmra.mxu0 %v413
      %v518 = vpop.f32.mrf.mxu0
      %v519 = vadd.f32 0.0, %v518
      %v520 = vpop.f32.mrf.mxu0
      %v521 = vpop.f32.mrf.mxu0
      %v522 = vadd.f32 0.0, %v521
      %v523 = vpop.f32.mrf.mxu0
      %524 = vmatprep.mubr.bf16.mxu0 0
      %525 = vmatmul.mubr.bf16.gmra.mxu0 %v416
      %v526 = vpop.f32.mrf.mxu0
      %v527 = vadd.f32 0.0, %v526
      %v528 = vpop.f32.mrf.mxu0
      %v529 = vpop.f32.mrf.mxu0
      %v530 = vadd.f32 0.0, %v529
      %v531 = vpop.f32.mrf.mxu0
      %532 = vmatprep.mubr.bf16.mxu0 0
      %533 = vmatmul.mubr.bf16.gmra.mxu0 %v419
      %v534 = vpop.f32.mrf.mxu0
      %v535 = vadd.f32 0.0, %v534
      %v536 = vpop.f32.mrf.mxu0
      %v537 = vpop.f32.mrf.mxu0
      %v538 = vadd.f32 0.0, %v537
      %v539 = vpop.f32.mrf.mxu0
      %540 = vmatprep.mubr.bf16.mxu0 0
      %541 = vmatmul.mubr.bf16.gmra.mxu0 %v422
      %v542 = vpop.f32.mrf.mxu0
      %v543 = vadd.f32 0.0, %v542
      %v544 = vpop.f32.mrf.mxu0
      %v545 = vpop.f32.mrf.mxu0
      %v546 = vadd.f32 0.0, %v545
      %v547 = vpop.f32.mrf.mxu0
      %548 = vmatprep.mubr.bf16.mxu0 0
      %549 = vmatmul.mubr.bf16.gmra.mxu0 %v425
      %v550 = vpop.f32.mrf.mxu0
      %v551 = vadd.f32 0.0, %v550
      %v552 = vpop.f32.mrf.mxu0
      %v553 = vpop.f32.mrf.mxu0
      %v554 = vadd.f32 0.0, %v553
      %v555 = vpop.f32.mrf.mxu0
      %556 = vmatprep.mubr.bf16.mxu0 0
      %557 = vmatmul.mubr.bf16.gmra.mxu0 %v428
      %v558 = vpop.f32.mrf.mxu0
      %v559 = vadd.f32 0.0, %v558
      %v560 = vpop.f32.mrf.mxu0
      %v561 = vpop.f32.mrf.mxu0
      %v562 = vadd.f32 0.0, %v561
      %v563 = vpop.f32.mrf.mxu0
      %564 = vmatprep.mubr.bf16.mxu0 0
      %565 = vmatmul.mubr.bf16.gmra.mxu0 %v431
      %v566 = vpop.f32.mrf.mxu0
      %v567 = vadd.f32 0.0, %v566
      %v568 = vpop.f32.mrf.mxu0
      %v569 = vpop.f32.mrf.mxu0
      %v570 = vadd.f32 0.0, %v569
      %v571 = vpop.f32.mrf.mxu0
      %572 = vmatprep.mubr.bf16.mxu0 0
      %573 = vmatmul.mubr.bf16.gmra.mxu0 %v434
      %v574 = vpop.f32.mrf.mxu0
      %v575 = vadd.f32 0.0, %v574
      %v576 = vpop.f32.mrf.mxu0
      %v577 = vpop.f32.mrf.mxu0
      %v578 = vadd.f32 0.0, %v577
      %v579 = vpop.f32.mrf.mxu0
      %580 = vmatprep.mubr.bf16.mxu0 0
      %581 = vmatmul.mubr.bf16.gmra.mxu0 %v437
      %v582 = vpop.f32.mrf.mxu0
      %v583 = vadd.f32 0.0, %v582
      %v584 = vpop.f32.mrf.mxu0
      %v585 = vpop.f32.mrf.mxu0
      %v586 = vadd.f32 0.0, %v585
      %v587 = vpop.f32.mrf.mxu0
      %588 = vmatprep.mubr.bf16.mxu0 0
      %589 = vmatmul.mubr.bf16.gmra.mxu0 %v440
      %v590 = vpop.f32.mrf.mxu0
      %v591 = vadd.f32 0.0, %v590
      %v592 = vpop.f32.mrf.mxu0
      %v593 = vpop.f32.mrf.mxu0
      %v594 = vadd.f32 0.0, %v593
      %v595 = vpop.f32.mrf.mxu0
      %596 = vmatprep.mubr.bf16.mxu0 0
      %597 = vmatmul.mubr.bf16.gmra.mxu0 %v443
      %v598 = vpop.f32.mrf.mxu0
      %v599 = vadd.f32 0.0, %v598
      %v600 = vpop.f32.mrf.mxu0
      %v601 = vpop.f32.mrf.mxu0
      %v602 = vadd.f32 0.0, %v601
      %v603 = vpop.f32.mrf.mxu0
      %604 = vmatprep.mubr.bf16.mxu0 0
      %605 = vmatmul.mubr.bf16.gmra.mxu0 %v446
      %v606 = vpop.f32.mrf.mxu0
      %v607 = vadd.f32 0.0, %v606
      %v608 = vpop.f32.mrf.mxu0
      %v609 = vpop.f32.mrf.mxu0
      %v610 = vadd.f32 0.0, %v609
      %v611 = vpop.f32.mrf.mxu0
      %612 = vdwg.mxu0
      %vm613 = vcmask 130048
      %614 = vst.msk [vmem:[%s233] sm:$0xff] %vm613, %v487
      %615 = vst.msk [vmem:[%s233 + $0x8] sm:$0xff] %vm613, %v490
      %616 = vst.msk [vmem:[%s233 + $0x10] sm:$0xff] %vm613, %v495
      %617 = vst.msk [vmem:[%s233 + $0x18] sm:$0xff] %vm613, %v498
      %618 = vst.msk [vmem:[%s233 + $0x20] sm:$0xff] %vm613, %v503
      %619 = vst.msk [vmem:[%s233 + $0x28] sm:$0xff] %vm613, %v506
      %620 = vst.msk [vmem:[%s233 + $0x30] sm:$0xff] %vm613, %v511
      %621 = vst.msk [vmem:[%s233 + $0x38] sm:$0xff] %vm613, %v514
      %622 = vst.msk [vmem:[%s233 + $0x40] sm:$0xff] %vm613, %v519
      %623 = vst.msk [vmem:[%s233 + $0x48] sm:$0xff] %vm613, %v522
      %624 = vst.msk [vmem:[%s233 + $0x50] sm:$0xff] %vm613, %v527
      %625 = vst.msk [vmem:[%s233 + $0x58] sm:$0xff] %vm613, %v530
      %626 = vst.msk [vmem:[%s233 + $0x60] sm:$0xff] %vm613, %v535
      %627 = vst.msk [vmem:[%s233 + $0x68] sm:$0xff] %vm613, %v538
      %628 = vst.msk [vmem:[%s233 + $0x70] sm:$0xff] %vm613, %v543
      %629 = vst.msk [vmem:[%s233 + $0x78] sm:$0xff] %vm613, %v546
      %630 = vst.msk [vmem:[%s233 + $0x80] sm:$0xff] %vm613, %v551
      %631 = vst.msk [vmem:[%s233 + $0x88] sm:$0xff] %vm613, %v554
      %632 = vst.msk [vmem:[%s233 + $0x90] sm:$0xff] %vm613, %v559
      %633 = vst.msk [vmem:[%s233 + $0x98] sm:$0xff] %vm613, %v562
      %634 = vst.msk [vmem:[%s233 + $0xa0] sm:$0xff] %vm613, %v567
      %635 = vst.msk [vmem:[%s233 + $0xa8] sm:$0xff] %vm613, %v570
      %636 = vst.msk [vmem:[%s233 + $0xb0] sm:$0xff] %vm613, %v575
      %637 = vst.msk [vmem:[%s233 + $0xb8] sm:$0xff] %vm613, %v578
      %638 = vst.msk [vmem:[%s233 + $0xc0] sm:$0xff] %vm613, %v583
      %639 = vst.msk [vmem:[%s233 + $0xc8] sm:$0xff] %vm613, %v586
      %640 = vst.msk [vmem:[%s233 + $0xd0] sm:$0xff] %vm613, %v591
      %641 = vst.msk [vmem:[%s233 + $0xd8] sm:$0xff] %vm613, %v594
      %642 = vst.msk [vmem:[%s233 + $0xe0] sm:$0xff] %vm613, %v599
      %643 = vst.msk [vmem:[%s233 + $0xe8] sm:$0xff] %vm613, %v602
      %644 = vst.msk [vmem:[%s233 + $0xf0] sm:$0xff] %vm613, %v607
      %645 = vst.msk [vmem:[%s233 + $0xf8] sm:$0xff] %vm613, %v610
      %v646 = vsel %vm613, %v487, 0.0
      %v647 = vsel %vm613, %v490, 0.0
      %v648 = vadd.f32 %v646, %v647
      %v649 = vsel %vm613, %v495, 0.0
      %v650 = vadd.f32 %v648, %v649
      %v651 = vsel %vm613, %v498, 0.0
      %v652 = vadd.f32 %v650, %v651
      %v653 = vsel %vm613, %v503, 0.0
      %v654 = vadd.f32 %v652, %v653
      %v655 = vsel %vm613, %v506, 0.0
      %v656 = vadd.f32 %v654, %v655
      %v657 = vsel %vm613, %v511, 0.0
      %v658 = vadd.f32 %v656, %v657
      %v659 = vsel %vm613, %v514, 0.0
      %v660 = vadd.f32 %v658, %v659
      %v661 = vsel %vm613, %v519, 0.0
      %v662 = vadd.f32 %v660, %v661
      %v663 = vsel %vm613, %v522, 0.0
      %v664 = vadd.f32 %v662, %v663
      %v665 = vsel %vm613, %v527, 0.0
      %v666 = vadd.f32 %v664, %v665
      %v667 = vsel %vm613, %v530, 0.0
      %v668 = vadd.f32 %v666, %v667
      %v669 = vsel %vm613, %v535, 0.0
      %v670 = vadd.f32 %v668, %v669
      %v671 = vsel %vm613, %v538, 0.0
      %v672 = vadd.f32 %v670, %v671
      %v673 = vsel %vm613, %v543, 0.0
      %v674 = vadd.f32 %v672, %v673
      %v675 = vsel %vm613, %v546, 0.0
      %v676 = vadd.f32 %v674, %v675
      %v677 = vsel %vm613, %v551, 0.0
      %v678 = vadd.f32 %v676, %v677
      %v679 = vsel %vm613, %v554, 0.0
      %v680 = vadd.f32 %v678, %v679
      %v681 = vsel %vm613, %v559, 0.0
      %v682 = vadd.f32 %v680, %v681
      %v683 = vsel %vm613, %v562, 0.0
      %v684 = vadd.f32 %v682, %v683
      %v685 = vsel %vm613, %v567, 0.0
      %v686 = vadd.f32 %v684, %v685
      %v687 = vsel %vm613, %v570, 0.0
      %v688 = vadd.f32 %v686, %v687
      %v689 = vsel %vm613, %v575, 0.0
      %v690 = vadd.f32 %v688, %v689
      %v691 = vsel %vm613, %v578, 0.0
      %v692 = vadd.f32 %v690, %v691
      %v693 = vsel %vm613, %v583, 0.0
      %v694 = vadd.f32 %v692, %v693
      %v695 = vsel %vm613, %v586, 0.0
      %v696 = vadd.f32 %v694, %v695
      %v697 = vsel %vm613, %v591, 0.0
      %v698 = vadd.f32 %v696, %v697
      %v699 = vsel %vm613, %v594, 0.0
      %v700 = vadd.f32 %v698, %v699
      %v701 = vsel %vm613, %v599, 0.0
      %v702 = vadd.f32 %v700, %v701
      %v703 = vsel %vm613, %v602, 0.0
      %v704 = vadd.f32 %v702, %v703
      %v705 = vsel %vm613, %v607, 0.0
      %v706 = vadd.f32 %v704, %v705
      %v707 = vsel %vm613, %v610, 0.0
      %v708 = vadd.f32 %v706, %v707
      %v709 = vrot.slane %v708, 4
      %v710 = vadd.f32 %v708, %v709
      %v711 = vrot.slane %v710, 2
      %v712 = vadd.f32 %v710, %v711
      %v713 = vrot.slane %v712, 1
      %v714 = vadd.f32 %v712, %v713
      %v715 = vmul.f32 %v487, %v487
      %v716 = vmul.f32 %v490, %v490
      %v717 = vmul.f32 %v495, %v495
      %v718 = vmul.f32 %v498, %v498
      %v719 = vmul.f32 %v503, %v503
      %v720 = vmul.f32 %v506, %v506
      %v721 = vmul.f32 %v511, %v511
      %v722 = vmul.f32 %v514, %v514
      %v723 = vmul.f32 %v519, %v519
      %v724 = vmul.f32 %v522, %v522
      %v725 = vmul.f32 %v527, %v527
      %v726 = vmul.f32 %v530, %v530
      %v727 = vmul.f32 %v535, %v535
      %v728 = vmul.f32 %v538, %v538
      %v729 = vmul.f32 %v543, %v543
      %v730 = vmul.f32 %v546, %v546
      %v731 = vmul.f32 %v551, %v551
      %v732 = vmul.f32 %v554, %v554
      %v733 = vmul.f32 %v559, %v559
      %v734 = vmul.f32 %v562, %v562
      %v735 = vmul.f32 %v567, %v567
      %v736 = vmul.f32 %v570, %v570
      %v737 = vmul.f32 %v575, %v575
      %v738 = vmul.f32 %v578, %v578
      %v739 = vmul.f32 %v583, %v583
      %v740 = vmul.f32 %v586, %v586
      %v741 = vmul.f32 %v591, %v591
      %v742 = vmul.f32 %v594, %v594
      %v743 = vmul.f32 %v599, %v599
      %v744 = vmul.f32 %v602, %v602
      %v745 = vmul.f32 %v607, %v607
      %v746 = vmul.f32 %v610, %v610
      %v747 = vsel %vm613, %v715, 0.0
      %v748 = vsel %vm613, %v716, 0.0
      %v749 = vadd.f32 %v747, %v748
      %v750 = vsel %vm613, %v717, 0.0
      %v751 = vadd.f32 %v749, %v750
      %v752 = vsel %vm613, %v718, 0.0
      %v753 = vadd.f32 %v751, %v752
      %v754 = vsel %vm613, %v719, 0.0
      %v755 = vadd.f32 %v753, %v754
      %v756 = vsel %vm613, %v720, 0.0
      %v757 = vadd.f32 %v755, %v756
      %v758 = vsel %vm613, %v721, 0.0
      %v759 = vadd.f32 %v757, %v758
      %v760 = vsel %vm613, %v722, 0.0
      %v761 = vadd.f32 %v759, %v760
      %v762 = vsel %vm613, %v723, 0.0
      %v763 = vadd.f32 %v761, %v762
      %v764 = vsel %vm613, %v724, 0.0
      %v765 = vadd.f32 %v763, %v764
      %v766 = vsel %vm613, %v725, 0.0
      %v767 = vadd.f32 %v765, %v766
      %v768 = vsel %vm613, %v726, 0.0
      %v769 = vadd.f32 %v767, %v768
      %v770 = vsel %vm613, %v727, 0.0
      %v771 = vadd.f32 %v769, %v770
      %v772 = vsel %vm613, %v728, 0.0
      %v773 = vadd.f32 %v771, %v772
      %v774 = vsel %vm613, %v729, 0.0
      %v775 = vadd.f32 %v773, %v774
      %v776 = vsel %vm613, %v730, 0.0
      %v777 = vadd.f32 %v775, %v776
      %v778 = vsel %vm613, %v731, 0.0
      %v779 = vadd.f32 %v777, %v778
      %v780 = vsel %vm613, %v732, 0.0
      %v781 = vadd.f32 %v779, %v780
      %v782 = vsel %vm613, %v733, 0.0
      %v783 = vadd.f32 %v781, %v782
      %v784 = vsel %vm613, %v734, 0.0
      %v785 = vadd.f32 %v783, %v784
      %v786 = vsel %vm613, %v735, 0.0
      %v787 = vadd.f32 %v785, %v786
      %v788 = vsel %vm613, %v736, 0.0
      %v789 = vadd.f32 %v787, %v788
      %v790 = vsel %vm613, %v737, 0.0
      %v791 = vadd.f32 %v789, %v790
      %v792 = vsel %vm613, %v738, 0.0
      %v793 = vadd.f32 %v791, %v792
      %v794 = vsel %vm613, %v739, 0.0
      %v795 = vadd.f32 %v793, %v794
      %v796 = vsel %vm613, %v740, 0.0
      %v797 = vadd.f32 %v795, %v796
      %v798 = vsel %vm613, %v741, 0.0
      %v799 = vadd.f32 %v797, %v798
      %v800 = vsel %vm613, %v742, 0.0
      %v801 = vadd.f32 %v799, %v800
      %v802 = vsel %vm613, %v743, 0.0
      %v803 = vadd.f32 %v801, %v802
      %v804 = vsel %vm613, %v744, 0.0
      %v805 = vadd.f32 %v803, %v804
      %v806 = vsel %vm613, %v745, 0.0
      %v807 = vadd.f32 %v805, %v806
      %v808 = vsel %vm613, %v746, 0.0
      %v809 = vadd.f32 %v807, %v808
      %v810 = vrot.slane %v809, 4
      %v811 = vadd.f32 %v809, %v810
      %v812 = vrot.slane %v811, 2
      %v813 = vadd.f32 %v811, %v812
      %v814 = vrot.slane %v813, 1
      %v815 = vadd.f32 %v813, %v814
      %vm816 = vcmask 1040384
      %v817 = vsel %vm816, %v714, %v815
      %vm818 = vcmask 123904
      %819 = vst.msk [vmem:[%s238] sm:$0x3] %vm818, %v817
      %s820 = smul.u32 32, %s17
      %p821 = scmp.lt.s32.totalorder %s820, 63
      %s822 = scalar_select %p821, %s820, 63
      %s823 = smul.addr %s822, 8
      %s824 = scalar_lea.vmem %s4, %s823
      %p825 = scmp.lt.s32.totalorder %s17, 1
      %s826 = scalar_select %p825, %s17, 1
      %s827 = smul.addr %s826, 2
      %s828 = scalar_lea.vmem %s5, %s827
      // Predicated region
      $region37: #{bottleneck_block_nhwc.6} parent=35 // pred_check
        %p829 = pneg %p124
      $region38: #{bottleneck_block_nhwc.6} parent=35 // pred_check_branch
        %831 = sbr.rel (%p829) target = $region40
      $region39: #{bottleneck_block_nhwc.6} parent=35 // pred_region
        %s832 = smul.u32 32, %s17
      $region40: #{bottleneck_block_nhwc.6} parent=35 // pred_fallthru
        _
      // Predicated region
      $region41: #{bottleneck_block_nhwc.6} parent=35 // pred_check
        %p833 = pneg %p150
      $region42: #{bottleneck_block_nhwc.6} parent=35 // pred_check_branch
        %835 = sbr.rel (%p833) target = $region44
      $region43: #{bottleneck_block_nhwc.6} parent=35 // pred_region
        _
      $region44: #{bottleneck_block_nhwc.6} parent=35 // pred_fallthru
        _
    $region36: #{bottleneck_block_nhwc.6} parent=5 // pred_fallthru
      _
    %p836 = scmp.le.s32.totalorder 2, %s12
    // Predicated region
    $region45: #{bottleneck_block_nhwc.6} parent=5 // pred_check
      %p837 = pneg %p836
    $region46: #{bottleneck_block_nhwc.6} parent=5 // pred_check_branch
      %839 = sbr.rel (%p837) target = $region48
    $region47: #{bottleneck_block_nhwc.6} parent=5 // pred_region
      %s840 = ssub.s32 %s12, 2
      // Predicated region
      $region49: #{bottleneck_block_nhwc.6} parent=47 // pred_check
        %p841 = pneg %p130
      $region50: #{bottleneck_block_nhwc.6} parent=47 // pred_check_branch
        %843 = sbr.rel (%p841) target = $region52
      $region51: #{bottleneck_block_nhwc.6} parent=47 // pred_region
        %s844 = smul.u32 32, %s18
        %p845 = scmp.lt.s32.totalorder %s844, 63
        %s846 = scalar_select %p845, %s844, 63
        %s847 = smul.addr %s846, 8
        %s848 = scalar_lea.vmem %s4, %s847
      $region52: #{bottleneck_block_nhwc.6} parent=47 // pred_fallthru
        _
      // Predicated region
      $region53: #{bottleneck_block_nhwc.6} parent=47 // pred_check
        %p849 = pneg %p156
      $region54: #{bottleneck_block_nhwc.6} parent=47 // pred_check_branch
        %851 = sbr.rel (%p849) target = $region56
      $region55: #{bottleneck_block_nhwc.6} parent=47 // pred_region
        %p852 = scmp.lt.s32.totalorder %s18, 1
        %s853 = scalar_select %p852, %s18, 1
        %s854 = smul.addr %s853, 2
        %s855 = scalar_lea.vmem %s5, %s854
      $region56: #{bottleneck_block_nhwc.6} parent=47 // pred_fallthru
        _
    $region48: #{bottleneck_block_nhwc.6} parent=5 // pred_fallthru
      _
  $region6: #{bottleneck_block_nhwc.6} parent=0 // loop_footer
    %s16 = sadd.s32 1, %s12
  $region7: #{bottleneck_block_nhwc.6} parent=0 // loop_footer_branch
    %11 = sbr.rel target = $region3
  $region8: #{bottleneck_block_nhwc.6} parent=0 // loop_exit
    _

// kernel: bottleneck_block_nhwc.4
$region0: #{bottleneck_block_nhwc.4}
  #allocation0 [shape = 'u32[]', space=smem, size = 0x4, offset = 0x4, fixed_abs, tag = 'smem constant byte address 0x4 - core index']
  #allocation1 [shape = 'u32[144,128]{1,0:T(1,128)}', space=vmem, size = 0x12000, scoped, tag = 'internal scratch']
  %s0 = inlined_call_operand.vmem [shape: bf16[512,4], index: 0, kind: input, shape index: {}]
  %s1 = inlined_call_operand.vmem [shape: bf16[4,20], index: 1, kind: input, shape index: {}]
  %s2 = inlined_call_operand.vmem [shape: f32[512,4], index: 2, kind: output, shape index: {0}]
  %s3 = inlined_call_operand.vmem [shape: f32[512,16], index: 3, kind: output, shape index: {1}]
  %s4 = inlined_call_operand.vmem [shape: f32[2,2,20], index: 4, kind: output, shape index: {2}]
  %5 = xla_tuple %s2, %s3, %s4
  %s6 = sld [smem:[#allocation0]]
  $region57: #{bottleneck_block_nhwc.4} parent=0
    _
  %s8 = ssub.s32 1, %s6
  %s9 = scalar_select 0, %s8, %s6
  loop: start=0, step=1, limit=4
  $region2: #{bottleneck_block_nhwc.4} parent=0 // loop_pre_header
    _
  $region3: #{bottleneck_block_nhwc.4} parent=0 // loop_header
    %s11 = sphi 0, %s15
    %p12 = scmp.ge.s32.totalorder %s11, 4
    %s21 = sphi 0, %s23
    %s24 = sphi 0, %s21
    %s25 = sphi 0, %s24
    %s41 = sphi 0, %s25
    %s45 = sphi 0, %s45
    %s47 = sphi 0, %s45
    %s48 = sphi 0, %s47
    %s62 = sphi 0, %s48
    %s68 = sphi 0, %s70
    %s71 = sphi 0, %s68
    %s72 = sphi 0, %s71
    %s88 = sphi 0, %s72
    %s94 = sphi 0, %s96
    %s97 = sphi 0, %s94
    %s98 = sphi 0, %s97
    %s114 = sphi 0, %s98
    %s120 = sphi 0, %s122
    %s123 = sphi 0, %s120
    %s124 = sphi 0, %s123
    %s140 = sphi 0, %s124
  $region4: #{bottleneck_block_nhwc.4} parent=0 // loop_header_branch
    %14 = sbr.rel (%p12) target = $region8
  $region5: #{bottleneck_block_nhwc.4} parent=0 // loop_body
    %s16 = ssub.s32 %s11, 1
    %s17 = ssub.s32 %s11, 2
    %s18 = sadd.s32 %s11, 1
    %s19 = ssub.s32 %s11, %s18
    %p20 = scmp.eq.s32.totalorder %s19, 0
    %s22 = sadd.s32 %s21, 1
    %s23 = scalar_select %p20, %s21, %s22
    %p26 = pneg %p20
    %p27 = scmp.eq.s32.totalorder %s11, 1
    %p28 = por %p26, %p27
    %p29 = scmp.ne.s32.totalorder %s21, %s24
    %p30 = scmp.eq.s32.totalorder %s11, 0
    %p31 = por %p29, %p30
    %p32 = scmp.ne.s32.totalorder %s21, %s24
    %p33 = scmp.eq.s32.totalorder %s16, 1
    %p34 = por %p32, %p33
    %p35 = scmp.ne.s32.totalorder %s24, %s25
    %p36 = scmp.eq.s32.totalorder %s16, 0
    %p37 = por %p35, %p36
    %p38 = scmp.ne.s32.totalorder %s24, %s25
    %p39 = scmp.eq.s32.totalorder %s17, 1
    %p40 = por %p38, %p39
    %p42 = scmp.ne.s32.totalorder %s25, %s41
    %p43 = scmp.eq.s32.totalorder %s17, 0
    %p44 = por %p42, %p43
    %s46 = sadd.s32 %s45, 1
    %p49 = scmp.eq.s32.totalorder %s11, 1
    %p50 = scmp.ne.s32.totalorder %s45, %s47
    %p51 = scmp.eq.s32.totalorder %s11, 0
    %p52 = por %p50, %p51
    %p53 = scmp.ne.s32.totalorder %s45, %s47
    %p54 = scmp.eq.s32.totalorder %s16, 1
    %p55 = por %p53, %p54
    %p56 = scmp.ne.s32.totalorder %s47, %s48
    %p57 = scmp.eq.s32.totalorder %s16, 0
    %p58 = por %p56, %p57
    %p59 = scmp.ne.s32.totalorder %s47, %s48
    %p60 = scmp.eq.s32.totalorder %s17, 1
    %p61 = por %p59, %p60
    %p63 = scmp.ne.s32.totalorder %s48, %s62
    %p64 = scmp.eq.s32.totalorder %s17, 0
    %p65 = por %p63, %p64
    %s66 = ssub.s32 %s11, %s18
    %p67 = scmp.eq.s32.totalorder %s66, 0
    %s69 = sadd.s32 %s68, 1
    %s70 = scalar_select %p67, %s68, %s69
    %p73 = pneg %p67
    %p74 = scmp.eq.s32.totalorder %s11, 1
    %p75 = por %p73, %p74
    %p76 = scmp.ne.s32.totalorder %s68, %s71
    %p77 = scmp.eq.s32.totalorder %s11, 0
    %p78 = por %p76, %p77
    %p79 = scmp.ne.s32.totalorder %s68, %s71
    %p80 = scmp.eq.s32.totalorder %s16, 1
    %p81 = por %p79, %p80
    %p82 = scmp.ne.s32.totalorder %s71, %s72
    %p83 = scmp.eq.s32.totalorder %s16, 0
    %p84 = por %p82, %p83
    %p85 = scmp.ne.s32.totalorder %s71, %s72
    %p86 = scmp.eq.s32.totalorder %s17, 1
    %p87 = por %p85, %p86
    %p89 = scmp.ne.s32.totalorder %s72, %s88
    %p90 = scmp.eq.s32.totalorder %s17, 0
    %p91 = por %p89, %p90
    %s92 = ssub.s32 %s11, %s18
    %p93 = scmp.eq.s32.totalorder %s92, 0
    %s95 = sadd.s32 %s94, 1
    %s96 = scalar_select %p93, %s94, %s95
    %p99 = pneg %p93
    %p100 = scmp.eq.s32.totalorder %s11, 1
    %p101 = por %p99, %p100
    %p102 = scmp.ne.s32.totalorder %s94, %s97
    %p103 = scmp.eq.s32.totalorder %s11, 0
    %p104 = por %p102, %p103
    %p105 = scmp.ne.s32.totalorder %s94, %s97
    %p106 = scmp.eq.s32.totalorder %s16, 1
    %p107 = por %p105, %p106
    %p108 = scmp.ne.s32.totalorder %s97, %s98
    %p109 = scmp.eq.s32.totalorder %s16, 0
    %p110 = por %p108, %p109
    %p111 = scmp.ne.s32.totalorder %s97, %s98
    %p112 = scmp.eq.s32.totalorder %s17, 1
    %p113 = por %p111, %p112
    %p115 = scmp.ne.s32.totalorder %s98, %s114
    %p116 = scmp.eq.s32.totalorder %s17, 0
    %p117 = por %p115, %p116
    %s118 = ssub.s32 %s11, %s18
    %p119 = scmp.eq.s32.totalorder %s118, 0
    %s121 = sadd.s32 %s120, 1
    %s122 = scalar_select %p119, %s120, %s121
    %p125 = pneg %p119
    %p126 = scmp.eq.s32.totalorder %s11, 1
    %p127 = por %p125, %p126
    %p128 = scmp.ne.s32.totalorder %s120, %s123
    %p129 = scmp.eq.s32.totalorder %s11, 0
    %p130 = por %p128, %p129
    %p131 = scmp.ne.s32.totalorder %s120, %s123
    %p132 = scmp.eq.s32.totalorder %s16, 1
    %p133 = por %p131, %p132
    %p134 = scmp.ne.s32.totalorder %s123, %s124
    %p135 = scmp.eq.s32.totalorder %s16, 0
    %p136 = por %p134, %p135
    %p137 = scmp.ne.s32.totalorder %s123, %s124
    %p138 = scmp.eq.s32.totalorder %s17, 1
    %p139 = por %p137, %p138
    %p141 = scmp.ne.s32.totalorder %s124, %s140
    %p142 = scmp.eq.s32.totalorder %s17, 0
    %p143 = por %p141, %p142
    %p144 = scmp.le.s32.totalorder 1, %s11
    %p145 = scmp.lt.s32.totalorder %s11, 3
    %p146 = pnand %p144, %p145
    %p147 = pneg %p146
    // Predicated region
    $region9: #{bottleneck_block_nhwc.4} parent=5 // pred_check
      _
    $region10: #{bottleneck_block_nhwc.4} parent=5 // pred_check_branch
      %149 = sbr.rel (%p146) target = $region12
    $region11: #{bottleneck_block_nhwc.4} parent=5 // pred_region
      %s150 = ssub.s32 %s11, 1
      // Predicated region
      $region13: #{bottleneck_block_nhwc.4} parent=11 // pred_check
        %p151 = pneg %p58
      $region14: #{bottleneck_block_nhwc.4} parent=11 // pred_check_branch
        %153 = sbr.rel (%p151) target = $region16
      $region15: #{bottleneck_block_nhwc.4} parent=11 // pred_region
        _
      $region16: #{bottleneck_block_nhwc.4} parent=11 // pred_fallthru
        _
    $region12: #{bottleneck_block_nhwc.4} parent=5 // pred_fallthru
      _
    %p154 = scmp.lt.s32.totalorder %s11, 2
    // Predicated region
    $region17: #{bottleneck_block_nhwc.4} parent=5 // pred_check
      %p155 = pneg %p154
    $region18: #{bottleneck_block_nhwc.4} parent=5 // pred_check_branch
      %157 = sbr.rel (%p155) target = $region20
    $region19: #{bottleneck_block_nhwc.4} parent=5 // pred_region
      // Predicated region
      $region21: #{bottleneck_block_nhwc.4} parent=19 // pred_check
        %p158 = pneg %p31
      $region22: #{bottleneck_block_nhwc.4} parent=19 // pred_check_branch
        %160 = sbr.rel (%p158) target = $region24
      $region23: #{bottleneck_block_nhwc.4} parent=19 // pred_region
        %s161 = smul.u32 32, %s11
        %p162 = scmp.lt.s32.totalorder %s161, 63
        %s163 = scalar_select %p162, %s161, 63
        %s164 = smul.addr %s163, 4
        %s165 = scalar_lea.vmem %s0, %s164
        %s166 = smul.u32 32, %s11
      $region24: #{bottleneck_block_nhwc.4} parent=19 // pred_fallthru
        _
    $region20: #{bottleneck_block_nhwc.4} parent=5 // pred_fallthru
      _
    %p167 = scmp.le.s32.totalorder 1, %s11
    %p168 = scmp.lt.s32.totalorder %s11, 3
    %p169 = pnand %p167, %p168
    %p170 = pneg %p169
    // Predicated region
    $region25: #{bottleneck_block_nhwc.4} parent=5 // pred_check
      _
    $region26: #{bottleneck_block_nhwc.4} parent=5 // pred_check_branch
      %172 = sbr.rel (%p169) target = $region28
    $region27: #{bottleneck_block_nhwc.4} parent=5 // pred_region
      %s173 = ssub.s32 %s11, 1
      %s174 = smul.u32 32, %s16
      %p175 = scmp.lt.s32.totalorder %s174, 63
      %s176 = scalar_select %p175, %s174, 63
      %s177 = smul.addr %s176, 4
      %s178 = scalar_lea.vmem %s0, %s177
      %p179 = pneg %p37
      %p180 = pneg %p34
      %p181 = pneg %p58
      %p182 = pneg %p55
      %p183 = pneg %p84
      %p184 = pneg %p81
      %s185 = smul.u32 32, %s16
      %p186 = scmp.lt.s32.totalorder %s185, 63
      %s187 = scalar_select %p186, %s185, 63
      %s188 = smul.addr %s187, 8
      %s189 = scalar_lea.vmem %s2, %s188
      %p190 = pneg %p110
      %p191 = pneg %p107
      %s192 = smul.u32 32, %s16
      %p193 = scmp.lt.s32.totalorder %s192, 63
      %s194 = scalar_select %p193, %s192, 63
      %s195 = smul.addr %s194, 8
      %s196 = scalar_lea.vmem %s3, %s195
      %p197 = pneg %p136
      %p198 = pneg %p133
      %p199 = scmp.lt.s32.totalorder %s16, 1
      %s200 = scalar_select %p199, %s16, 1
      %s201 = smul.addr %s200, 2
      %s202 = scalar_lea.vmem %s4, %s201
      %s203 = smul.u32 32, %s16
      %p204 = scmp.lt.s32.totalorder %s203, 63
      %s205 = scalar_select %p204, %s203, 63
      %s206 = smul.addr %s205, 4
      %s207 = scalar_lea.vmem %s0, %s206
      %s208 = smul.u32 32, %s16
      %s209 = smul.u32 32, %s16
      %p210 = scmp.lt.s32.totalorder %s209, 63
      %s211 = scalar_select %p210, %s209, 63
      %s212 = smul.addr %s211, 8
      %s213 = scalar_lea.vmem %s2, %s212
      %s214 = smul.u32 32, %s16
      %s215 = smul.u32 32, %s16
      %p216 = scmp.lt.s32.totalorder %s215, 63
      %s217 = scalar_select %p216, %s215, 63
      %s218 = smul.addr %s217, 8
      %s219 = scalar_lea.vmem %s3, %s218
      %s220 = smul.u32 32, %s16
      %p221 = scmp.lt.s32.totalorder %s16, 1
      %s222 = scalar_select %p221, %s16, 1
      %s223 = smul.addr %s222, 2
      %s224 = scalar_lea.vmem %s4, %s223
      %v226 = vld [vmem:[%s207] sm:$0xf]
      %v227 = vld [vmem:[%s207 + $0x4] sm:$0xf]
      %v228 = vld [vmem:[%s207 + $0x8] sm:$0xf]
      %v229 = vld [vmem:[%s207 + $0xc] sm:$0xf]
      %v230 = vld [vmem:[%s207 + $0x10] sm:$0xf]
      %v231 = vld [vmem:[%s207 + $0x14] sm:$0xf]
      %v232 = vld [vmem:[%s207 + $0x18] sm:$0xf]
      %v233 = vld [vmem:[%s207 + $0x1c] sm:$0xf]
      %v234 = vld [vmem:[%s207 + $0x20] sm:$0xf]
      %v235 = vld [vmem:[%s207 + $0x24] sm:$0xf]
      %v236 = vld [vmem:[%s207 + $0x28] sm:$0xf]
      %v237 = vld [vmem:[%s207 + $0x2c] sm:$0xf]
      %v238 = vld [vmem:[%s207 + $0x30] sm:$0xf]
      %v239 = vld [vmem:[%s207 + $0x34] sm:$0xf]
      %v240 = vld [vmem:[%s207 + $0x38] sm:$0xf]
      %v241 = vld [vmem:[%s207 + $0x3c] sm:$0xf]
      %v242 = vld [vmem:[%s207 + $0x40] sm:$0xf]
      %v243 = vld [vmem:[%s207 + $0x44] sm:$0xf]
      %v244 = vld [vmem:[%s207 + $0x48] sm:$0xf]
      %v245 = vld [vmem:[%s207 + $0x4c] sm:$0xf]
      %v246 = vld [vmem:[%s207 + $0x50] sm:$0xf]
      %v247 = vld [vmem:[%s207 + $0x54] sm:$0xf]
      %v248 = vld [vmem:[%s207 + $0x58] sm:$0xf]
      %v249 = vld [vmem:[%s207 + $0x5c] sm:$0xf]
      %v250 = vld [vmem:[%s207 + $0x60] sm:$0xf]
      %v251 = vld [vmem:[%s207 + $0x64] sm:$0xf]
      %v252 = vld [vmem:[%s207 + $0x68] sm:$0xf]
      %v253 = vld [vmem:[%s207 + $0x6c] sm:$0xf]
      %v254 = vld [vmem:[%s207 + $0x70] sm:$0xf]
      %v255 = vld [vmem:[%s207 + $0x74] sm:$0xf]
      %v256 = vld [vmem:[%s207 + $0x78] sm:$0xf]
      %v257 = vld [vmem:[%s207 + $0x7c] sm:$0xf]
      %v258 = vld [vmem:[%s1] sm:$0x3]
      %v291 = vunpack.c.l.b16 %v226
      %v292 = vunpack.c.l.b16 %v227
      %v293 = vunpack.c.l.b16 %v228
      %v294 = vunpack.c.l.b16 %v229
      %v295 = vunpack.c.l.b16 %v230
      %v296 = vunpack.c.l.b16 %v231
      %v297 = vunpack.c.l.b16 %v232
      %v298 = vunpack.c.l.b16 %v233
      %v299 = vunpack.c.l.b16 %v234
      %v300 = vunpack.c.l.b16 %v235
      %v301 = vunpack.c.l.b16 %v236
      %v302 = vunpack.c.l.b16 %v237
      %v303 = vunpack.c.l.b16 %v238
      %v304 = vunpack.c.l.b16 %v239
      %v305 = vunpack.c.l.b16 %v240
      %v306 = vunpack.c.l.b16 %v241
      %v307 = vunpack.c.l.b16 %v242
      %v308 = vunpack.c.l.b16 %v243
      %v309 = vunpack.c.l.b16 %v244
      %v310 = vunpack.c.l.b16 %v245
      %v311 = vunpack.c.l.b16 %v246
      %v312 = vunpack.c.l.b16 %v247
      %v313 = vunpack.c.l.b16 %v248
      %v314 = vunpack.c.l.b16 %v249
      %v315 = vunpack.c.l.b16 %v250
      %v316 = vunpack.c.l.b16 %v251
      %v317 = vunpack.c.l.b16 %v252
      %v318 = vunpack.c.l.b16 %v253
      %v319 = vunpack.c.l.b16 %v254
      %v320 = vunpack.c.l.b16 %v255
      %v321 = vunpack.c.l.b16 %v256
      %v322 = vunpack.c.l.b16 %v257
      %v323 = vpack.c.b16 %v292, %v291
      %v324 = vpack.c.b16 %v294, %v293
      %v325 = vpack.c.b16 %v296, %v295
      %v326 = vpack.c.b16 %v298, %v297
      %v327 = vpack.c.b16 %v300, %v299
      %v328 = vpack.c.b16 %v302, %v301
      %v329 = vpack.c.b16 %v304, %v303
      %v330 = vpack.c.b16 %v306, %v305
      %v331 = vpack.c.b16 %v308, %v307
      %v332 = vpack.c.b16 %v310, %v309
      %v333 = vpack.c.b16 %v312, %v311
      %v334 = vpack.c.b16 %v314, %v313
      %v335 = vpack.c.b16 %v316, %v315
      %v336 = vpack.c.b16 %v318, %v317
      %v337 = vpack.c.b16 %v320, %v319
      %v338 = vpack.c.b16 %v322, %v321
      %vm339 = vcmask 31744
      %v341 = vsel %vm339, %v323, 0
      %v344 = vsel %vm339, %v324, 0
      %v347 = vsel %vm339, %v325, 0
      %v350 = vsel %vm339, %v326, 0
      %v353 = vsel %vm339, %v327, 0
      %v356 = vsel %vm339, %v328, 0
      %v359 = vsel %vm339, %v329, 0
      %v362 = vsel %vm339, %v330, 0
      %v365 = vsel %vm339, %v331, 0
      %v368 = vsel %vm339, %v332, 0
      %v371 = vsel %vm339, %v333, 0
      %v374 = vsel %vm339, %v334, 0
      %v377 = vsel %vm339, %v335, 0
      %v380 = vsel %vm339, %v336, 0
      %v383 = vsel %vm339, %v337, 0
      %v386 = vsel %vm339, %v338, 0
      %vm388 = vcmask 1041408
      %v390 = vsel %vm388, %v258, 0
      %392 = vmatprep.subr.bf16.mxu0 0
      %393 = vmatpush1.bf16.msra.mxu0 0
      %394 = vmatprep.subr.bf16.mxu0 0
      %395 = vmatpush1.bf16.msra.mxu0 0
      %396 = vmatprep.subr.bf16.mxu0 0
      %397 = vmatpush1.bf16.msra.mxu0 0
      %398 = vmatprep.subr.bf16.mxu0 0
      %399 = vmatpush1.bf16.msra.mxu0 0
      %400 = vmatprep.subr.bf16.mxu0 0
      %401 = vmatpush1.bf16.msra.mxu0 0
      %402 = vmatprep.subr.bf16.mxu0 0
      %403 = vmatpush1.bf16.msra.mxu0 0
      %404 = vmatprep.subr.bf16.mxu0 0
      %405 = vmatpush1.bf16.msra.mxu0 0
      %406 = vmatprep.subr.bf16.mxu0 0
      %407 = vmatpush1.bf16.msra.mxu0 %v390
      %408 = vmatprep.subr.bf16.mxu0 0
      %409 = vmatpush2.bf16.msra.mxu0 0
      %410 = vmatprep.subr.bf16.mxu0 0
      %411 = vmatpush2.bf16.msra.mxu0 0
      %412 = vmatprep.subr.bf16.mxu0 0
      %413 = vmatpush2.bf16.msra.mxu0 0
      %414 = vmatprep.subr.bf16.mxu0 0
      %415 = vmatpush2.bf16.msra.mxu0 0
      %416 = vmatprep.subr.bf16.mxu0 0
      %417 = vmatpush2.bf16.msra.mxu0 0
      %418 = vmatprep.subr.bf16.mxu0 0
      %419 = vmatpush2.bf16.msra.mxu0 0
      %420 = vmatprep.subr.bf16.mxu0 0
      %421 = vmatpush2.bf16.msra.mxu0 0
      %422 = vmatprep.subr.bf16.mxu0 0
      %423 = vmatpush2.bf16.msra.mxu0 0
      %424 = vmatprep.mubr.bf16.mxu0 0
      %425 = vmatmul.mubr.bf16.gmra.mxu0 %v341
      %v426 = vpop.f32.mrf.mxu0
      %v427 = vadd.f32 0.0, %v426
      %v428 = vpop.f32.mrf.mxu0
      %v429 = vpop.f32.mrf.mxu0
      %v430 = vadd.f32 0.0, %v429
      %v431 = vpop.f32.mrf.mxu0
      %432 = vmatprep.mubr.bf16.mxu0 0
      %433 = vmatmul.mubr.bf16.gmra.mxu0 %v344
      %v434 = vpop.f32.mrf.mxu0
      %v435 = vadd.f32 0.0, %v434
      %v436 = vpop.f32.mrf.mxu0
      %v437 = vpop.f32.mrf.mxu0
      %v438 = vadd.f32 0.0, %v437
      %v439 = vpop.f32.mrf.mxu0
      %440 = vmatprep.mubr.bf16.mxu0 0
      %441 = vmatmul.mubr.bf16.gmra.mxu0 %v347
      %v442 = vpop.f32.mrf.mxu0
      %v443 = vadd.f32 0.0, %v442
      %v444 = vpop.f32.mrf.mxu0
      %v445 = vpop.f32.mrf.mxu0
      %v446 = vadd.f32 0.0, %v445
      %v447 = vpop.f32.mrf.mxu0
      %448 = vmatprep.mubr.bf16.mxu0 0
      %449 = vmatmul.mubr.bf16.gmra.mxu0 %v350
      %v450 = vpop.f32.mrf.mxu0
      %v451 = vadd.f32 0.0, %v450
      %v452 = vpop.f32.mrf.mxu0
      %v453 = vpop.f32.mrf.mxu0
      %v454 = vadd.f32 0.0, %v453
      %v455 = vpop.f32.mrf.mxu0
      %456 = vmatprep.mubr.bf16.mxu0 0
      %457 = vmatmul.mubr.bf16.gmra.mxu0 %v353
      %v458 = vpop.f32.mrf.mxu0
      %v459 = vadd.f32 0.0, %v458
      %v460 = vpop.f32.mrf.mxu0
      %v461 = vpop.f32.mrf.mxu0
      %v462 = vadd.f32 0.0, %v461
      %v463 = vpop.f32.mrf.mxu0
      %464 = vmatprep.mubr.bf16.mxu0 0
      %465 = vmatmul.mubr.bf16.gmra.mxu0 %v356
      %v466 = vpop.f32.mrf.mxu0
      %v467 = vadd.f32 0.0, %v466
      %v468 = vpop.f32.mrf.mxu0
      %v469 = vpop.f32.mrf.mxu0
      %v470 = vadd.f32 0.0, %v469
      %v471 = vpop.f32.mrf.mxu0
      %472 = vmatprep.mubr.bf16.mxu0 0
      %473 = vmatmul.mubr.bf16.gmra.mxu0 %v359
      %v474 = vpop.f32.mrf.mxu0
      %v475 = vadd.f32 0.0, %v474
      %v476 = vpop.f32.mrf.mxu0
      %v477 = vpop.f32.mrf.mxu0
      %v478 = vadd.f32 0.0, %v477
      %v479 = vpop.f32.mrf.mxu0
      %480 = vmatprep.mubr.bf16.mxu0 0
      %481 = vmatmul.mubr.bf16.gmra.mxu0 %v362
      %v482 = vpop.f32.mrf.mxu0
      %v483 = vadd.f32 0.0, %v482
      %v484 = vpop.f32.mrf.mxu0
      %v485 = vpop.f32.mrf.mxu0
      %v486 = vadd.f32 0.0, %v485
      %v487 = vpop.f32.mrf.mxu0
      %488 = vmatprep.mubr.bf16.mxu0 0
      %489 = vmatmul.mubr.bf16.gmra.mxu0 %v365
      %v490 = vpop.f32.mrf.mxu0
      %v491 = vadd.f32 0.0, %v490
      %v492 = vpop.f32.mrf.mxu0
      %v493 = vpop.f32.mrf.mxu0
      %v494 = vadd.f32 0.0, %v493
      %v495 = vpop.f32.mrf.mxu0
      %496 = vmatprep.mubr.bf16.mxu0 0
      %497 = vmatmul.mubr.bf16.gmra.mxu0 %v368
      %v498 = vpop.f32.mrf.mxu0
      %v499 = vadd.f32 0.0, %v498
      %v500 = vpop.f32.mrf.mxu0
      %v501 = vpop.f32.mrf.mxu0
      %v502 = vadd.f32 0.0, %v501
      %v503 = vpop.f32.mrf.mxu0
      %504 = vmatprep.mubr.bf16.mxu0 0
      %505 = vmatmul.mubr.bf16.gmra.mxu0 %v371
      %v506 = vpop.f32.mrf.mxu0
      %v507 = vadd.f32 0.0, %v506
      %v508 = vpop.f32.mrf.mxu0
      %v509 = vpop.f32.mrf.mxu0
      %v510 = vadd.f32 0.0, %v509
      %v511 = vpop.f32.mrf.mxu0
      %512 = vmatprep.mubr.bf16.mxu0 0
      %513 = vmatmul.mubr.bf16.gmra.mxu0 %v374
      %v514 = vpop.f32.mrf.mxu0
      %v515 = vadd.f32 0.0, %v514
      %v516 = vpop.f32.mrf.mxu0
      %v517 = vpop.f32.mrf.mxu0
      %v518 = vadd.f32 0.0, %v517
      %v519 = vpop.f32.mrf.mxu0
      %520 = vmatprep.mubr.bf16.mxu0 0
      %521 = vmatmul.mubr.bf16.gmra.mxu0 %v377
      %v522 = vpop.f32.mrf.mxu0
      %v523 = vadd.f32 0.0, %v522
      %v524 = vpop.f32.mrf.mxu0
      %v525 = vpop.f32.mrf.mxu0
      %v526 = vadd.f32 0.0, %v525
      %v527 = vpop.f32.mrf.mxu0
      %528 = vmatprep.mubr.bf16.mxu0 0
      %529 = vmatmul.mubr.bf16.gmra.mxu0 %v380
      %v530 = vpop.f32.mrf.mxu0
      %v531 = vadd.f32 0.0, %v530
      %v532 = vpop.f32.mrf.mxu0
      %v533 = vpop.f32.mrf.mxu0
      %v534 = vadd.f32 0.0, %v533
      %v535 = vpop.f32.mrf.mxu0
      %536 = vmatprep.mubr.bf16.mxu0 0
      %537 = vmatmul.mubr.bf16.gmra.mxu0 %v383
      %v538 = vpop.f32.mrf.mxu0
      %v539 = vadd.f32 0.0, %v538
      %v540 = vpop.f32.mrf.mxu0
      %v541 = vpop.f32.mrf.mxu0
      %v542 = vadd.f32 0.0, %v541
      %v543 = vpop.f32.mrf.mxu0
      %544 = vmatprep.mubr.bf16.mxu0 0
      %545 = vmatmul.mubr.bf16.gmra.mxu0 %v386
      %v546 = vpop.f32.mrf.mxu0
      %v547 = vadd.f32 0.0, %v546
      %v548 = vpop.f32.mrf.mxu0
      %v549 = vpop.f32.mrf.mxu0
      %v550 = vadd.f32 0.0, %v549
      %v551 = vpop.f32.mrf.mxu0
      %552 = vdwg.mxu0
      %553 = vst.msk [vmem:[%s213] sm:$0xff] %vm339, %v427
      %554 = vst.msk [vmem:[%s213 + $0x8] sm:$0xff] %vm339, %v430
      %555 = vst.msk [vmem:[%s213 + $0x10] sm:$0xff] %vm339, %v435
      %556 = vst.msk [vmem:[%s213 + $0x18] sm:$0xff] %vm339, %v438
      %557 = vst.msk [vmem:[%s213 + $0x20] sm:$0xff] %vm339, %v443
      %558 = vst.msk [vmem:[%s213 + $0x28] sm:$0xff] %vm339, %v446
      %559 = vst.msk [vmem:[%s213 + $0x30] sm:$0xff] %vm339, %v451
      %560 = vst.msk [vmem:[%s213 + $0x38] sm:$0xff] %vm339, %v454
      %561 = vst.msk [vmem:[%s213 + $0x40] sm:$0xff] %vm339, %v459
      %562 = vst.msk [vmem:[%s213 + $0x48] sm:$0xff] %vm339, %v462
      %563 = vst.msk [vmem:[%s213 + $0x50] sm:$0xff] %vm339, %v467
      %564 = vst.msk [vmem:[%s213 + $0x58] sm:$0xff] %vm339, %v470
      %565 = vst.msk [vmem:[%s213 + $0x60] sm:$0xff] %vm339, %v475
      %566 = vst.msk [vmem:[%s213 + $0x68] sm:$0xff] %vm339, %v478
      %567 = vst.msk [vmem:[%s213 + $0x70] sm:$0xff] %vm339, %v483
      %568 = vst.msk [vmem:[%s213 + $0x78] sm:$0xff] %vm339, %v486
      %569 = vst.msk [vmem:[%s213 + $0x80] sm:$0xff] %vm339, %v491
      %570 = vst.msk [vmem:[%s213 + $0x88] sm:$0xff] %vm339, %v494
      %571 = vst.msk [vmem:[%s213 + $0x90] sm:$0xff] %vm339, %v499
      %572 = vst.msk [vmem:[%s213 + $0x98] sm:$0xff] %vm339, %v502
      %573 = vst.msk [vmem:[%s213 + $0xa0] sm:$0xff] %vm339, %v507
      %574 = vst.msk [vmem:[%s213 + $0xa8] sm:$0xff] %vm339, %v510
      %575 = vst.msk [vmem:[%s213 + $0xb0] sm:$0xff] %vm339, %v515
      %576 = vst.msk [vmem:[%s213 + $0xb8] sm:$0xff] %vm339, %v518
      %577 = vst.msk [vmem:[%s213 + $0xc0] sm:$0xff] %vm339, %v523
      %578 = vst.msk [vmem:[%s213 + $0xc8] sm:$0xff] %vm339, %v526
      %579 = vst.msk [vmem:[%s213 + $0xd0] sm:$0xff] %vm339, %v531
      %580 = vst.msk [vmem:[%s213 + $0xd8] sm:$0xff] %vm339, %v534
      %581 = vst.msk [vmem:[%s213 + $0xe0] sm:$0xff] %vm339, %v539
      %582 = vst.msk [vmem:[%s213 + $0xe8] sm:$0xff] %vm339, %v542
      %583 = vst.msk [vmem:[%s213 + $0xf0] sm:$0xff] %vm339, %v547
      %584 = vst.msk [vmem:[%s213 + $0xf8] sm:$0xff] %vm339, %v550
      %617 = vrot.lane.b32.xlu0 %v427, 124
      %v618 = vpop.permute.xlu0 %617
      %619 = vrot.lane.b32.xlu0 %v430, 124
      %v620 = vpop.permute.xlu0 %619
      %621 = vrot.lane.b32.xlu0 %v435, 124
      %v622 = vpop.permute.xlu0 %621
      %623 = vrot.lane.b32.xlu0 %v438, 124
      %v624 = vpop.permute.xlu0 %623
      %625 = vrot.lane.b32.xlu0 %v443, 124
      %v626 = vpop.permute.xlu0 %625
      %627 = vrot.lane.b32.xlu0 %v446, 124
      %v628 = vpop.permute.xlu0 %627
      %629 = vrot.lane.b32.xlu0 %v451, 124
      %v630 = vpop.permute.xlu0 %629
      %631 = vrot.lane.b32.xlu0 %v454, 124
      %v632 = vpop.permute.xlu0 %631
      %633 = vrot.lane.b32.xlu0 %v459, 124
      %v634 = vpop.permute.xlu0 %633
      %635 = vrot.lane.b32.xlu0 %v462, 124
      %v636 = vpop.permute.xlu0 %635
      %637 = vrot.lane.b32.xlu0 %v467, 124
      %v638 = vpop.permute.xlu0 %637
      %639 = vrot.lane.b32.xlu0 %v470, 124
      %v640 = vpop.permute.xlu0 %639
      %641 = vrot.lane.b32.xlu0 %v475, 124
      %v642 = vpop.permute.xlu0 %641
      %643 = vrot.lane.b32.xlu0 %v478, 124
      %v644 = vpop.permute.xlu0 %643
      %645 = vrot.lane.b32.xlu0 %v483, 124
      %v646 = vpop.permute.xlu0 %645
      %647 = vrot.lane.b32.xlu0 %v486, 124
      %v648 = vpop.permute.xlu0 %647
      %649 = vrot.lane.b32.xlu0 %v491, 124
      %v650 = vpop.permute.xlu0 %649
      %651 = vrot.lane.b32.xlu0 %v494, 124
      %v652 = vpop.permute.xlu0 %651
      %653 = vrot.lane.b32.xlu0 %v499, 124
      %v654 = vpop.permute.xlu0 %653
      %655 = vrot.lane.b32.xlu0 %v502, 124
      %v656 = vpop.permute.xlu0 %655
      %657 = vrot.lane.b32.xlu0 %v507, 124
      %v658 = vpop.permute.xlu0 %657
      %659 = vrot.lane.b32.xlu0 %v510, 124
      %v660 = vpop.permute.xlu0 %659
      %661 = vrot.lane.b32.xlu0 %v515, 124
      %v662 = vpop.permute.xlu0 %661
      %663 = vrot.lane.b32.xlu0 %v518, 124
      %v664 = vpop.permute.xlu0 %663
      %665 = vrot.lane.b32.xlu0 %v523, 124
      %v666 = vpop.permute.xlu0 %665
      %667 = vrot.lane.b32.xlu0 %v526, 124
      %v668 = vpop.permute.xlu0 %667
      %669 = vrot.lane.b32.xlu0 %v531, 124
      %v670 = vpop.permute.xlu0 %669
      %671 = vrot.lane.b32.xlu0 %v534, 124
      %v672 = vpop.permute.xlu0 %671
      %673 = vrot.lane.b32.xlu0 %v539, 124
      %v674 = vpop.permute.xlu0 %673
      %675 = vrot.lane.b32.xlu0 %v542, 124
      %v676 = vpop.permute.xlu0 %675
      %677 = vrot.lane.b32.xlu0 %v547, 124
      %v678 = vpop.permute.xlu0 %677
      %679 = vrot.lane.b32.xlu0 %v550, 124
      %v680 = vpop.permute.xlu0 %679
      %vm713 = vcmask 130048
      %714 = vst.msk [vmem:[%s219] sm:$0xff] %vm713, %v618
      %715 = vst.msk [vmem:[%s219 + $0x8] sm:$0xff] %vm713, %v620
      %716 = vst.msk [vmem:[%s219 + $0x10] sm:$0xff] %vm713, %v622
      %717 = vst.msk [vmem:[%s219 + $0x18] sm:$0xff] %vm713, %v624
      %718 = vst.msk [vmem:[%s219 + $0x20] sm:$0xff] %vm713, %v626
      %719 = vst.msk [vmem:[%s219 + $0x28] sm:$0xff] %vm713, %v628
      %720 = vst.msk [vmem:[%s219 + $0x30] sm:$0xff] %vm713, %v630
      %721 = vst.msk [vmem:[%s219 + $0x38] sm:$0xff] %vm713, %v632
      %722 = vst.msk [vmem:[%s219 + $0x40] sm:$0xff] %vm713, %v634
      %723 = vst.msk [vmem:[%s219 + $0x48] sm:$0xff] %vm713, %v636
      %724 = vst.msk [vmem:[%s219 + $0x50] sm:$0xff] %vm713, %v638
      %725 = vst.msk [vmem:[%s219 + $0x58] sm:$0xff] %vm713, %v640
      %726 = vst.msk [vmem:[%s219 + $0x60] sm:$0xff] %vm713, %v642
      %727 = vst.msk [vmem:[%s219 + $0x68] sm:$0xff] %vm713, %v644
      %728 = vst.msk [vmem:[%s219 + $0x70] sm:$0xff] %vm713, %v646
      %729 = vst.msk [vmem:[%s219 + $0x78] sm:$0xff] %vm713, %v648
      %730 = vst.msk [vmem:[%s219 + $0x80] sm:$0xff] %vm713, %v650
      %731 = vst.msk [vmem:[%s219 + $0x88] sm:$0xff] %vm713, %v652
      %732 = vst.msk [vmem:[%s219 + $0x90] sm:$0xff] %vm713, %v654
      %733 = vst.msk [vmem:[%s219 + $0x98] sm:$0xff] %vm713, %v656
      %734 = vst.msk [vmem:[%s219 + $0xa0] sm:$0xff] %vm713, %v658
      %735 = vst.msk [vmem:[%s219 + $0xa8] sm:$0xff] %vm713, %v660
      %736 = vst.msk [vmem:[%s219 + $0xb0] sm:$0xff] %vm713, %v662
      %737 = vst.msk [vmem:[%s219 + $0xb8] sm:$0xff] %vm713, %v664
      %738 = vst.msk [vmem:[%s219 + $0xc0] sm:$0xff] %vm713, %v666
      %739 = vst.msk [vmem:[%s219 + $0xc8] sm:$0xff] %vm713, %v668
      %740 = vst.msk [vmem:[%s219 + $0xd0] sm:$0xff] %vm713, %v670
      %741 = vst.msk [vmem:[%s219 + $0xd8] sm:$0xff] %vm713, %v672
      %742 = vst.msk [vmem:[%s219 + $0xe0] sm:$0xff] %vm713, %v674
      %743 = vst.msk [vmem:[%s219 + $0xe8] sm:$0xff] %vm713, %v676
      %744 = vst.msk [vmem:[%s219 + $0xf0] sm:$0xff] %vm713, %v678
      %745 = vst.msk [vmem:[%s219 + $0xf8] sm:$0xff] %vm713, %v680
      %vm746 = vcmask 162816
      %v747 = vsel %vm746, %v427, 0.0
      %v748 = vsel %vm746, %v430, 0.0
      %v749 = vadd.f32 %v747, %v748
      %v750 = vsel %vm746, %v435, 0.0
      %v751 = vadd.f32 %v749, %v750
      %v752 = vsel %vm746, %v438, 0.0
      %v753 = vadd.f32 %v751, %v752
      %v754 = vsel %vm746, %v443, 0.0
      %v755 = vadd.f32 %v753, %v754
      %v756 = vsel %vm746, %v446, 0.0
      %v757 = vadd.f32 %v755, %v756
      %v758 = vsel %vm746, %v451, 0.0
      %v759 = vadd.f32 %v757, %v758
      %v760 = vsel %vm746, %v454, 0.0
      %v761 = vadd.f32 %v759, %v760
      %v762 = vsel %vm746, %v459, 0.0
      %v763 = vadd.f32 %v761, %v762
      %v764 = vsel %vm746, %v462, 0.0
      %v765 = vadd.f32 %v763, %v764
      %v766 = vsel %vm746, %v467, 0.0
      %v767 = vadd.f32 %v765, %v766
      %v768 = vsel %vm746, %v470, 0.0
      %v769 = vadd.f32 %v767, %v768
      %v770 = vsel %vm746, %v475, 0.0
      %v771 = vadd.f32 %v769, %v770
      %v772 = vsel %vm746, %v478, 0.0
      %v773 = vadd.f32 %v771, %v772
      %v774 = vsel %vm746, %v483, 0.0
      %v775 = vadd.f32 %v773, %v774
      %v776 = vsel %vm746, %v486, 0.0
      %v777 = vadd.f32 %v775, %v776
      %v778 = vsel %vm746, %v491, 0.0
      %v779 = vadd.f32 %v777, %v778
      %v780 = vsel %vm746, %v494, 0.0
      %v781 = vadd.f32 %v779, %v780
      %v782 = vsel %vm746, %v499, 0.0
      %v783 = vadd.f32 %v781, %v782
      %v784 = vsel %vm746, %v502, 0.0
      %v785 = vadd.f32 %v783, %v784
      %v786 = vsel %vm746, %v507, 0.0
      %v787 = vadd.f32 %v785, %v786
      %v788 = vsel %vm746, %v510, 0.0
      %v789 = vadd.f32 %v787, %v788
      %v790 = vsel %vm746, %v515, 0.0
      %v791 = vadd.f32 %v789, %v790
      %v792 = vsel %vm746, %v518, 0.0
      %v793 = vadd.f32 %v791, %v792
      %v794 = vsel %vm746, %v523, 0.0
      %v795 = vadd.f32 %v793, %v794
      %v796 = vsel %vm746, %v526, 0.0
      %v797 = vadd.f32 %v795, %v796
      %v798 = vsel %vm746, %v531, 0.0
      %v799 = vadd.f32 %v797, %v798
      %v800 = vsel %vm746, %v534, 0.0
      %v801 = vadd.f32 %v799, %v800
      %v802 = vsel %vm746, %v539, 0.0
      %v803 = vadd.f32 %v801, %v802
      %v804 = vsel %vm746, %v542, 0.0
      %v805 = vadd.f32 %v803, %v804
      %v806 = vsel %vm746, %v547, 0.0
      %v807 = vadd.f32 %v805, %v806
      %v808 = vsel %vm746, %v550, 0.0
      %v809 = vadd.f32 %v807, %v808
      %v810 = vrot.slane %v809, 4
      %v811 = vadd.f32 %v809, %v810
      %v812 = vrot.slane %v811, 2
      %v813 = vadd.f32 %v811, %v812
      %v814 = vrot.slane %v813, 1
      %v815 = vadd.f32 %v813, %v814
      %v816 = vmul.f32 %v427, %v427
      %v817 = vmul.f32 %v430, %v430
      %v818 = vmul.f32 %v435, %v435
      %v819 = vmul.f32 %v438, %v438
      %v820 = vmul.f32 %v443, %v443
      %v821 = vmul.f32 %v446, %v446
      %v822 = vmul.f32 %v451, %v451
      %v823 = vmul.f32 %v454, %v454
      %v824 = vmul.f32 %v459, %v459
      %v825 = vmul.f32 %v462, %v462
      %v826 = vmul.f32 %v467, %v467
      %v827 = vmul.f32 %v470, %v470
      %v828 = vmul.f32 %v475, %v475
      %v829 = vmul.f32 %v478, %v478
      %v830 = vmul.f32 %v483, %v483
      %v831 = vmul.f32 %v486, %v486
      %v832 = vmul.f32 %v491, %v491
      %v833 = vmul.f32 %v494, %v494
      %v834 = vmul.f32 %v499, %v499
      %v835 = vmul.f32 %v502, %v502
      %v836 = vmul.f32 %v507, %v507
      %v837 = vmul.f32 %v510, %v510
      %v838 = vmul.f32 %v515, %v515
      %v839 = vmul.f32 %v518, %v518
      %v840 = vmul.f32 %v523, %v523
      %v841 = vmul.f32 %v526, %v526
      %v842 = vmul.f32 %v531, %v531
      %v843 = vmul.f32 %v534, %v534
      %v844 = vmul.f32 %v539, %v539
      %v845 = vmul.f32 %v542, %v542
      %v846 = vmul.f32 %v547, %v547
      %v847 = vmul.f32 %v550, %v550
      %v848 = vsel %vm746, %v816, 0.0
      %v849 = vsel %vm746, %v817, 0.0
      %v850 = vadd.f32 %v848, %v849
      %v851 = vsel %vm746, %v818, 0.0
      %v852 = vadd.f32 %v850, %v851
      %v853 = vsel %vm746, %v819, 0.0
      %v854 = vadd.f32 %v852, %v853
      %v855 = vsel %vm746, %v820, 0.0
      %v856 = vadd.f32 %v854, %v855
      %v857 = vsel %vm746, %v821, 0.0
      %v858 = vadd.f32 %v856, %v857
      %v859 = vsel %vm746, %v822, 0.0
      %v860 = vadd.f32 %v858, %v859
      %v861 = vsel %vm746, %v823, 0.0
      %v862 = vadd.f32 %v860, %v861
      %v863 = vsel %vm746, %v824, 0.0
      %v864 = vadd.f32 %v862, %v863
      %v865 = vsel %vm746, %v825, 0.0
      %v866 = vadd.f32 %v864, %v865
      %v867 = vsel %vm746, %v826, 0.0
      %v868 = vadd.f32 %v866, %v867
      %v869 = vsel %vm746, %v827, 0.0
      %v870 = vadd.f32 %v868, %v869
      %v871 = vsel %vm746, %v828, 0.0
      %v872 = vadd.f32 %v870, %v871
      %v873 = vsel %vm746, %v829, 0.0
      %v874 = vadd.f32 %v872, %v873
      %v875 = vsel %vm746, %v830, 0.0
      %v876 = vadd.f32 %v874, %v875
      %v877 = vsel %vm746, %v831, 0.0
      %v878 = vadd.f32 %v876, %v877
      %v879 = vsel %vm746, %v832, 0.0
      %v880 = vadd.f32 %v878, %v879
      %v881 = vsel %vm746, %v833, 0.0
      %v882 = vadd.f32 %v880, %v881
      %v883 = vsel %vm746, %v834, 0.0
      %v884 = vadd.f32 %v882, %v883
      %v885 = vsel %vm746, %v835, 0.0
      %v886 = vadd.f32 %v884, %v885
      %v887 = vsel %vm746, %v836, 0.0
      %v888 = vadd.f32 %v886, %v887
      %v889 = vsel %vm746, %v837, 0.0
      %v890 = vadd.f32 %v888, %v889
      %v891 = vsel %vm746, %v838, 0.0
      %v892 = vadd.f32 %v890, %v891
      %v893 = vsel %vm746, %v839, 0.0
      %v894 = vadd.f32 %v892, %v893
      %v895 = vsel %vm746, %v840, 0.0
      %v896 = vadd.f32 %v894, %v895
      %v897 = vsel %vm746, %v841, 0.0
      %v898 = vadd.f32 %v896, %v897
      %v899 = vsel %vm746, %v842, 0.0
      %v900 = vadd.f32 %v898, %v899
      %v901 = vsel %vm746, %v843, 0.0
      %v902 = vadd.f32 %v900, %v901
      %v903 = vsel %vm746, %v844, 0.0
      %v904 = vadd.f32 %v902, %v903
      %v905 = vsel %vm746, %v845, 0.0
      %v906 = vadd.f32 %v904, %v905
      %v907 = vsel %vm746, %v846, 0.0
      %v908 = vadd.f32 %v906, %v907
      %v909 = vsel %vm746, %v847, 0.0
      %v910 = vadd.f32 %v908, %v909
      %v911 = vrot.slane %v910, 4
      %v912 = vadd.f32 %v910, %v911
      %v913 = vrot.slane %v912, 2
      %v914 = vadd.f32 %v912, %v913
      %v915 = vrot.slane %v914, 1
      %v916 = vadd.f32 %v914, %v915
      %vm917 = vcmask 1040384
      %v918 = vsel %vm917, %v815, %v916
      %vm919 = vcmask 156672
      %920 = vst.msk [vmem:[%s224] sm:$0x3] %vm919, %v918
      %s921 = smul.u32 32, %s16
      %p922 = scmp.lt.s32.totalorder %s921, 63
      %s923 = scalar_select %p922, %s921, 63
      %s924 = smul.addr %s923, 8
      %s925 = scalar_lea.vmem %s2, %s924
      %s926 = smul.u32 32, %s16
      %p927 = scmp.lt.s32.totalorder %s926, 63
      %s928 = scalar_select %p927, %s926, 63
      %s929 = smul.addr %s928, 8
      %s930 = scalar_lea.vmem %s3, %s929
      %p931 = scmp.lt.s32.totalorder %s16, 1
      %s932 = scalar_select %p931, %s16, 1
      %s933 = smul.addr %s932, 2
      %s934 = scalar_lea.vmem %s4, %s933
      // Predicated region
      $region29: #{bottleneck_block_nhwc.4} parent=27 // pred_check
        %p935 = pneg %p81
      $region30: #{bottleneck_block_nhwc.4} parent=27 // pred_check_branch
        %937 = sbr.rel (%p935) target = $region32
      $region31: #{bottleneck_block_nhwc.4} parent=27 // pred_region
        %s938 = smul.u32 32, %s16
      $region32: #{bottleneck_block_nhwc.4} parent=27 // pred_fallthru
        _
      // Predicated region
      $region33: #{bottleneck_block_nhwc.4} parent=27 // pred_check
        %p939 = pneg %p107
      $region34: #{bottleneck_block_nhwc.4} parent=27 // pred_check_branch
        %941 = sbr.rel (%p939) target = $region36
      $region35: #{bottleneck_block_nhwc.4} parent=27 // pred_region
        %s942 = smul.u32 32, %s16
      $region36: #{bottleneck_block_nhwc.4} parent=27 // pred_fallthru
        _
      // Predicated region
      $region37: #{bottleneck_block_nhwc.4} parent=27 // pred_check
        %p943 = pneg %p133
      $region38: #{bottleneck_block_nhwc.4} parent=27 // pred_check_branch
        %945 = sbr.rel (%p943) target = $region40
      $region39: #{bottleneck_block_nhwc.4} parent=27 // pred_region
        _
      $region40: #{bottleneck_block_nhwc.4} parent=27 // pred_fallthru
        _
    $region28: #{bottleneck_block_nhwc.4} parent=5 // pred_fallthru
      _
    %p946 = scmp.le.s32.totalorder 2, %s11
    // Predicated region
    $region41: #{bottleneck_block_nhwc.4} parent=5 // pred_check
      %p947 = pneg %p946
    $region42: #{bottleneck_block_nhwc.4} parent=5 // pred_check_branch
      %949 = sbr.rel (%p947) target = $region44
    $region43: #{bottleneck_block_nhwc.4} parent=5 // pred_region
      %s950 = ssub.s32 %s11, 2
      // Predicated region
      $region45: #{bottleneck_block_nhwc.4} parent=43 // pred_check
        %p951 = pneg %p87
      $region46: #{bottleneck_block_nhwc.4} parent=43 // pred_check_branch
        %953 = sbr.rel (%p951) target = $region48
      $region47: #{bottleneck_block_nhwc.4} parent=43 // pred_region
        %s954 = smul.u32 32, %s17
        %p955 = scmp.lt.s32.totalorder %s954, 63
        %s956 = scalar_select %p955, %s954, 63
        %s957 = smul.addr %s956, 8
        %s958 = scalar_lea.vmem %s2, %s957
      $region48: #{bottleneck_block_nhwc.4} parent=43 // pred_fallthru
        _
      // Predicated region
      $region49: #{bottleneck_block_nhwc.4} parent=43 // pred_check
        %p959 = pneg %p113
      $region50: #{bottleneck_block_nhwc.4} parent=43 // pred_check_branch
        %961 = sbr.rel (%p959) target = $region52
      $region51: #{bottleneck_block_nhwc.4} parent=43 // pred_region
        %s962 = smul.u32 32, %s17
        %p963 = scmp.lt.s32.totalorder %s962, 63
        %s964 = scalar_select %p963, %s962, 63
        %s965 = smul.addr %s964, 8
        %s966 = scalar_lea.vmem %s3, %s965
      $region52: #{bottleneck_block_nhwc.4} parent=43 // pred_fallthru
        _
      // Predicated region
      $region53: #{bottleneck_block_nhwc.4} parent=43 // pred_check
        %p967 = pneg %p139
      $region54: #{bottleneck_block_nhwc.4} parent=43 // pred_check_branch
        %969 = sbr.rel (%p967) target = $region56
      $region55: #{bottleneck_block_nhwc.4} parent=43 // pred_region
        %p970 = scmp.lt.s32.totalorder %s17, 1
        %s971 = scalar_select %p970, %s17, 1
        %s972 = smul.addr %s971, 2
        %s973 = scalar_lea.vmem %s4, %s972
      $region56: #{bottleneck_block_nhwc.4} parent=43 // pred_fallthru
        _
    $region44: #{bottleneck_block_nhwc.4} parent=5 // pred_fallthru
      _
  $region6: #{bottleneck_block_nhwc.4} parent=0 // loop_footer
    %s15 = sadd.s32 1, %s11
  $region7: #{bottleneck_block_nhwc.4} parent=0 // loop_footer_branch
    %10 = sbr.rel target = $region3
  $region8: #{bottleneck_block_nhwc.4} parent=0 // loop_exit
    _

// kernel: bottleneck_block_nhwc.7
$region0: #{bottleneck_block_nhwc.7}
  #allocation0 [shape = 'u32[]', space=smem, size = 0x4, offset = 0x4, fixed_abs, tag = 'smem constant byte address 0x4 - core index']
  #allocation1 [shape = 'u32[144,128]{1,0:T(1,128)}', space=vmem, size = 0x12000, scoped, tag = 'internal scratch']
  %s0 = inlined_call_operand.vmem [shape: f32[512,16], index: 0, kind: input, shape index: {}]
  %s1 = inlined_call_operand.vmem [shape: f32[512,16], index: 1, kind: input, shape index: {}]
  %s2 = inlined_call_operand.vmem [shape: f32[1,16], index: 2, kind: input, shape index: {}]
  %s3 = inlined_call_operand.vmem [shape: f32[1,16], index: 3, kind: input, shape index: {}]
  %s4 = inlined_call_operand.vmem [shape: f32[1,16], index: 4, kind: input, shape index: {}]
  %s5 = inlined_call_operand.vmem [shape: f32[1,16], index: 5, kind: input, shape index: {}]
  %s6 = inlined_call_operand.hbm [shape: f32[512,16], index: 6, kind: output, shape index: {}]
  %s7 = sld [smem:[#allocation0]]
  $region57: #{bottleneck_block_nhwc.7} parent=0
    _
  %s9 = ssub.s32 1, %s7
  %s10 = scalar_select 0, %s9, %s7
  $region1: #{bottleneck_block_nhwc.7} parent=0
    #allocation2 [shape = 'u8[262144]{0}', space=vmem, size = 0x40000, scoped, tag = 'output window, operand 0']
    #allocation3 [shape = 's32[2]{0}', space=sflag, size = 0x8, scoped, tag = 'scoped memory for bottleneck_block_nhwc.7']
    %11 = vsyncpa [#allocation3], 0
    %s12 = scalar_lea.sflag [#allocation3], 1
    %13 = vsyncpa %s12, 0
    loop: start=0, step=1, limit=4
    $region2: #{bottleneck_block_nhwc.7} parent=1 // loop_pre_header
      _
    $region3: #{bottleneck_block_nhwc.7} parent=1 // loop_header
      %s15 = sphi 0, %s19
      %p16 = scmp.ge.s32.totalorder %s15, 4
      %s25 = sphi 0, %s27
      %s28 = sphi 0, %s25
      %s29 = sphi 0, %s28
      %s45 = sphi 0, %s29
      %s51 = sphi 0, %s53
      %s54 = sphi 0, %s51
      %s55 = sphi 0, %s54
      %s71 = sphi 0, %s55
      %s75 = sphi 0, %s75
      %s77 = sphi 0, %s75
      %s78 = sphi 0, %s77
      %s92 = sphi 0, %s78
      %s96 = sphi 0, %s96
      %s98 = sphi 0, %s96
      %s99 = sphi 0, %s98
      %s113 = sphi 0, %s99
      %s117 = sphi 0, %s117
      %s119 = sphi 0, %s117
      %s120 = sphi 0, %s119
      %s134 = sphi 0, %s120
      %s138 = sphi 0, %s138
      %s140 = sphi 0, %s138
      %s141 = sphi 0, %s140
      %s155 = sphi 0, %s141
      %s161 = sphi 0, %s163
      %s164 = sphi 0, %s161
      %s165 = sphi 0, %s164
      %s181 = sphi 0, %s165
    $region4: #{bottleneck_block_nhwc.7} parent=1 // loop_header_branch
      %18 = sbr.rel (%p16) target = $region8
    $region5: #{bottleneck_block_nhwc.7} parent=1 // loop_body
      %s20 = ssub.s32 %s15, 1
      %s21 = ssub.s32 %s15, 2
      %s22 = sadd.s32 %s15, 1
      %s23 = ssub.s32 %s15, %s22
      %p24 = scmp.eq.s32.totalorder %s23, 0
      %s26 = sadd.s32 %s25, 1
      %s27 = scalar_select %p24, %s25, %s26
      %p30 = pneg %p24
      %p31 = scmp.eq.s32.totalorder %s15, 1
      %p32 = por %p30, %p31
      %p33 = scmp.ne.s32.totalorder %s25, %s28
      %p34 = scmp.eq.s32.totalorder %s15, 0
      %p35 = por %p33, %p34
      %p36 = scmp.ne.s32.totalorder %s25, %s28
      %p37 = scmp.eq.s32.totalorder %s20, 1
      %p38 = por %p36, %p37
      %p39 = scmp.ne.s32.totalorder %s28, %s29
      %p40 = scmp.eq.s32.totalorder %s20, 0
      %p41 = por %p39, %p40
      %p42 = scmp.ne.s32.totalorder %s28, %s29
      %p43 = scmp.eq.s32.totalorder %s21, 1
      %p44 = por %p42, %p43
      %p46 = scmp.ne.s32.totalorder %s29, %s45
      %p47 = scmp.eq.s32.totalorder %s21, 0
      %p48 = por %p46, %p47
      %s49 = ssub.s32 %s15, %s22
      %p50 = scmp.eq.s32.totalorder %s49, 0
      %s52 = sadd.s32 %s51, 1
      %s53 = scalar_select %p50, %s51, %s52
      %p56 = pneg %p50
      %p57 = scmp.eq.s32.totalorder %s15, 1
      %p58 = por %p56, %p57
      %p59 = scmp.ne.s32.totalorder %s51, %s54
      %p60 = scmp.eq.s32.totalorder %s15, 0
      %p61 = por %p59, %p60
      %p62 = scmp.ne.s32.totalorder %s51, %s54
      %p63 = scmp.eq.s32.totalorder %s20, 1
      %p64 = por %p62, %p63
      %p65 = scmp.ne.s32.totalorder %s54, %s55
      %p66 = scmp.eq.s32.totalorder %s20, 0
      %p67 = por %p65, %p66
      %p68 = scmp.ne.s32.totalorder %s54, %s55
      %p69 = scmp.eq.s32.totalorder %s21, 1
      %p70 = por %p68, %p69
      %p72 = scmp.ne.s32.totalorder %s55, %s71
      %p73 = scmp.eq.s32.totalorder %s21, 0
      %p74 = por %p72, %p73
      %s76 = sadd.s32 %s75, 1
      %p79 = scmp.eq.s32.totalorder %s15, 1
      %p80 = scmp.ne.s32.totalorder %s75, %s77
      %p81 = scmp.eq.s32.totalorder %s15, 0
      %p82 = por %p80, %p81
      %p83 = scmp.ne.s32.totalorder %s75, %s77
      %p84 = scmp.eq.s32.totalorder %s20, 1
      %p85 = por %p83, %p84
      %p86 = scmp.ne.s32.totalorder %s77, %s78
      %p87 = scmp.eq.s32.totalorder %s20, 0
      %p88 = por %p86, %p87
      %p89 = scmp.ne.s32.totalorder %s77, %s78
      %p90 = scmp.eq.s32.totalorder %s21, 1
      %p91 = por %p89, %p90
      %p93 = scmp.ne.s32.totalorder %s78, %s92
      %p94 = scmp.eq.s32.totalorder %s21, 0
      %p95 = por %p93, %p94
      %s97 = sadd.s32 %s96, 1
      %p100 = scmp.eq.s32.totalorder %s15, 1
      %p101 = scmp.ne.s32.totalorder %s96, %s98
      %p102 = scmp.eq.s32.totalorder %s15, 0
      %p103 = por %p101, %p102
      %p104 = scmp.ne.s32.totalorder %s96, %s98
      %p105 = scmp.eq.s32.totalorder %s20, 1
      %p106 = por %p104, %p105
      %p107 = scmp.ne.s32.totalorder %s98, %s99
      %p108 = scmp.eq.s32.totalorder %s20, 0
      %p109 = por %p107, %p108
      %p110 = scmp.ne.s32.totalorder %s98, %s99
      %p111 = scmp.eq.s32.totalorder %s21, 1
      %p112 = por %p110, %p111
      %p114 = scmp.ne.s32.totalorder %s99, %s113
      %p115 = scmp.eq.s32.totalorder %s21, 0
      %p116 = por %p114, %p115
      %s118 = sadd.s32 %s117, 1
      %p121 = scmp.eq.s32.totalorder %s15, 1
      %p122 = scmp.ne.s32.totalorder %s117, %s119
      %p123 = scmp.eq.s32.totalorder %s15, 0
      %p124 = por %p122, %p123
      %p125 = scmp.ne.s32.totalorder %s117, %s119
      %p126 = scmp.eq.s32.totalorder %s20, 1
      %p127 = por %p125, %p126
      %p128 = scmp.ne.s32.totalorder %s119, %s120
      %p129 = scmp.eq.s32.totalorder %s20, 0
      %p130 = por %p128, %p129
      %p131 = scmp.ne.s32.totalorder %s119, %s120
      %p132 = scmp.eq.s32.totalorder %s21, 1
      %p133 = por %p131, %p132
      %p135 = scmp.ne.s32.totalorder %s120, %s134
      %p136 = scmp.eq.s32.totalorder %s21, 0
      %p137 = por %p135, %p136
      %s139 = sadd.s32 %s138, 1
      %p142 = scmp.eq.s32.totalorder %s15, 1
      %p143 = scmp.ne.s32.totalorder %s138, %s140
      %p144 = scmp.eq.s32.totalorder %s15, 0
      %p145 = por %p143, %p144
      %p146 = scmp.ne.s32.totalorder %s138, %s140
      %p147 = scmp.eq.s32.totalorder %s20, 1
      %p148 = por %p146, %p147
      %p149 = scmp.ne.s32.totalorder %s140, %s141
      %p150 = scmp.eq.s32.totalorder %s20, 0
      %p151 = por %p149, %p150
      %p152 = scmp.ne.s32.totalorder %s140, %s141
      %p153 = scmp.eq.s32.totalorder %s21, 1
      %p154 = por %p152, %p153
      %p156 = scmp.ne.s32.totalorder %s141, %s155
      %p157 = scmp.eq.s32.totalorder %s21, 0
      %p158 = por %p156, %p157
      %s159 = ssub.s32 %s15, %s22
      %p160 = scmp.eq.s32.totalorder %s159, 0
      %s162 = sadd.s32 %s161, 1
      %s163 = scalar_select %p160, %s161, %s162
      %p166 = pneg %p160
      %p167 = scmp.eq.s32.totalorder %s15, 1
      %p168 = por %p166, %p167
      %p169 = scmp.ne.s32.totalorder %s161, %s164
      %p170 = scmp.eq.s32.totalorder %s15, 0
      %p171 = por %p169, %p170
      %p172 = scmp.ne.s32.totalorder %s161, %s164
      %p173 = scmp.eq.s32.totalorder %s20, 1
      %p174 = por %p172, %p173
      %p175 = scmp.ne.s32.totalorder %s164, %s165
      %p176 = scmp.eq.s32.totalorder %s20, 0
      %p177 = por %p175, %p176
      %p178 = scmp.ne.s32.totalorder %s164, %s165
      %p179 = scmp.eq.s32.totalorder %s21, 1
      %p180 = por %p178, %p179
      %p182 = scmp.ne.s32.totalorder %s165, %s181
      %p183 = scmp.eq.s32.totalorder %s21, 0
      %p184 = por %p182, %p183
      %p185 = scmp.le.s32.totalorder 1, %s15
      %p186 = scmp.lt.s32.totalorder %s15, 3
      %p187 = pnand %p185, %p186
      %p188 = pneg %p187
      // Predicated region
      $region9: #{bottleneck_block_nhwc.7} parent=5 // pred_check
        _
      $region10: #{bottleneck_block_nhwc.7} parent=5 // pred_check_branch
        %190 = sbr.rel (%p187) target = $region12
      $region11: #{bottleneck_block_nhwc.7} parent=5 // pred_region
        %s191 = ssub.s32 %s15, 1
        // Predicated region
        $region13: #{bottleneck_block_nhwc.7} parent=11 // pred_check
          %p192 = pneg %p88
        $region14: #{bottleneck_block_nhwc.7} parent=11 // pred_check_branch
          %194 = sbr.rel (%p192) target = $region16
        $region15: #{bottleneck_block_nhwc.7} parent=11 // pred_region
          _
        $region16: #{bottleneck_block_nhwc.7} parent=11 // pred_fallthru
          _
        // Predicated region
        $region17: #{bottleneck_block_nhwc.7} parent=11 // pred_check
          %p195 = pneg %p109
        $region18: #{bottleneck_block_nhwc.7} parent=11 // pred_check_branch
          %197 = sbr.rel (%p195) target = $region20
        $region19: #{bottleneck_block_nhwc.7} parent=11 // pred_region
          _
        $region20: #{bottleneck_block_nhwc.7} parent=11 // pred_fallthru
          _
        // Predicated region
        $region21: #{bottleneck_block_nhwc.7} parent=11 // pred_check
          %p198 = pneg %p130
        $region22: #{bottleneck_block_nhwc.7} parent=11 // pred_check_branch
          %200 = sbr.rel (%p198) target = $region24
        $region23: #{bottleneck_block_nhwc.7} parent=11 // pred_region
          _
        $region24: #{bottleneck_block_nhwc.7} parent=11 // pred_fallthru
          _
        // Predicated region
        $region25: #{bottleneck_block_nhwc.7} parent=11 // pred_check
          %p201 = pneg %p151
        $region26: #{bottleneck_block_nhwc.7} parent=11 // pred_check_branch
          %203 = sbr.rel (%p201) target = $region28
        $region27: #{bottleneck_block_nhwc.7} parent=11 // pred_region
          _
        $region28: #{bottleneck_block_nhwc.7} parent=11 // pred_fallthru
          _
      $region12: #{bottleneck_block_nhwc.7} parent=5 // pred_fallthru
        _
      %p204 = scmp.lt.s32.totalorder %s15, 2
      // Predicated region
      $region29: #{bottleneck_block_nhwc.7} parent=5 // pred_check
        %p205 = pneg %p204
      $region30: #{bottleneck_block_nhwc.7} parent=5 // pred_check_branch
        %207 = sbr.rel (%p205) target = $region32
      $region31: #{bottleneck_block_nhwc.7} parent=5 // pred_region
        // Predicated region
        $region33: #{bottleneck_block_nhwc.7} parent=31 // pred_check
          %p208 = pneg %p35
        $region34: #{bottleneck_block_nhwc.7} parent=31 // pred_check_branch
          %210 = sbr.rel (%p208) target = $region36
        $region35: #{bottleneck_block_nhwc.7} parent=31 // pred_region
          %s211 = smul.u32 32, %s15
          %p212 = scmp.lt.s32.totalorder %s211, 63
          %s213 = scalar_select %p212, %s211, 63
          %s214 = smul.addr %s213, 8
          %s215 = scalar_lea.vmem %s0, %s214
          %s216 = smul.u32 32, %s15
        $region36: #{bottleneck_block_nhwc.7} parent=31 // pred_fallthru
          _
        // Predicated region
        $region37: #{bottleneck_block_nhwc.7} parent=31 // pred_check
          %p217 = pneg %p61
        $region38: #{bottleneck_block_nhwc.7} parent=31 // pred_check_branch
          %219 = sbr.rel (%p217) target = $region40
        $region39: #{bottleneck_block_nhwc.7} parent=31 // pred_region
          %s220 = smul.u32 32, %s15
          %p221 = scmp.lt.s32.totalorder %s220, 63
          %s222 = scalar_select %p221, %s220, 63
          %s223 = smul.addr %s222, 8
          %s224 = scalar_lea.vmem %s1, %s223
          %s225 = smul.u32 32, %s15
        $region40: #{bottleneck_block_nhwc.7} parent=31 // pred_fallthru
          _
      $region32: #{bottleneck_block_nhwc.7} parent=5 // pred_fallthru
        _
      %p226 = scmp.le.s32.totalorder 1, %s15
      %p227 = scmp.lt.s32.totalorder %s15, 3
      %p228 = pnand %p226, %p227
      %p229 = pneg %p228
      // Predicated region
      $region41: #{bottleneck_block_nhwc.7} parent=5 // pred_check
        _
      $region42: #{bottleneck_block_nhwc.7} parent=5 // pred_check_branch
        %231 = sbr.rel (%p228) target = $region44
      $region43: #{bottleneck_block_nhwc.7} parent=5 // pred_region
        %s232 = ssub.s32 %s15, 1
        %s233 = smul.u32 32, %s20
        %p234 = scmp.lt.s32.totalorder %s233, 63
        %s235 = scalar_select %p234, %s233, 63
        %s236 = smul.addr %s235, 8
        %s237 = scalar_lea.vmem %s0, %s236
        %p238 = pneg %p41
        %p239 = pneg %p38
        %s240 = smul.u32 32, %s20
        %p241 = scmp.lt.s32.totalorder %s240, 63
        %s242 = scalar_select %p241, %s240, 63
        %s243 = smul.addr %s242, 8
        %s244 = scalar_lea.vmem %s1, %s243
        %p245 = pneg %p67
        %p246 = pneg %p64
        %p247 = pneg %p88
        %p248 = pneg %p85
        %p249 = pneg %p109
        %p250 = pneg %p106
        %p251 = pneg %p130
        %p252 = pneg %p127
        %p253 = pneg %p151
        %p254 = pneg %p148
        %p255 = pneg %p177
        %p256 = pneg %p174
        %s257 = sand.u32 %s164, 1
        %s258 = scalar_lea.sflag [#allocation3], %s257
        %s259 = sand.u32 %s164, 1
        %s260 = smul.addr %s259, 256
        %s261 = scalar_lea.vmem [#allocation2], %s260
        %s262 = smul.u32 32, %s20
        %p263 = scmp.lt.s32.totalorder %s262, 63
        %s264 = scalar_select %p263, %s262, 63
        %s265 = smul.addr %s264, 8
        %s266 = scalar_lea.vmem %s0, %s265
        %s267 = smul.u32 32, %s20
        %s268 = smul.u32 32, %s20
        %p269 = scmp.lt.s32.totalorder %s268, 63
        %s270 = scalar_select %p269, %s268, 63
        %s271 = smul.addr %s270, 8
        %s272 = scalar_lea.vmem %s1, %s271
        %s273 = smul.u32 32, %s20
        %s274 = smul.u32 32, %s20
        %v275 = vld [vmem:[%s266] sm:$0xff]
        %v276 = vld [vmem:[%s266 + $0x8] sm:$0xff]
        %v277 = vld [vmem:[%s266 + $0x10] sm:$0xff]
        %v278 = vld [vmem:[%s266 + $0x18] sm:$0xff]
        %v279 = vld [vmem:[%s266 + $0x20] sm:$0xff]
        %v280 = vld [vmem:[%s266 + $0x28] sm:$0xff]
        %v281 = vld [vmem:[%s266 + $0x30] sm:$0xff]
        %v282 = vld [vmem:[%s266 + $0x38] sm:$0xff]
        %v283 = vld [vmem:[%s266 + $0x40] sm:$0xff]
        %v284 = vld [vmem:[%s266 + $0x48] sm:$0xff]
        %v285 = vld [vmem:[%s266 + $0x50] sm:$0xff]
        %v286 = vld [vmem:[%s266 + $0x58] sm:$0xff]
        %v287 = vld [vmem:[%s266 + $0x60] sm:$0xff]
        %v288 = vld [vmem:[%s266 + $0x68] sm:$0xff]
        %v289 = vld [vmem:[%s266 + $0x70] sm:$0xff]
        %v290 = vld [vmem:[%s266 + $0x78] sm:$0xff]
        %v291 = vld [vmem:[%s266 + $0x80] sm:$0xff]
        %v292 = vld [vmem:[%s266 + $0x88] sm:$0xff]
        %v293 = vld [vmem:[%s266 + $0x90] sm:$0xff]
        %v294 = vld [vmem:[%s266 + $0x98] sm:$0xff]
        %v295 = vld [vmem:[%s266 + $0xa0] sm:$0xff]
        %v296 = vld [vmem:[%s266 + $0xa8] sm:$0xff]
        %v297 = vld [vmem:[%s266 + $0xb0] sm:$0xff]
        %v298 = vld [vmem:[%s266 + $0xb8] sm:$0xff]
        %v299 = vld [vmem:[%s266 + $0xc0] sm:$0xff]
        %v300 = vld [vmem:[%s266 + $0xc8] sm:$0xff]
        %v301 = vld [vmem:[%s266 + $0xd0] sm:$0xff]
        %v302 = vld [vmem:[%s266 + $0xd8] sm:$0xff]
        %v303 = vld [vmem:[%s266 + $0xe0] sm:$0xff]
        %v304 = vld [vmem:[%s266 + $0xe8] sm:$0xff]
        %v305 = vld [vmem:[%s266 + $0xf0] sm:$0xff]
        %v306 = vld [vmem:[%s266 + $0xf8] sm:$0xff]
        %v307 = vld [vmem:[%s2] sm:$0x1]
        %v309 = vlaneseq
        %v310 = vshrl.u32 %v309, 7
        %v311 = vsub.s32 0, %v310
        %v312 = vrot.slane %v307, %v311
        %v314 = vmul.f32 %v275, %v312
        %v315 = vmul.f32 %v276, %v312
        %v316 = vmul.f32 %v277, %v312
        %v317 = vmul.f32 %v278, %v312
        %v318 = vmul.f32 %v279, %v312
        %v319 = vmul.f32 %v280, %v312
        %v320 = vmul.f32 %v281, %v312
        %v321 = vmul.f32 %v282, %v312
        %v322 = vmul.f32 %v283, %v312
        %v323 = vmul.f32 %v284, %v312
        %v324 = vmul.f32 %v285, %v312
        %v325 = vmul.f32 %v286, %v312
        %v326 = vmul.f32 %v287, %v312
        %v327 = vmul.f32 %v288, %v312
        %v328 = vmul.f32 %v289, %v312
        %v329 = vmul.f32 %v290, %v312
        %v330 = vmul.f32 %v291, %v312
        %v331 = vmul.f32 %v292, %v312
        %v332 = vmul.f32 %v293, %v312
        %v333 = vmul.f32 %v294, %v312
        %v334 = vmul.f32 %v295, %v312
        %v335 = vmul.f32 %v296, %v312
        %v336 = vmul.f32 %v297, %v312
        %v337 = vmul.f32 %v298, %v312
        %v338 = vmul.f32 %v299, %v312
        %v339 = vmul.f32 %v300, %v312
        %v340 = vmul.f32 %v301, %v312
        %v341 = vmul.f32 %v302, %v312
        %v342 = vmul.f32 %v303, %v312
        %v343 = vmul.f32 %v304, %v312
        %v344 = vmul.f32 %v305, %v312
        %v345 = vmul.f32 %v306, %v312
        %v346 = vld [vmem:[%s3] sm:$0x1]
        %v348 = vlaneseq
        %v349 = vshrl.u32 %v348, 7
        %v350 = vsub.s32 0, %v349
        %v351 = vrot.slane %v346, %v350
        %v353 = vadd.f32 %v314, %v351
        %v354 = vadd.f32 %v315, %v351
        %v355 = vadd.f32 %v316, %v351
        %v356 = vadd.f32 %v317, %v351
        %v357 = vadd.f32 %v318, %v351
        %v358 = vadd.f32 %v319, %v351
        %v359 = vadd.f32 %v320, %v351
        %v360 = vadd.f32 %v321, %v351
        %v361 = vadd.f32 %v322, %v351
        %v362 = vadd.f32 %v323, %v351
        %v363 = vadd.f32 %v324, %v351
        %v364 = vadd.f32 %v325, %v351
        %v365 = vadd.f32 %v326, %v351
        %v366 = vadd.f32 %v327, %v351
        %v367 = vadd.f32 %v328, %v351
        %v368 = vadd.f32 %v329, %v351
        %v369 = vadd.f32 %v330, %v351
        %v370 = vadd.f32 %v331, %v351
        %v371 = vadd.f32 %v332, %v351
        %v372 = vadd.f32 %v333, %v351
        %v373 = vadd.f32 %v334, %v351
        %v374 = vadd.f32 %v335, %v351
        %v375 = vadd.f32 %v336, %v351
        %v376 = vadd.f32 %v337, %v351
        %v377 = vadd.f32 %v338, %v351
        %v378 = vadd.f32 %v339, %v351
        %v379 = vadd.f32 %v340, %v351
        %v380 = vadd.f32 %v341, %v351
        %v381 = vadd.f32 %v342, %v351
        %v382 = vadd.f32 %v343, %v351
        %v383 = vadd.f32 %v344, %v351
        %v384 = vadd.f32 %v345, %v351
        %v385 = vld [vmem:[%s272] sm:$0xff]
        %v386 = vld [vmem:[%s272 + $0x8] sm:$0xff]
        %v387 = vld [vmem:[%s272 + $0x10] sm:$0xff]
        %v388 = vld [vmem:[%s272 + $0x18] sm:$0xff]
        %v389 = vld [vmem:[%s272 + $0x20] sm:$0xff]
        %v390 = vld [vmem:[%s272 + $0x28] sm:$0xff]
        %v391 = vld [vmem:[%s272 + $0x30] sm:$0xff]
        %v392 = vld [vmem:[%s272 + $0x38] sm:$0xff]
        %v393 = vld [vmem:[%s272 + $0x40] sm:$0xff]
        %v394 = vld [vmem:[%s272 + $0x48] sm:$0xff]
        %v395 = vld [vmem:[%s272 + $0x50] sm:$0xff]
        %v396 = vld [vmem:[%s272 + $0x58] sm:$0xff]
        %v397 = vld [vmem:[%s272 + $0x60] sm:$0xff]
        %v398 = vld [vmem:[%s272 + $0x68] sm:$0xff]
        %v399 = vld [vmem:[%s272 + $0x70] sm:$0xff]
        %v400 = vld [vmem:[%s272 + $0x78] sm:$0xff]
        %v401 = vld [vmem:[%s272 + $0x80] sm:$0xff]
        %v402 = vld [vmem:[%s272 + $0x88] sm:$0xff]
        %v403 = vld [vmem:[%s272 + $0x90] sm:$0xff]
        %v404 = vld [vmem:[%s272 + $0x98] sm:$0xff]
        %v405 = vld [vmem:[%s272 + $0xa0] sm:$0xff]
        %v406 = vld [vmem:[%s272 + $0xa8] sm:$0xff]
        %v407 = vld [vmem:[%s272 + $0xb0] sm:$0xff]
        %v408 = vld [vmem:[%s272 + $0xb8] sm:$0xff]
        %v409 = vld [vmem:[%s272 + $0xc0] sm:$0xff]
        %v410 = vld [vmem:[%s272 + $0xc8] sm:$0xff]
        %v411 = vld [vmem:[%s272 + $0xd0] sm:$0xff]
        %v412 = vld [vmem:[%s272 + $0xd8] sm:$0xff]
        %v413 = vld [vmem:[%s272 + $0xe0] sm:$0xff]
        %v414 = vld [vmem:[%s272 + $0xe8] sm:$0xff]
        %v415 = vld [vmem:[%s272 + $0xf0] sm:$0xff]
        %v416 = vld [vmem:[%s272 + $0xf8] sm:$0xff]
        %v417 = vld [vmem:[%s4] sm:$0x1]
        %v419 = vlaneseq
        %v420 = vshrl.u32 %v419, 7
        %v421 = vsub.s32 0, %v420
        %v422 = vrot.slane %v417, %v421
        %v424 = vmul.f32 %v385, %v422
        %v425 = vmul.f32 %v386, %v422
        %v426 = vmul.f32 %v387, %v422
        %v427 = vmul.f32 %v388, %v422
        %v428 = vmul.f32 %v389, %v422
        %v429 = vmul.f32 %v390, %v422
        %v430 = vmul.f32 %v391, %v422
        %v431 = vmul.f32 %v392, %v422
        %v432 = vmul.f32 %v393, %v422
        %v433 = vmul.f32 %v394, %v422
        %v434 = vmul.f32 %v395, %v422
        %v435 = vmul.f32 %v396, %v422
        %v436 = vmul.f32 %v397, %v422
        %v437 = vmul.f32 %v398, %v422
        %v438 = vmul.f32 %v399, %v422
        %v439 = vmul.f32 %v400, %v422
        %v440 = vmul.f32 %v401, %v422
        %v441 = vmul.f32 %v402, %v422
        %v442 = vmul.f32 %v403, %v422
        %v443 = vmul.f32 %v404, %v422
        %v444 = vmul.f32 %v405, %v422
        %v445 = vmul.f32 %v406, %v422
        %v446 = vmul.f32 %v407, %v422
        %v447 = vmul.f32 %v408, %v422
        %v448 = vmul.f32 %v409, %v422
        %v449 = vmul.f32 %v410, %v422
        %v450 = vmul.f32 %v411, %v422
        %v451 = vmul.f32 %v412, %v422
        %v452 = vmul.f32 %v413, %v422
        %v453 = vmul.f32 %v414, %v422
        %v454 = vmul.f32 %v415, %v422
        %v455 = vmul.f32 %v416, %v422
        %v456 = vld [vmem:[%s5] sm:$0x1]
        %v458 = vlaneseq
        %v459 = vshrl.u32 %v458, 7
        %v460 = vsub.s32 0, %v459
        %v461 = vrot.slane %v456, %v460
        %v463 = vadd.f32 %v424, %v461
        %v464 = vadd.f32 %v425, %v461
        %v465 = vadd.f32 %v426, %v461
        %v466 = vadd.f32 %v427, %v461
        %v467 = vadd.f32 %v428, %v461
        %v468 = vadd.f32 %v429, %v461
        %v469 = vadd.f32 %v430, %v461
        %v470 = vadd.f32 %v431, %v461
        %v471 = vadd.f32 %v432, %v461
        %v472 = vadd.f32 %v433, %v461
        %v473 = vadd.f32 %v434, %v461
        %v474 = vadd.f32 %v435, %v461
        %v475 = vadd.f32 %v436, %v461
        %v476 = vadd.f32 %v437, %v461
        %v477 = vadd.f32 %v438, %v461
        %v478 = vadd.f32 %v439, %v461
        %v479 = vadd.f32 %v440, %v461
        %v480 = vadd.f32 %v441, %v461
        %v481 = vadd.f32 %v442, %v461
        %v482 = vadd.f32 %v443, %v461
        %v483 = vadd.f32 %v444, %v461
        %v484 = vadd.f32 %v445, %v461
        %v485 = vadd.f32 %v446, %v461
        %v486 = vadd.f32 %v447, %v461
        %v487 = vadd.f32 %v448, %v461
        %v488 = vadd.f32 %v449, %v461
        %v489 = vadd.f32 %v450, %v461
        %v490 = vadd.f32 %v451, %v461
        %v491 = vadd.f32 %v452, %v461
        %v492 = vadd.f32 %v453, %v461
        %v493 = vadd.f32 %v454, %v461
        %v494 = vadd.f32 %v455, %v461
        %v495 = vadd.f32 %v353, %v463
        %v496 = vadd.f32 %v354, %v464
        %v497 = vadd.f32 %v355, %v465
        %v498 = vadd.f32 %v356, %v466
        %v499 = vadd.f32 %v357, %v467
        %v500 = vadd.f32 %v358, %v468
        %v501 = vadd.f32 %v359, %v469
        %v502 = vadd.f32 %v360, %v470
        %v503 = vadd.f32 %v361, %v471
        %v504 = vadd.f32 %v362, %v472
        %v505 = vadd.f32 %v363, %v473
        %v506 = vadd.f32 %v364, %v474
        %v507 = vadd.f32 %v365, %v475
        %v508 = vadd.f32 %v366, %v476
        %v509 = vadd.f32 %v367, %v477
        %v510 = vadd.f32 %v368, %v478
        %v511 = vadd.f32 %v369, %v479
        %v512 = vadd.f32 %v370, %v480
        %v513 = vadd.f32 %v371, %v481
        %v514 = vadd.f32 %v372, %v482
        %v515 = vadd.f32 %v373, %v483
        %v516 = vadd.f32 %v374, %v484
        %v517 = vadd.f32 %v375, %v485
        %v518 = vadd.f32 %v376, %v486
        %v519 = vadd.f32 %v377, %v487
        %v520 = vadd.f32 %v378, %v488
        %v521 = vadd.f32 %v379, %v489
        %v522 = vadd.f32 %v380, %v490
        %v523 = vadd.f32 %v381, %v491
        %v524 = vadd.f32 %v382, %v492
        %v525 = vadd.f32 %v383, %v493
        %v526 = vadd.f32 %v384, %v494
        %v527 = vmax.f32 %v495, 0.0
        %v528 = vmax.f32 %v496, 0.0
        %v529 = vmax.f32 %v497, 0.0
        %v530 = vmax.f32 %v498, 0.0
        %v531 = vmax.f32 %v499, 0.0
        %v532 = vmax.f32 %v500, 0.0
        %v533 = vmax.f32 %v501, 0.0
        %v534 = vmax.f32 %v502, 0.0
        %v535 = vmax.f32 %v503, 0.0
        %v536 = vmax.f32 %v504, 0.0
        %v537 = vmax.f32 %v505, 0.0
        %v538 = vmax.f32 %v506, 0.0
        %v539 = vmax.f32 %v507, 0.0
        %v540 = vmax.f32 %v508, 0.0
        %v541 = vmax.f32 %v509, 0.0
        %v542 = vmax.f32 %v510, 0.0
        %v543 = vmax.f32 %v511, 0.0
        %v544 = vmax.f32 %v512, 0.0
        %v545 = vmax.f32 %v513, 0.0
        %v546 = vmax.f32 %v514, 0.0
        %v547 = vmax.f32 %v515, 0.0
        %v548 = vmax.f32 %v516, 0.0
        %v549 = vmax.f32 %v517, 0.0
        %v550 = vmax.f32 %v518, 0.0
        %v551 = vmax.f32 %v519, 0.0
        %v552 = vmax.f32 %v520, 0.0
        %v553 = vmax.f32 %v521, 0.0
        %v554 = vmax.f32 %v522, 0.0
        %v555 = vmax.f32 %v523, 0.0
        %v556 = vmax.f32 %v524, 0.0
        %v557 = vmax.f32 %v525, 0.0
        %v558 = vmax.f32 %v526, 0.0
        %vm559 = vcmask 130048
        %560 = vst.msk [vmem:[%s261] sm:$0xff] %vm559, %v527
        %561 = vst.msk [vmem:[%s261 + $0x8] sm:$0xff] %vm559, %v528
        %562 = vst.msk [vmem:[%s261 + $0x10] sm:$0xff] %vm559, %v529
        %563 = vst.msk [vmem:[%s261 + $0x18] sm:$0xff] %vm559, %v530
        %564 = vst.msk [vmem:[%s261 + $0x20] sm:$0xff] %vm559, %v531
        %565 = vst.msk [vmem:[%s261 + $0x28] sm:$0xff] %vm559, %v532
        %566 = vst.msk [vmem:[%s261 + $0x30] sm:$0xff] %vm559, %v533
        %567 = vst.msk [vmem:[%s261 + $0x38] sm:$0xff] %vm559, %v534
        %568 = vst.msk [vmem:[%s261 + $0x40] sm:$0xff] %vm559, %v535
        %569 = vst.msk [vmem:[%s261 + $0x48] sm:$0xff] %vm559, %v536
        %570 = vst.msk [vmem:[%s261 + $0x50] sm:$0xff] %vm559, %v537
        %571 = vst.msk [vmem:[%s261 + $0x58] sm:$0xff] %vm559, %v538
        %572 = vst.msk [vmem:[%s261 + $0x60] sm:$0xff] %vm559, %v539
        %573 = vst.msk [vmem:[%s261 + $0x68] sm:$0xff] %vm559, %v540
        %574 = vst.msk [vmem:[%s261 + $0x70] sm:$0xff] %vm559, %v541
        %575 = vst.msk [vmem:[%s261 + $0x78] sm:$0xff] %vm559, %v542
        %576 = vst.msk [vmem:[%s261 + $0x80] sm:$0xff] %vm559, %v543
        %577 = vst.msk [vmem:[%s261 + $0x88] sm:$0xff] %vm559, %v544
        %578 = vst.msk [vmem:[%s261 + $0x90] sm:$0xff] %vm559, %v545
        %579 = vst.msk [vmem:[%s261 + $0x98] sm:$0xff] %vm559, %v546
        %580 = vst.msk [vmem:[%s261 + $0xa0] sm:$0xff] %vm559, %v547
        %581 = vst.msk [vmem:[%s261 + $0xa8] sm:$0xff] %vm559, %v548
        %582 = vst.msk [vmem:[%s261 + $0xb0] sm:$0xff] %vm559, %v549
        %583 = vst.msk [vmem:[%s261 + $0xb8] sm:$0xff] %vm559, %v550
        %584 = vst.msk [vmem:[%s261 + $0xc0] sm:$0xff] %vm559, %v551
        %585 = vst.msk [vmem:[%s261 + $0xc8] sm:$0xff] %vm559, %v552
        %586 = vst.msk [vmem:[%s261 + $0xd0] sm:$0xff] %vm559, %v553
        %587 = vst.msk [vmem:[%s261 + $0xd8] sm:$0xff] %vm559, %v554
        %588 = vst.msk [vmem:[%s261 + $0xe0] sm:$0xff] %vm559, %v555
        %589 = vst.msk [vmem:[%s261 + $0xe8] sm:$0xff] %vm559, %v556
        %590 = vst.msk [vmem:[%s261 + $0xf0] sm:$0xff] %vm559, %v557
        %591 = vst.msk [vmem:[%s261 + $0xf8] sm:$0xff] %vm559, %v558
        %s592 = sand.u32 %s164, 1
        %s593 = scalar_lea.sflag [#allocation3], %s592
        %s594 = sand.u32 %s164, 1
        %s595 = smul.addr %s594, 256
        %s596 = scalar_lea.vmem [#allocation2], %s595
        // Predicated region
        $region45: #{bottleneck_block_nhwc.7} parent=43 // pred_check
          %p597 = pneg %p174
        $region46: #{bottleneck_block_nhwc.7} parent=43 // pred_check_branch
          %599 = sbr.rel (%p597) target = $region48
        $region47: #{bottleneck_block_nhwc.7} parent=43 // pred_region
          %s600 = smul.u32 32, %s20
          %s602 = ssub.s32 4096, 4096
          %603 = vsyncadd %s593, %s602
          %s604 = smul.addr %s600, 128
          %s605 = scalar_lea.hbm %s6, %s604
          %s606 = sshll.u32 %s596, 4
          %s607 = int_to_ptr.vmem [resolvable:$true] %s606
          %612 = dma.vmem_to_hbm [thread:$0]  %s607, 4096, %s605, %s593, 128, 128, 8
        $region48: #{bottleneck_block_nhwc.7} parent=43 // pred_fallthru
          _
      $region44: #{bottleneck_block_nhwc.7} parent=5 // pred_fallthru
        _
      %p613 = scmp.le.s32.totalorder 2, %s15
      // Predicated region
      $region49: #{bottleneck_block_nhwc.7} parent=5 // pred_check
        %p614 = pneg %p613
      $region50: #{bottleneck_block_nhwc.7} parent=5 // pred_check_branch
        %616 = sbr.rel (%p614) target = $region52
      $region51: #{bottleneck_block_nhwc.7} parent=5 // pred_region
        %s617 = ssub.s32 %s15, 2
        // Predicated region
        $region53: #{bottleneck_block_nhwc.7} parent=51 // pred_check
          %p618 = pneg %p180
        $region54: #{bottleneck_block_nhwc.7} parent=51 // pred_check_branch
          %620 = sbr.rel (%p618) target = $region56
        $region55: #{bottleneck_block_nhwc.7} parent=51 // pred_region
          %s621 = sand.u32 %s165, 1
          %s622 = scalar_lea.sflag [#allocation3], %s621
          %s623 = sand.u32 %s165, 1
          %s624 = smul.addr %s623, 256
          %s625 = scalar_lea.vmem [#allocation2], %s624
          %626 = dma.done %s622, 4096
        $region56: #{bottleneck_block_nhwc.7} parent=51 // pred_fallthru
          _
      $region52: #{bottleneck_block_nhwc.7} parent=5 // pred_fallthru
        _
    $region6: #{bottleneck_block_nhwc.7} parent=1 // loop_footer
      %s19 = sadd.s32 1, %s15
    $region7: #{bottleneck_block_nhwc.7} parent=1 // loop_footer_branch
      %14 = sbr.rel target = $region3
    $region8: #{bottleneck_block_nhwc.7} parent=1 // loop_exit
      _
    %627 = vsyncpa [#allocation3], 1
    %s628 = scalar_lea.sflag [#allocation3], 1
    %629 = vsyncpa %s628, 1

// kernel: bottleneck_block_nhwc.5
$region0: #{bottleneck_block_nhwc.5}
  #allocation0 [shape = 'u32[]', space=smem, size = 0x4, offset = 0x4, fixed_abs, tag = 'smem constant byte address 0x4 - core index']
  #allocation1 [shape = 'u32[144,128]{1,0:T(1,128)}', space=vmem, size = 0x12000, scoped, tag = 'internal scratch']
  #allocation2 [shape = 'f32[16,18,4]{2,1,0:T(8,128)}', space=vmem, size = 0x30000, scoped, tag = 'scratch operand']
  %s0 = inlined_call_operand.vmem [shape: f32[2,16,16,4], index: 0, kind: input, shape index: {}]
  %s1 = inlined_call_operand.vmem [shape: f32[1,4], index: 1, kind: input, shape index: {}]
  %s2 = inlined_call_operand.vmem [shape: f32[1,4], index: 2, kind: input, shape index: {}]
  %s3 = inlined_call_operand.vmem [shape: bf16[3,12,4], index: 3, kind: input, shape index: {}]
  %s4 = inlined_call_operand.vmem [shape: f32[2,16,16,4], index: 4, kind: output, shape index: {0}]
  %s5 = inlined_call_operand.vmem [shape: f32[2,2,4], index: 5, kind: output, shape index: {1}]
  %6 = xla_tuple %s4, %s5
  %s7 = sld [smem:[#allocation0]]
  $region61: #{bottleneck_block_nhwc.5} parent=0
    _
  %s9 = ssub.s32 1, %s7
  %s10 = scalar_select 0, %s9, %s7
  loop: start=0, step=1, limit=4
  $region2: #{bottleneck_block_nhwc.5} parent=0 // loop_pre_header
    _
  $region3: #{bottleneck_block_nhwc.5} parent=0 // loop_header
    %s12 = sphi 0, %s16
    %p13 = scmp.ge.s32.totalorder %s12, 4
    %s22 = sphi 0, %s24
    %s25 = sphi 0, %s22
    %s26 = sphi 0, %s25
    %s42 = sphi 0, %s26
    %s46 = sphi 0, %s46
    %s48 = sphi 0, %s46
    %s49 = sphi 0, %s48
    %s63 = sphi 0, %s49
    %s67 = sphi 0, %s67
    %s69 = sphi 0, %s67
    %s70 = sphi 0, %s69
    %s84 = sphi 0, %s70
    %s88 = sphi 0, %s88
    %s90 = sphi 0, %s88
    %s91 = sphi 0, %s90
    %s105 = sphi 0, %s91
    %s111 = sphi 0, %s113
    %s114 = sphi 0, %s111
    %s115 = sphi 0, %s114
    %s131 = sphi 0, %s115
    %s137 = sphi 0, %s139
    %s140 = sphi 0, %s137
    %s141 = sphi 0, %s140
    %s157 = sphi 0, %s141
  $region4: #{bottleneck_block_nhwc.5} parent=0 // loop_header_branch
    %15 = sbr.rel (%p13) target = $region8
  $region5: #{bottleneck_block_nhwc.5} parent=0 // loop_body
    %s17 = ssub.s32 %s12, 1
    %s18 = ssub.s32 %s12, 2
    %s19 = sadd.s32 %s12, 1
    %s20 = ssub.s32 %s12, %s19
    %p21 = scmp.eq.s32.totalorder %s20, 0
    %s23 = sadd.s32 %s22, 1
    %s24 = scalar_select %p21, %s22, %s23
    %p27 = pneg %p21
    %p28 = scmp.eq.s32.totalorder %s12, 1
    %p29 = por %p27, %p28
    %p30 = scmp.ne.s32.totalorder %s22, %s25
    %p31 = scmp.eq.s32.totalorder %s12, 0
    %p32 = por %p30, %p31
    %p33 = scmp.ne.s32.totalorder %s22, %s25
    %p34 = scmp.eq.s32.totalorder %s17, 1
    %p35 = por %p33, %p34
    %p36 = scmp.ne.s32.totalorder %s25, %s26
    %p37 = scmp.eq.s32.totalorder %s17, 0
    %p38 = por %p36, %p37
    %p39 = scmp.ne.s32.totalorder %s25, %s26
    %p40 = scmp.eq.s32.totalorder %s18, 1
    %p41 = por %p39, %p40
    %p43 = scmp.ne.s32.totalorder %s26, %s42
    %p44 = scmp.eq.s32.totalorder %s18, 0
    %p45 = por %p43, %p44
    %s47 = sadd.s32 %s46, 1
    %p50 = scmp.eq.s32.totalorder %s12, 1
    %p51 = scmp.ne.s32.totalorder %s46, %s48
    %p52 = scmp.eq.s32.totalorder %s12, 0
    %p53 = por %p51, %p52
    %p54 = scmp.ne.s32.totalorder %s46, %s48
    %p55 = scmp.eq.s32.totalorder %s17, 1
    %p56 = por %p54, %p55
    %p57 = scmp.ne.s32.totalorder %s48, %s49
    %p58 = scmp.eq.s32.totalorder %s17, 0
    %p59 = por %p57, %p58
    %p60 = scmp.ne.s32.totalorder %s48, %s49
    %p61 = scmp.eq.s32.totalorder %s18, 1
    %p62 = por %p60, %p61
    %p64 = scmp.ne.s32.totalorder %s49, %s63
    %p65 = scmp.eq.s32.totalorder %s18, 0
    %p66 = por %p64, %p65
    %s68 = sadd.s32 %s67, 1
    %p71 = scmp.eq.s32.totalorder %s12, 1
    %p72 = scmp.ne.s32.totalorder %s67, %s69
    %p73 = scmp.eq.s32.totalorder %s12, 0
    %p74 = por %p72, %p73
    %p75 = scmp.ne.s32.totalorder %s67, %s69
    %p76 = scmp.eq.s32.totalorder %s17, 1
    %p77 = por %p75, %p76
    %p78 = scmp.ne.s32.totalorder %s69, %s70
    %p79 = scmp.eq.s32.totalorder %s17, 0
    %p80 = por %p78, %p79
    %p81 = scmp.ne.s32.totalorder %s69, %s70
    %p82 = scmp.eq.s32.totalorder %s18, 1
    %p83 = por %p81, %p82
    %p85 = scmp.ne.s32.totalorder %s70, %s84
    %p86 = scmp.eq.s32.totalorder %s18, 0
    %p87 = por %p85, %p86
    %s89 = sadd.s32 %s88, 1
    %p92 = scmp.eq.s32.totalorder %s12, 1
    %p93 = scmp.ne.s32.totalorder %s88, %s90
    %p94 = scmp.eq.s32.totalorder %s12, 0
    %p95 = por %p93, %p94
    %p96 = scmp.ne.s32.totalorder %s88, %s90
    %p97 = scmp.eq.s32.totalorder %s17, 1
    %p98 = por %p96, %p97
    %p99 = scmp.ne.s32.totalorder %s90, %s91
    %p100 = scmp.eq.s32.totalorder %s17, 0
    %p101 = por %p99, %p100
    %p102 = scmp.ne.s32.totalorder %s90, %s91
    %p103 = scmp.eq.s32.totalorder %s18, 1
    %p104 = por %p102, %p103
    %p106 = scmp.ne.s32.totalorder %s91, %s105
    %p107 = scmp.eq.s32.totalorder %s18, 0
    %p108 = por %p106, %p107
    %s109 = ssub.s32 %s12, %s19
    %p110 = scmp.eq.s32.totalorder %s109, 0
    %s112 = sadd.s32 %s111, 1
    %s113 = scalar_select %p110, %s111, %s112
    %p116 = pneg %p110
    %p117 = scmp.eq.s32.totalorder %s12, 1
    %p118 = por %p116, %p117
    %p119 = scmp.ne.s32.totalorder %s111, %s114
    %p120 = scmp.eq.s32.totalorder %s12, 0
    %p121 = por %p119, %p120
    %p122 = scmp.ne.s32.totalorder %s111, %s114
    %p123 = scmp.eq.s32.totalorder %s17, 1
    %p124 = por %p122, %p123
    %p125 = scmp.ne.s32.totalorder %s114, %s115
    %p126 = scmp.eq.s32.totalorder %s17, 0
    %p127 = por %p125, %p126
    %p128 = scmp.ne.s32.totalorder %s114, %s115
    %p129 = scmp.eq.s32.totalorder %s18, 1
    %p130 = por %p128, %p129
    %p132 = scmp.ne.s32.totalorder %s115, %s131
    %p133 = scmp.eq.s32.totalorder %s18, 0
    %p134 = por %p132, %p133
    %s135 = ssub.s32 %s12, %s19
    %p136 = scmp.eq.s32.totalorder %s135, 0
    %s138 = sadd.s32 %s137, 1
    %s139 = scalar_select %p136, %s137, %s138
    %p142 = pneg %p136
    %p143 = scmp.eq.s32.totalorder %s12, 1
    %p144 = por %p142, %p143
    %p145 = scmp.ne.s32.totalorder %s137, %s140
    %p146 = scmp.eq.s32.totalorder %s12, 0
    %p147 = por %p145, %p146
    %p148 = scmp.ne.s32.totalorder %s137, %s140
    %p149 = scmp.eq.s32.totalorder %s17, 1
    %p150 = por %p148, %p149
    %p151 = scmp.ne.s32.totalorder %s140, %s141
    %p152 = scmp.eq.s32.totalorder %s17, 0
    %p153 = por %p151, %p152
    %p154 = scmp.ne.s32.totalorder %s140, %s141
    %p155 = scmp.eq.s32.totalorder %s18, 1
    %p156 = por %p154, %p155
    %p158 = scmp.ne.s32.totalorder %s141, %s157
    %p159 = scmp.eq.s32.totalorder %s18, 0
    %p160 = por %p158, %p159
    %p161 = scmp.le.s32.totalorder 1, %s12
    %p162 = scmp.lt.s32.totalorder %s12, 3
    %p163 = pnand %p161, %p162
    %p164 = pneg %p163
    // Predicated region
    $region9: #{bottleneck_block_nhwc.5} parent=5 // pred_check
      _
    $region10: #{bottleneck_block_nhwc.5} parent=5 // pred_check_branch
      %166 = sbr.rel (%p163) target = $region12
    $region11: #{bottleneck_block_nhwc.5} parent=5 // pred_region
      %s167 = ssub.s32 %s12, 1
      // Predicated region
      $region13: #{bottleneck_block_nhwc.5} parent=11 // pred_check
        %p168 = pneg %p59
      $region14: #{bottleneck_block_nhwc.5} parent=11 // pred_check_branch
        %170 = sbr.rel (%p168) target = $region16
      $region15: #{bottleneck_block_nhwc.5} parent=11 // pred_region
        _
      $region16: #{bottleneck_block_nhwc.5} parent=11 // pred_fallthru
        _
      // Predicated region
      $region17: #{bottleneck_block_nhwc.5} parent=11 // pred_check
        %p171 = pneg %p80
      $region18: #{bottleneck_block_nhwc.5} parent=11 // pred_check_branch
        %173 = sbr.rel (%p171) target = $region20
      $region19: #{bottleneck_block_nhwc.5} parent=11 // pred_region
        _
      $region20: #{bottleneck_block_nhwc.5} parent=11 // pred_fallthru
        _
      // Predicated region
      $region21: #{bottleneck_block_nhwc.5} parent=11 // pred_check
        %p174 = pneg %p101
      $region22: #{bottleneck_block_nhwc.5} parent=11 // pred_check_branch
        %176 = sbr.rel (%p174) target = $region24
      $region23: #{bottleneck_block_nhwc.5} parent=11 // pred_region
        _
      $region24: #{bottleneck_block_nhwc.5} parent=11 // pred_fallthru
        _
    $region12: #{bottleneck_block_nhwc.5} parent=5 // pred_fallthru
      _
    %p177 = scmp.lt.s32.totalorder %s12, 2
    // Predicated region
    $region25: #{bottleneck_block_nhwc.5} parent=5 // pred_check
      %p178 = pneg %p177
    $region26: #{bottleneck_block_nhwc.5} parent=5 // pred_check_branch
      %180 = sbr.rel (%p178) target = $region28
    $region27: #{bottleneck_block_nhwc.5} parent=5 // pred_region
      // Predicated region
      $region29: #{bottleneck_block_nhwc.5} parent=27 // pred_check
        %p181 = pneg %p32
      $region30: #{bottleneck_block_nhwc.5} parent=27 // pred_check_branch
        %183 = sbr.rel (%p181) target = $region32
      $region31: #{bottleneck_block_nhwc.5} parent=27 // pred_region
        %p184 = scmp.lt.s32.totalorder %s12, 1
        %s185 = scalar_select %p184, %s12, 1
        %s186 = smul.addr %s185, 32
        %s187 = smul.addr %s186, 8
        %s188 = scalar_lea.vmem %s0, %s187
      $region32: #{bottleneck_block_nhwc.5} parent=27 // pred_fallthru
        _
    $region28: #{bottleneck_block_nhwc.5} parent=5 // pred_fallthru
      _
    %p189 = scmp.le.s32.totalorder 1, %s12
    %p190 = scmp.lt.s32.totalorder %s12, 3
    %p191 = pnand %p189, %p190
    %p192 = pneg %p191
    // Predicated region
    $region33: #{bottleneck_block_nhwc.5} parent=5 // pred_check
      _
    $region34: #{bottleneck_block_nhwc.5} parent=5 // pred_check_branch
      %194 = sbr.rel (%p191) target = $region36
    $region35: #{bottleneck_block_nhwc.5} parent=5 // pred_region
      %s195 = ssub.s32 %s12, 1
      %p196 = scmp.lt.s32.totalorder %s17, 1
      %s197 = scalar_select %p196, %s17, 1
      %s198 = smul.addr %s197, 32
      %s199 = smul.addr %s198, 8
      %s200 = scalar_lea.vmem %s0, %s199
      %p201 = pneg %p38
      %p202 = pneg %p35
      %p203 = pneg %p59
      %p204 = pneg %p56
      %p205 = pneg %p80
      %p206 = pneg %p77
      %p207 = pneg %p101
      %p208 = pneg %p98
      %p209 = pneg %p127
      %p210 = pneg %p124
      %p211 = scmp.lt.s32.totalorder %s17, 1
      %s212 = scalar_select %p211, %s17, 1
      %s213 = smul.addr %s212, 32
      %s214 = smul.addr %s213, 8
      %s215 = scalar_lea.vmem %s4, %s214
      %p216 = pneg %p153
      %p217 = pneg %p150
      %p218 = scmp.lt.s32.totalorder %s17, 1
      %s219 = scalar_select %p218, %s17, 1
      %s220 = smul.addr %s219, 2
      %s221 = scalar_lea.vmem %s5, %s220
      %p222 = scmp.lt.s32.totalorder %s17, 1
      %s223 = scalar_select %p222, %s17, 1
      %s224 = smul.addr %s223, 32
      %s225 = smul.addr %s224, 8
      %s226 = scalar_lea.vmem %s0, %s225
      %p227 = scmp.lt.s32.totalorder %s17, 1
      %s228 = scalar_select %p227, %s17, 1
      %s229 = smul.addr %s228, 32
      %s230 = smul.addr %s229, 8
      %s231 = scalar_lea.vmem %s4, %s230
      %p232 = scmp.lt.s32.totalorder %s17, 1
      %s233 = scalar_select %p232, %s17, 1
      %s234 = smul.addr %s233, 2
      %s235 = scalar_lea.vmem %s5, %s234
      %v237 = vld [vmem:[%s1] sm:$0x1]
      %v238 = vld [vmem:[%s2] sm:$0x1]
      %v239 = vld [vmem:[%s226] sm:$0xff]
      %v240 = vld [vmem:[%s226 + $0x8] sm:$0xff]
      %v241 = vld [vmem:[%s226 + $0x10] sm:$0xff]
      %v242 = vld [vmem:[%s226 + $0x18] sm:$0xff]
      %v243 = vld [vmem:[%s226 + $0x20] sm:$0xff]
      %v244 = vld [vmem:[%s226 + $0x28] sm:$0xff]
      %v245 = vld [vmem:[%s226 + $0x30] sm:$0xff]
      %v246 = vld [vmem:[%s226 + $0x38] sm:$0xff]
      %v247 = vld [vmem:[%s226 + $0x40] sm:$0xff]
      %v248 = vld [vmem:[%s226 + $0x48] sm:$0xff]
      %v249 = vld [vmem:[%s226 + $0x50] sm:$0xff]
      %v250 = vld [vmem:[%s226 + $0x58] sm:$0xff]
      %v251 = vld [vmem:[%s226 + $0x60] sm:$0xff]
      %v252 = vld [vmem:[%s226 + $0x68] sm:$0xff]
      %v253 = vld [vmem:[%s226 + $0x70] sm:$0xff]
      %v254 = vld [vmem:[%s226 + $0x78] sm:$0xff]
      %v255 = vld [vmem:[%s226 + $0x80] sm:$0xff]
      %v256 = vld [vmem:[%s226 + $0x88] sm:$0xff]
      %v257 = vld [vmem:[%s226 + $0x90] sm:$0xff]
      %v258 = vld [vmem:[%s226 + $0x98] sm:$0xff]
      %v259 = vld [vmem:[%s226 + $0xa0] sm:$0xff]
      %v260 = vld [vmem:[%s226 + $0xa8] sm:$0xff]
      %v261 = vld [vmem:[%s226 + $0xb0] sm:$0xff]
      %v262 = vld [vmem:[%s226 + $0xb8] sm:$0xff]
      %v263 = vld [vmem:[%s226 + $0xc0] sm:$0xff]
      %v264 = vld [vmem:[%s226 + $0xc8] sm:$0xff]
      %v265 = vld [vmem:[%s226 + $0xd0] sm:$0xff]
      %v266 = vld [vmem:[%s226 + $0xd8] sm:$0xff]
      %v267 = vld [vmem:[%s226 + $0xe0] sm:$0xff]
      %v268 = vld [vmem:[%s226 + $0xe8] sm:$0xff]
      %v269 = vld [vmem:[%s226 + $0xf0] sm:$0xff]
      %v270 = vld [vmem:[%s226 + $0xf8] sm:$0xff]
      %v272 = vlaneseq
      %v273 = vshrl.u32 %v272, 7
      %v274 = vsub.s32 0, %v273
      %v275 = vrot.slane %v237, %v274
      %v277 = vmul.f32 %v239, %v275
      %v278 = vmul.f32 %v240, %v275
      %v279 = vmul.f32 %v241, %v275
      %v280 = vmul.f32 %v242, %v275
      %v281 = vmul.f32 %v243, %v275
      %v282 = vmul.f32 %v244, %v275
      %v283 = vmul.f32 %v245, %v275
      %v284 = vmul.f32 %v246, %v275
      %v285 = vmul.f32 %v247, %v275
      %v286 = vmul.f32 %v248, %v275
      %v287 = vmul.f32 %v249, %v275
      %v288 = vmul.f32 %v250, %v275
      %v289 = vmul.f32 %v251, %v275
      %v290 = vmul.f32 %v252, %v275
      %v291 = vmul.f32 %v253, %v275
      %v292 = vmul.f32 %v254, %v275
      %v293 = vmul.f32 %v255, %v275
      %v294 = vmul.f32 %v256, %v275
      %v295 = vmul.f32 %v257, %v275
      %v296 = vmul.f32 %v258, %v275
      %v297 = vmul.f32 %v259, %v275
      %v298 = vmul.f32 %v260, %v275
      %v299 = vmul.f32 %v261, %v275
      %v300 = vmul.f32 %v262, %v275
      %v301 = vmul.f32 %v263, %v275
      %v302 = vmul.f32 %v264, %v275
      %v303 = vmul.f32 %v265, %v275
      %v304 = vmul.f32 %v266, %v275
      %v305 = vmul.f32 %v267, %v275
      %v306 = vmul.f32 %v268, %v275
      %v307 = vmul.f32 %v269, %v275
      %v308 = vmul.f32 %v270, %v275
      %v310 = vlaneseq
      %v311 = vshrl.u32 %v310, 7
      %v312 = vsub.s32 0, %v311
      %v313 = vrot.slane %v238, %v312
      %v315 = vadd.f32 %v277, %v313
      %v316 = vadd.f32 %v278, %v313
      %v317 = vadd.f32 %v279, %v313
      %v318 = vadd.f32 %v280, %v313
      %v319 = vadd.f32 %v281, %v313
      %v320 = vadd.f32 %v282, %v313
      %v321 = vadd.f32 %v283, %v313
      %v322 = vadd.f32 %v284, %v313
      %v323 = vadd.f32 %v285, %v313
      %v324 = vadd.f32 %v286, %v313
      %v325 = vadd.f32 %v287, %v313
      %v326 = vadd.f32 %v288, %v313
      %v327 = vadd.f32 %v289, %v313
      %v328 = vadd.f32 %v290, %v313
      %v329 = vadd.f32 %v291, %v313
      %v330 = vadd.f32 %v292, %v313
      %v331 = vadd.f32 %v293, %v313
      %v332 = vadd.f32 %v294, %v313
      %v333 = vadd.f32 %v295, %v313
      %v334 = vadd.f32 %v296, %v313
      %v335 = vadd.f32 %v297, %v313
      %v336 = vadd.f32 %v298, %v313
      %v337 = vadd.f32 %v299, %v313
      %v338 = vadd.f32 %v300, %v313
      %v339 = vadd.f32 %v301, %v313
      %v340 = vadd.f32 %v302, %v313
      %v341 = vadd.f32 %v303, %v313
      %v342 = vadd.f32 %v304, %v313
      %v343 = vadd.f32 %v305, %v313
      %v344 = vadd.f32 %v306, %v313
      %v345 = vadd.f32 %v307, %v313
      %v346 = vadd.f32 %v308, %v313
      %v347 = vmax.f32 %v315, 0.0
      %v348 = vmax.f32 %v316, 0.0
      %v349 = vmax.f32 %v317, 0.0
      %v350 = vmax.f32 %v318, 0.0
      %v351 = vmax.f32 %v319, 0.0
      %v352 = vmax.f32 %v320, 0.0
      %v353 = vmax.f32 %v321, 0.0
      %v354 = vmax.f32 %v322, 0.0
      %v355 = vmax.f32 %v323, 0.0
      %v356 = vmax.f32 %v324, 0.0
      %v357 = vmax.f32 %v325, 0.0
      %v358 = vmax.f32 %v326, 0.0
      %v359 = vmax.f32 %v327, 0.0
      %v360 = vmax.f32 %v328, 0.0
      %v361 = vmax.f32 %v329, 0.0
      %v362 = vmax.f32 %v330, 0.0
      %v363 = vmax.f32 %v331, 0.0
      %v364 = vmax.f32 %v332, 0.0
      %v365 = vmax.f32 %v333, 0.0
      %v366 = vmax.f32 %v334, 0.0
      %v367 = vmax.f32 %v335, 0.0
      %v368 = vmax.f32 %v336, 0.0
      %v369 = vmax.f32 %v337, 0.0
      %v370 = vmax.f32 %v338, 0.0
      %v371 = vmax.f32 %v339, 0.0
      %v372 = vmax.f32 %v340, 0.0
      %v373 = vmax.f32 %v341, 0.0
      %v374 = vmax.f32 %v342, 0.0
      %v375 = vmax.f32 %v343, 0.0
      %v376 = vmax.f32 %v344, 0.0
      %v377 = vmax.f32 %v345, 0.0
      %v378 = vmax.f32 %v346, 0.0
      %p379 = scmp.eq.s32.totalorder %s17, 0
      // Predicated region
      $region37: #{bottleneck_block_nhwc.5} parent=35 // pred_check
        %p380 = pneg %p379
      $region38: #{bottleneck_block_nhwc.5} parent=35 // pred_check_branch
        %382 = sbr.rel (%p380) target = $region40
      $region39: #{bottleneck_block_nhwc.5} parent=35 // pred_region
        %vm383 = vcmask 24576
        %384 = vst.msk [vmem:[#allocation2] sm:$0x1] %vm383, 0.0
        %385 = vst.msk [vmem:[#allocation2 + $0x18] sm:$0x1] %vm383, 0.0
        %386 = vst.msk [vmem:[#allocation2 + $0x30] sm:$0x1] %vm383, 0.0
        %387 = vst.msk [vmem:[#allocation2 + $0x48] sm:$0x1] %vm383, 0.0
        %388 = vst.msk [vmem:[#allocation2 + $0x60] sm:$0x1] %vm383, 0.0
        %389 = vst.msk [vmem:[#allocation2 + $0x78] sm:$0x1] %vm383, 0.0
        %390 = vst.msk [vmem:[#allocation2 + $0x90] sm:$0x1] %vm383, 0.0
        %391 = vst.msk [vmem:[#allocation2 + $0xa8] sm:$0x1] %vm383, 0.0
        %392 = vst.msk [vmem:[#allocation2 + $0xc0] sm:$0x1] %vm383, 0.0
        %393 = vst.msk [vmem:[#allocation2 + $0xd8] sm:$0x1] %vm383, 0.0
        %394 = vst.msk [vmem:[#allocation2 + $0xf0] sm:$0x1] %vm383, 0.0
        %395 = vst.msk [vmem:[#allocation2 + $0x108] sm:$0x1] %vm383, 0.0
        %396 = vst.msk [vmem:[#allocation2 + $0x120] sm:$0x1] %vm383, 0.0
        %397 = vst.msk [vmem:[#allocation2 + $0x138] sm:$0x1] %vm383, 0.0
        %398 = vst.msk [vmem:[#allocation2 + $0x150] sm:$0x1] %vm383, 0.0
        %399 = vst.msk [vmem:[#allocation2 + $0x168] sm:$0x1] %vm383, 0.0
        %400 = vst.msk [vmem:[#allocation2 + $0x11] sm:$0x1] %vm383, 0.0
        %401 = vst.msk [vmem:[#allocation2 + $0x29] sm:$0x1] %vm383, 0.0
        %402 = vst.msk [vmem:[#allocation2 + $0x41] sm:$0x1] %vm383, 0.0
        %403 = vst.msk [vmem:[#allocation2 + $0x59] sm:$0x1] %vm383, 0.0
        %404 = vst.msk [vmem:[#allocation2 + $0x71] sm:$0x1] %vm383, 0.0
        %405 = vst.msk [vmem:[#allocation2 + $0x89] sm:$0x1] %vm383, 0.0
        %406 = vst.msk [vmem:[#allocation2 + $0xa1] sm:$0x1] %vm383, 0.0
        %407 = vst.msk [vmem:[#allocation2 + $0xb9] sm:$0x1] %vm383, 0.0
        %408 = vst.msk [vmem:[#allocation2 + $0xd1] sm:$0x1] %vm383, 0.0
        %409 = vst.msk [vmem:[#allocation2 + $0xe9] sm:$0x1] %vm383, 0.0
        %410 = vst.msk [vmem:[#allocation2 + $0x101] sm:$0x1] %vm383, 0.0
        %411 = vst.msk [vmem:[#allocation2 + $0x119] sm:$0x1] %vm383, 0.0
        %412 = vst.msk [vmem:[#allocation2 + $0x131] sm:$0x1] %vm383, 0.0
        %413 = vst.msk [vmem:[#allocation2 + $0x149] sm:$0x1] %vm383, 0.0
        %414 = vst.msk [vmem:[#allocation2 + $0x161] sm:$0x1] %vm383, 0.0
        %415 = vst.msk [vmem:[#allocation2 + $0x179] sm:$0x1] %vm383, 0.0
      $region40: #{bottleneck_block_nhwc.5} parent=35 // pred_fallthru
        _
      %vm416 = vcmask 31744
      %417 = vst.msk [vmem:[#allocation2 + $0x1] sm:$0xff] %vm416, %v347
      %418 = vst.msk [vmem:[#allocation2 + $0x9] sm:$0xff] %vm416, %v348
      %419 = vst.msk [vmem:[#allocation2 + $0x19] sm:$0xff] %vm416, %v349
      %420 = vst.msk [vmem:[#allocation2 + $0x21] sm:$0xff] %vm416, %v350
      %421 = vst.msk [vmem:[#allocation2 + $0x31] sm:$0xff] %vm416, %v351
      %422 = vst.msk [vmem:[#allocation2 + $0x39] sm:$0xff] %vm416, %v352
      %423 = vst.msk [vmem:[#allocation2 + $0x49] sm:$0xff] %vm416, %v353
      %424 = vst.msk [vmem:[#allocation2 + $0x51] sm:$0xff] %vm416, %v354
      %425 = vst.msk [vmem:[#allocation2 + $0x61] sm:$0xff] %vm416, %v355
      %426 = vst.msk [vmem:[#allocation2 + $0x69] sm:$0xff] %vm416, %v356
      %427 = vst.msk [vmem:[#allocation2 + $0x79] sm:$0xff] %vm416, %v357
      %428 = vst.msk [vmem:[#allocation2 + $0x81] sm:$0xff] %vm416, %v358
      %429 = vst.msk [vmem:[#allocation2 + $0x91] sm:$0xff] %vm416, %v359
      %430 = vst.msk [vmem:[#allocation2 + $0x99] sm:$0xff] %vm416, %v360
      %431 = vst.msk [vmem:[#allocation2 + $0xa9] sm:$0xff] %vm416, %v361
      %432 = vst.msk [vmem:[#allocation2 + $0xb1] sm:$0xff] %vm416, %v362
      %433 = vst.msk [vmem:[#allocation2 + $0xc1] sm:$0xff] %vm416, %v363
      %434 = vst.msk [vmem:[#allocation2 + $0xc9] sm:$0xff] %vm416, %v364
      %435 = vst.msk [vmem:[#allocation2 + $0xd9] sm:$0xff] %vm416, %v365
      %436 = vst.msk [vmem:[#allocation2 + $0xe1] sm:$0xff] %vm416, %v366
      %437 = vst.msk [vmem:[#allocation2 + $0xf1] sm:$0xff] %vm416, %v367
      %438 = vst.msk [vmem:[#allocation2 + $0xf9] sm:$0xff] %vm416, %v368
      %439 = vst.msk [vmem:[#allocation2 + $0x109] sm:$0xff] %vm416, %v369
      %440 = vst.msk [vmem:[#allocation2 + $0x111] sm:$0xff] %vm416, %v370
      %441 = vst.msk [vmem:[#allocation2 + $0x121] sm:$0xff] %vm416, %v371
      %442 = vst.msk [vmem:[#allocation2 + $0x129] sm:$0xff] %vm416, %v372
      %443 = vst.msk [vmem:[#allocation2 + $0x139] sm:$0xff] %vm416, %v373
      %444 = vst.msk [vmem:[#allocation2 + $0x141] sm:$0xff] %vm416, %v374
      %445 = vst.msk [vmem:[#allocation2 + $0x151] sm:$0xff] %vm416, %v375
      %446 = vst.msk [vmem:[#allocation2 + $0x159] sm:$0xff] %vm416, %v376
      %447 = vst.msk [vmem:[#allocation2 + $0x169] sm:$0xff] %vm416, %v377
      %448 = vst.msk [vmem:[#allocation2 + $0x171] sm:$0xff] %vm416, %v378
      %v449 = vld [vmem:[#allocation2] sm:$0xff]
      %v450 = vld [vmem:[#allocation2 + $0x8] sm:$0xff]
      %v451 = vld [vmem:[#allocation2 + $0x18] sm:$0xff]
      %v452 = vld [vmem:[#allocation2 + $0x20] sm:$0xff]
      %v453 = vld [vmem:[#allocation2 + $0x30] sm:$0xff]
      %v454 = vld [vmem:[#allocation2 + $0x38] sm:$0xff]
      %v455 = vld [vmem:[#allocation2 + $0x48] sm:$0xff]
      %v456 = vld [vmem:[#allocation2 + $0x50] sm:$0xff]
      %v457 = vld [vmem:[#allocation2 + $0x60] sm:$0xff]
      %v458 = vld [vmem:[#allocation2 + $0x68] sm:$0xff]
      %v459 = vld [vmem:[#allocation2 + $0x78] sm:$0xff]
      %v460 = vld [vmem:[#allocation2 + $0x80] sm:$0xff]
      %v461 = vld [vmem:[#allocation2 + $0x90] sm:$0xff]
      %v462 = vld [vmem:[#allocation2 + $0x98] sm:$0xff]
      %v463 = vld [vmem:[#allocation2 + $0xa8] sm:$0xff]
      %v464 = vld [vmem:[#allocation2 + $0xb0] sm:$0xff]
      %v465 = vld [vmem:[#allocation2 + $0xc0] sm:$0xff]
      %v466 = vld [vmem:[#allocation2 + $0xc8] sm:$0xff]
      %v467 = vld [vmem:[#allocation2 + $0xd8] sm:$0xff]
      %v468 = vld [vmem:[#allocation2 + $0xe0] sm:$0xff]
      %v469 = vld [vmem:[#allocation2 + $0xf0] sm:$0xff]
      %v470 = vld [vmem:[#allocation2 + $0xf8] sm:$0xff]
      %v471 = vld [vmem:[#allocation2 + $0x108] sm:$0xff]
      %v472 = vld [vmem:[#allocation2 + $0x110] sm:$0xff]
      %v473 = vld [vmem:[#allocation2 + $0x120] sm:$0xff]
      %v474 = vld [vmem:[#allocation2 + $0x128] sm:$0xff]
      %v475 = vld [vmem:[#allocation2 + $0x138] sm:$0xff]
      %v476 = vld [vmem:[#allocation2 + $0x140] sm:$0xff]
      %v477 = vld [vmem:[#allocation2 + $0x150] sm:$0xff]
      %v478 = vld [vmem:[#allocation2 + $0x158] sm:$0xff]
      %v479 = vld [vmem:[#allocation2 + $0x168] sm:$0xff]
      %v480 = vld [vmem:[#allocation2 + $0x170] sm:$0xff]
      %v481 = vld [vmem:[#allocation2 + $0x2] sm:$0xff]
      %v482 = vld [vmem:[#allocation2 + $0xa] sm:$0xff]
      %v483 = vld [vmem:[#allocation2 + $0x1a] sm:$0xff]
      %v484 = vld [vmem:[#allocation2 + $0x22] sm:$0xff]
      %v485 = vld [vmem:[#allocation2 + $0x32] sm:$0xff]
      %v486 = vld [vmem:[#allocation2 + $0x3a] sm:$0xff]
      %v487 = vld [vmem:[#allocation2 + $0x4a] sm:$0xff]
      %v488 = vld [vmem:[#allocation2 + $0x52] sm:$0xff]
      %v489 = vld [vmem:[#allocation2 + $0x62] sm:$0xff]
      %v490 = vld [vmem:[#allocation2 + $0x6a] sm:$0xff]
      %v491 = vld [vmem:[#allocation2 + $0x7a] sm:$0xff]
      %v492 = vld [vmem:[#allocation2 + $0x82] sm:$0xff]
      %v493 = vld [vmem:[#allocation2 + $0x92] sm:$0xff]
      %v494 = vld [vmem:[#allocation2 + $0x9a] sm:$0xff]
      %v495 = vld [vmem:[#allocation2 + $0xaa] sm:$0xff]
      %v496 = vld [vmem:[#allocation2 + $0xb2] sm:$0xff]
      %v497 = vld [vmem:[#allocation2 + $0xc2] sm:$0xff]
      %v498 = vld [vmem:[#allocation2 + $0xca] sm:$0xff]
      %v499 = vld [vmem:[#allocation2 + $0xda] sm:$0xff]
      %v500 = vld [vmem:[#allocation2 + $0xe2] sm:$0xff]
      %v501 = vld [vmem:[#allocation2 + $0xf2] sm:$0xff]
      %v502 = vld [vmem:[#allocation2 + $0xfa] sm:$0xff]
      %v503 = vld [vmem:[#allocation2 + $0x10a] sm:$0xff]
      %v504 = vld [vmem:[#allocation2 + $0x112] sm:$0xff]
      %v505 = vld [vmem:[#allocation2 + $0x122] sm:$0xff]
      %v506 = vld [vmem:[#allocation2 + $0x12a] sm:$0xff]
      %v507 = vld [vmem:[#allocation2 + $0x13a] sm:$0xff]
      %v508 = vld [vmem:[#allocation2 + $0x142] sm:$0xff]
      %v509 = vld [vmem:[#allocation2 + $0x152] sm:$0xff]
      %v510 = vld [vmem:[#allocation2 + $0x15a] sm:$0xff]
      %v511 = vld [vmem:[#allocation2 + $0x16a] sm:$0xff]
      %v512 = vld [vmem:[#allocation2 + $0x172] sm:$0xff]
      %545 = vrot.lane.b32.xlu0 %v347, 4
      %v546 = vpop.permute.xlu0 %545
      %547 = vrot.lane.b32.xlu0 %v348, 4
      %v548 = vpop.permute.xlu0 %547
      %549 = vrot.lane.b32.xlu0 %v349, 4
      %v550 = vpop.permute.xlu0 %549
      %551 = vrot.lane.b32.xlu0 %v350, 4
      %v552 = vpop.permute.xlu0 %551
      %553 = vrot.lane.b32.xlu0 %v351, 4
      %v554 = vpop.permute.xlu0 %553
      %555 = vrot.lane.b32.xlu0 %v352, 4
      %v556 = vpop.permute.xlu0 %555
      %557 = vrot.lane.b32.xlu0 %v353, 4
      %v558 = vpop.permute.xlu0 %557
      %559 = vrot.lane.b32.xlu0 %v354, 4
      %v560 = vpop.permute.xlu0 %559
      %561 = vrot.lane.b32.xlu0 %v355, 4
      %v562 = vpop.permute.xlu0 %561
      %563 = vrot.lane.b32.xlu0 %v356, 4
      %v564 = vpop.permute.xlu0 %563
      %565 = vrot.lane.b32.xlu0 %v357, 4
      %v566 = vpop.permute.xlu0 %565
      %567 = vrot.lane.b32.xlu0 %v358, 4
      %v568 = vpop.permute.xlu0 %567
      %569 = vrot.lane.b32.xlu0 %v359, 4
      %v570 = vpop.permute.xlu0 %569
      %571 = vrot.lane.b32.xlu0 %v360, 4
      %v572 = vpop.permute.xlu0 %571
      %573 = vrot.lane.b32.xlu0 %v361, 4
      %v574 = vpop.permute.xlu0 %573
      %575 = vrot.lane.b32.xlu0 %v362, 4
      %v576 = vpop.permute.xlu0 %575
      %577 = vrot.lane.b32.xlu0 %v363, 4
      %v578 = vpop.permute.xlu0 %577
      %579 = vrot.lane.b32.xlu0 %v364, 4
      %v580 = vpop.permute.xlu0 %579
      %581 = vrot.lane.b32.xlu0 %v365, 4
      %v582 = vpop.permute.xlu0 %581
      %583 = vrot.lane.b32.xlu0 %v366, 4
      %v584 = vpop.permute.xlu0 %583
      %585 = vrot.lane.b32.xlu0 %v367, 4
      %v586 = vpop.permute.xlu0 %585
      %587 = vrot.lane.b32.xlu0 %v368, 4
      %v588 = vpop.permute.xlu0 %587
      %589 = vrot.lane.b32.xlu0 %v369, 4
      %v590 = vpop.permute.xlu0 %589
      %591 = vrot.lane.b32.xlu0 %v370, 4
      %v592 = vpop.permute.xlu0 %591
      %593 = vrot.lane.b32.xlu0 %v371, 4
      %v594 = vpop.permute.xlu0 %593
      %595 = vrot.lane.b32.xlu0 %v372, 4
      %v596 = vpop.permute.xlu0 %595
      %597 = vrot.lane.b32.xlu0 %v373, 4
      %v598 = vpop.permute.xlu0 %597
      %599 = vrot.lane.b32.xlu0 %v374, 4
      %v600 = vpop.permute.xlu0 %599
      %601 = vrot.lane.b32.xlu0 %v375, 4
      %v602 = vpop.permute.xlu0 %601
      %603 = vrot.lane.b32.xlu0 %v376, 4
      %v604 = vpop.permute.xlu0 %603
      %605 = vrot.lane.b32.xlu0 %v377, 4
      %v606 = vpop.permute.xlu0 %605
      %607 = vrot.lane.b32.xlu0 %v378, 4
      %v608 = vpop.permute.xlu0 %607
      %673 = vrot.lane.b32.xlu0 %v481, 8
      %v674 = vpop.permute.xlu0 %673
      %675 = vrot.lane.b32.xlu0 %v482, 8
      %v676 = vpop.permute.xlu0 %675
      %677 = vrot.lane.b32.xlu0 %v483, 8
      %v678 = vpop.permute.xlu0 %677
      %679 = vrot.lane.b32.xlu0 %v484, 8
      %v680 = vpop.permute.xlu0 %679
      %681 = vrot.lane.b32.xlu0 %v485, 8
      %v682 = vpop.permute.xlu0 %681
      %683 = vrot.lane.b32.xlu0 %v486, 8
      %v684 = vpop.permute.xlu0 %683
      %685 = vrot.lane.b32.xlu0 %v487, 8
      %v686 = vpop.permute.xlu0 %685
      %687 = vrot.lane.b32.xlu0 %v488, 8
      %v688 = vpop.permute.xlu0 %687
      %689 = vrot.lane.b32.xlu0 %v489, 8
      %v690 = vpop.permute.xlu0 %689
      %691 = vrot.lane.b32.xlu0 %v490, 8
      %v692 = vpop.permute.xlu0 %691
      %693 = vrot.lane.b32.xlu0 %v491, 8
      %v694 = vpop.permute.xlu0 %693
      %695 = vrot.lane.b32.xlu0 %v492, 8
      %v696 = vpop.permute.xlu0 %695
      %697 = vrot.lane.b32.xlu0 %v493, 8
      %v698 = vpop.permute.xlu0 %697
      %699 = vrot.lane.b32.xlu0 %v494, 8
      %v700 = vpop.permute.xlu0 %699
      %701 = vrot.lane.b32.xlu0 %v495, 8
      %v702 = vpop.permute.xlu0 %701
      %703 = vrot.lane.b32.xlu0 %v496, 8
      %v704 = vpop.permute.xlu0 %703
      %705 = vrot.lane.b32.xlu0 %v497, 8
      %v706 = vpop.permute.xlu0 %705
      %707 = vrot.lane.b32.xlu0 %v498, 8
      %v708 = vpop.permute.xlu0 %707
      %709 = vrot.lane.b32.xlu0 %v499, 8
      %v710 = vpop.permute.xlu0 %709
      %711 = vrot.lane.b32.xlu0 %v500, 8
      %v712 = vpop.permute.xlu0 %711
      %713 = vrot.lane.b32.xlu0 %v501, 8
      %v714 = vpop.permute.xlu0 %713
      %715 = vrot.lane.b32.xlu0 %v502, 8
      %v716 = vpop.permute.xlu0 %715
      %717 = vrot.lane.b32.xlu0 %v503, 8
      %v718 = vpop.permute.xlu0 %717
      %719 = vrot.lane.b32.xlu0 %v504, 8
      %v720 = vpop.permute.xlu0 %719
      %721 = vrot.lane.b32.xlu0 %v505, 8
      %v722 = vpop.permute.xlu0 %721
      %723 = vrot.lane.b32.xlu0 %v506, 8
      %v724 = vpop.permute.xlu0 %723
      %725 = vrot.lane.b32.xlu0 %v507, 8
      %v726 = vpop.permute.xlu0 %725
      %727 = vrot.lane.b32.xlu0 %v508, 8
      %v728 = vpop.permute.xlu0 %727
      %729 = vrot.lane.b32.xlu0 %v509, 8
      %v730 = vpop.permute.xlu0 %729
      %731 = vrot.lane.b32.xlu0 %v510, 8
      %v732 = vpop.permute.xlu0 %731
      %733 = vrot.lane.b32.xlu0 %v511, 8
      %v734 = vpop.permute.xlu0 %733
      %735 = vrot.lane.b32.xlu0 %v512, 8
      %v736 = vpop.permute.xlu0 %735
      %v769 = vsel %vm416, %v449, %v546
      %v770 = vsel %vm416, %v450, %v548
      %v771 = vsel %vm416, %v451, %v550
      %v772 = vsel %vm416, %v452, %v552
      %v773 = vsel %vm416, %v453, %v554
      %v774 = vsel %vm416, %v454, %v556
      %v775 = vsel %vm416, %v455, %v558
      %v776 = vsel %vm416, %v456, %v560
      %v777 = vsel %vm416, %v457, %v562
      %v778 = vsel %vm416, %v458, %v564
      %v779 = vsel %vm416, %v459, %v566
      %v780 = vsel %vm416, %v460, %v568
      %v781 = vsel %vm416, %v461, %v570
      %v782 = vsel %vm416, %v462, %v572
      %v783 = vsel %vm416, %v463, %v574
      %v784 = vsel %vm416, %v464, %v576
      %v785 = vsel %vm416, %v465, %v578
      %v786 = vsel %vm416, %v466, %v580
      %v787 = vsel %vm416, %v467, %v582
      %v788 = vsel %vm416, %v468, %v584
      %v789 = vsel %vm416, %v469, %v586
      %v790 = vsel %vm416, %v470, %v588
      %v791 = vsel %vm416, %v471, %v590
      %v792 = vsel %vm416, %v472, %v592
      %v793 = vsel %vm416, %v473, %v594
      %v794 = vsel %vm416, %v474, %v596
      %v795 = vsel %vm416, %v475, %v598
      %v796 = vsel %vm416, %v476, %v600
      %v797 = vsel %vm416, %v477, %v602
      %v798 = vsel %vm416, %v478, %v604
      %v799 = vsel %vm416, %v479, %v606
      %v800 = vsel %vm416, %v480, %v608
      %vm801 = vcmask 64512
      %v802 = vsel %vm801, %v769, %v674
      %v803 = vsel %vm801, %v770, %v676
      %v804 = vsel %vm801, %v771, %v678
      %v805 = vsel %vm801, %v772, %v680
      %v806 = vsel %vm801, %v773, %v682
      %v807 = vsel %vm801, %v774, %v684
      %v808 = vsel %vm801, %v775, %v686
      %v809 = vsel %vm801, %v776, %v688
      %v810 = vsel %vm801, %v777, %v690
      %v811 = vsel %vm801, %v778, %v692
      %v812 = vsel %vm801, %v779, %v694
      %v813 = vsel %vm801, %v780, %v696
      %v814 = vsel %vm801, %v781, %v698
      %v815 = vsel %vm801, %v782, %v700
      %v816 = vsel %vm801, %v783, %v702
      %v817 = vsel %vm801, %v784, %v704
      %v818 = vsel %vm801, %v785, %v706
      %v819 = vsel %vm801, %v786, %v708
      %v820 = vsel %vm801, %v787, %v710
      %v821 = vsel %vm801, %v788, %v712
      %v822 = vsel %vm801, %v789, %v714
      %v823 = vsel %vm801, %v790, %v716
      %v824 = vsel %vm801, %v791, %v718
      %v825 = vsel %vm801, %v792, %v720
      %v826 = vsel %vm801, %v793, %v722
      %v827 = vsel %vm801, %v794, %v724
      %v828 = vsel %vm801, %v795, %v726
      %v829 = vsel %vm801, %v796, %v728
      %v830 = vsel %vm801, %v797, %v730
      %v831 = vsel %vm801, %v798, %v732
      %v832 = vsel %vm801, %v799, %v734
      %v833 = vsel %vm801, %v800, %v736
      %v834 = vpack.c.bf16 %v803, %v802
      %v835 = vpack.c.bf16 %v805, %v804
      %v836 = vpack.c.bf16 %v807, %v806
      %v837 = vpack.c.bf16 %v809, %v808
      %v838 = vpack.c.bf16 %v811, %v810
      %v839 = vpack.c.bf16 %v813, %v812
      %v840 = vpack.c.bf16 %v815, %v814
      %v841 = vpack.c.bf16 %v817, %v816
      %v842 = vpack.c.bf16 %v819, %v818
      %v843 = vpack.c.bf16 %v821, %v820
      %v844 = vpack.c.bf16 %v823, %v822
      %v845 = vpack.c.bf16 %v825, %v824
      %v846 = vpack.c.bf16 %v827, %v826
      %v847 = vpack.c.bf16 %v829, %v828
      %v848 = vpack.c.bf16 %v831, %v830
      %v849 = vpack.c.bf16 %v833, %v832
      %v850 = vld [vmem:[%s3] sm:$0xf]
      %v851 = vld [vmem:[%s3 + $0x4] sm:$0x3]
      %s852 = scalar_lea.vmem %s3, 8
      %v853 = vld [vmem:[%s852] sm:$0xf]
      %v854 = vld [vmem:[%s852 + $0x4] sm:$0x3]
      %v857 = vunpack.c.l.b16 %v853
      %v858 = vunpack.c.l.b16 %v854
      %v859 = vpack.c.b16 %v858, %v857
      %vm860 = vcmask 97280
      %v862 = vsel %vm860, %v834, 0
      %v865 = vsel %vm860, %v835, 0
      %v868 = vsel %vm860, %v836, 0
      %v871 = vsel %vm860, %v837, 0
      %v874 = vsel %vm860, %v838, 0
      %v877 = vsel %vm860, %v839, 0
      %v880 = vsel %vm860, %v840, 0
      %v883 = vsel %vm860, %v841, 0
      %v886 = vsel %vm860, %v842, 0
      %v889 = vsel %vm860, %v843, 0
      %v892 = vsel %vm860, %v844, 0
      %v895 = vsel %vm860, %v845, 0
      %v898 = vsel %vm860, %v846, 0
      %v901 = vsel %vm860, %v847, 0
      %v904 = vsel %vm860, %v848, 0
      %v907 = vsel %vm860, %v849, 0
      %vm909 = vcmask 1045504
      %v911 = vsel %vm909, %v859, 0
      %913 = vmatprep.subr.bf16.mxu0 0
      %914 = vmatpush1.bf16.msra.mxu0 0
      %915 = vmatprep.subr.bf16.mxu0 0
      %916 = vmatpush1.bf16.msra.mxu0 0
      %917 = vmatprep.subr.bf16.mxu0 0
      %918 = vmatpush1.bf16.msra.mxu0 0
      %919 = vmatprep.subr.bf16.mxu0 0
      %920 = vmatpush1.bf16.msra.mxu0 0
      %921 = vmatprep.subr.bf16.mxu0 0
      %922 = vmatpush1.bf16.msra.mxu0 0
      %923 = vmatprep.subr.bf16.mxu0 0
      %924 = vmatpush1.bf16.msra.mxu0 0
      %925 = vmatprep.subr.bf16.mxu0 0
      %926 = vmatpush1.bf16.msra.mxu0 0
      %927 = vmatprep.subr.bf16.mxu0 0
      %928 = vmatpush1.bf16.msra.mxu0 %v911
      %929 = vmatprep.subr.bf16.mxu0 0
      %930 = vmatpush2.bf16.msra.mxu0 0
      %931 = vmatprep.subr.bf16.mxu0 0
      %932 = vmatpush2.bf16.msra.mxu0 0
      %933 = vmatprep.subr.bf16.mxu0 0
      %934 = vmatpush2.bf16.msra.mxu0 0
      %935 = vmatprep.subr.bf16.mxu0 0
      %936 = vmatpush2.bf16.msra.mxu0 0
      %937 = vmatprep.subr.bf16.mxu0 0
      %938 = vmatpush2.bf16.msra.mxu0 0
      %939 = vmatprep.subr.bf16.mxu0 0
      %940 = vmatpush2.bf16.msra.mxu0 0
      %941 = vmatprep.subr.bf16.mxu0 0
      %942 = vmatpush2.bf16.msra.mxu0 0
      %943 = vmatprep.subr.bf16.mxu0 0
      %944 = vmatpush2.bf16.msra.mxu0 0
      %945 = vmatprep.mubr.bf16.mxu0 0
      %946 = vmatmul.mubr.bf16.gmra.mxu0 %v862
      %v947 = vpop.f32.mrf.mxu0
      %v948 = vadd.f32 0.0, %v947
      %v949 = vpop.f32.mrf.mxu0
      %v950 = vpop.f32.mrf.mxu0
      %v951 = vadd.f32 0.0, %v950
      %v952 = vpop.f32.mrf.mxu0
      %953 = vmatprep.mubr.bf16.mxu0 0
      %954 = vmatmul.mubr.bf16.gmra.mxu0 %v865
      %v955 = vpop.f32.mrf.mxu0
      %v956 = vadd.f32 0.0, %v955
      %v957 = vpop.f32.mrf.mxu0
      %v958 = vpop.f32.mrf.mxu0
      %v959 = vadd.f32 0.0, %v958
      %v960 = vpop.f32.mrf.mxu0
      %961 = vmatprep.mubr.bf16.mxu0 0
      %962 = vmatmul.mubr.bf16.gmra.mxu0 %v868
      %v963 = vpop.f32.mrf.mxu0
      %v964 = vadd.f32 0.0, %v963
      %v965 = vpop.f32.mrf.mxu0
      %v966 = vpop.f32.mrf.mxu0
      %v967 = vadd.f32 0.0, %v966
      %v968 = vpop.f32.mrf.mxu0
      %969 = vmatprep.mubr.bf16.mxu0 0
      %970 = vmatmul.mubr.bf16.gmra.mxu0 %v871
      %v971 = vpop.f32.mrf.mxu0
      %v972 = vadd.f32 0.0, %v971
      %v973 = vpop.f32.mrf.mxu0
      %v974 = vpop.f32.mrf.mxu0
      %v975 = vadd.f32 0.0, %v974
      %v976 = vpop.f32.mrf.mxu0
      %977 = vmatprep.mubr.bf16.mxu0 0
      %978 = vmatmul.mubr.bf16.gmra.mxu0 %v874
      %v979 = vpop.f32.mrf.mxu0
      %v980 = vadd.f32 0.0, %v979
      %v981 = vpop.f32.mrf.mxu0
      %v982 = vpop.f32.mrf.mxu0
      %v983 = vadd.f32 0.0, %v982
      %v984 = vpop.f32.mrf.mxu0
      %985 = vmatprep.mubr.bf16.mxu0 0
      %986 = vmatmul.mubr.bf16.gmra.mxu0 %v877
      %v987 = vpop.f32.mrf.mxu0
      %v988 = vadd.f32 0.0, %v987
      %v989 = vpop.f32.mrf.mxu0
      %v990 = vpop.f32.mrf.mxu0
      %v991 = vadd.f32 0.0, %v990
      %v992 = vpop.f32.mrf.mxu0
      %993 = vmatprep.mubr.bf16.mxu0 0
      %994 = vmatmul.mubr.bf16.gmra.mxu0 %v880
      %v995 = vpop.f32.mrf.mxu0
      %v996 = vadd.f32 0.0, %v995
      %v997 = vpop.f32.mrf.mxu0
      %v998 = vpop.f32.mrf.mxu0
      %v999 = vadd.f32 0.0, %v998
      %v1000 = vpop.f32.mrf.mxu0
      %1001 = vmatprep.mubr.bf16.mxu0 0
      %1002 = vmatmul.mubr.bf16.gmra.mxu0 %v883
      %v1003 = vpop.f32.mrf.mxu0
      %v1004 = vadd.f32 0.0, %v1003
      %v1005 = vpop.f32.mrf.mxu0
      %v1006 = vpop.f32.mrf.mxu0
      %v1007 = vadd.f32 0.0, %v1006
      %v1008 = vpop.f32.mrf.mxu0
      %1009 = vmatprep.mubr.bf16.mxu0 0
      %1010 = vmatmul.mubr.bf16.gmra.mxu0 %v886
      %v1011 = vpop.f32.mrf.mxu0
      %v1012 = vadd.f32 0.0, %v1011
      %v1013 = vpop.f32.mrf.mxu0
      %v1014 = vpop.f32.mrf.mxu0
      %v1015 = vadd.f32 0.0, %v1014
      %v1016 = vpop.f32.mrf.mxu0
      %1017 = vmatprep.mubr.bf16.mxu0 0
      %1018 = vmatmul.mubr.bf16.gmra.mxu0 %v889
      %v1019 = vpop.f32.mrf.mxu0
      %v1020 = vadd.f32 0.0, %v1019
      %v1021 = vpop.f32.mrf.mxu0
      %v1022 = vpop.f32.mrf.mxu0
      %v1023 = vadd.f32 0.0, %v1022
      %v1024 = vpop.f32.mrf.mxu0
      %1025 = vmatprep.mubr.bf16.mxu0 0
      %1026 = vmatmul.mubr.bf16.gmra.mxu0 %v892
      %v1027 = vpop.f32.mrf.mxu0
      %v1028 = vadd.f32 0.0, %v1027
      %v1029 = vpop.f32.mrf.mxu0
      %v1030 = vpop.f32.mrf.mxu0
      %v1031 = vadd.f32 0.0, %v1030
      %v1032 = vpop.f32.mrf.mxu0
      %1033 = vmatprep.mubr.bf16.mxu0 0
      %1034 = vmatmul.mubr.bf16.gmra.mxu0 %v895
      %v1035 = vpop.f32.mrf.mxu0
      %v1036 = vadd.f32 0.0, %v1035
      %v1037 = vpop.f32.mrf.mxu0
      %v1038 = vpop.f32.mrf.mxu0
      %v1039 = vadd.f32 0.0, %v1038
      %v1040 = vpop.f32.mrf.mxu0
      %1041 = vmatprep.mubr.bf16.mxu0 0
      %1042 = vmatmul.mubr.bf16.gmra.mxu0 %v898
      %v1043 = vpop.f32.mrf.mxu0
      %v1044 = vadd.f32 0.0, %v1043
      %v1045 = vpop.f32.mrf.mxu0
      %v1046 = vpop.f32.mrf.mxu0
      %v1047 = vadd.f32 0.0, %v1046
      %v1048 = vpop.f32.mrf.mxu0
      %1049 = vmatprep.mubr.bf16.mxu0 0
      %1050 = vmatmul.mubr.bf16.gmra.mxu0 %v901
      %v1051 = vpop.f32.mrf.mxu0
      %v1052 = vadd.f32 0.0, %v1051
      %v1053 = vpop.f32.mrf.mxu0
      %v1054 = vpop.f32.mrf.mxu0
      %v1055 = vadd.f32 0.0, %v1054
      %v1056 = vpop.f32.mrf.mxu0
      %1057 = vmatprep.mubr.bf16.mxu0 0
      %1058 = vmatmul.mubr.bf16.gmra.mxu0 %v904
      %v1059 = vpop.f32.mrf.mxu0
      %v1060 = vadd.f32 0.0, %v1059
      %v1061 = vpop.f32.mrf.mxu0
      %v1062 = vpop.f32.mrf.mxu0
      %v1063 = vadd.f32 0.0, %v1062
      %v1064 = vpop.f32.mrf.mxu0
      %1065 = vmatprep.mubr.bf16.mxu0 0
      %1066 = vmatmul.mubr.bf16.gmra.mxu0 %v907
      %v1067 = vpop.f32.mrf.mxu0
      %v1068 = vadd.f32 0.0, %v1067
      %v1069 = vpop.f32.mrf.mxu0
      %v1070 = vpop.f32.mrf.mxu0
      %v1071 = vadd.f32 0.0, %v1070
      %v1072 = vpop.f32.mrf.mxu0
      %1073 = vdwg.mxu0
      %v1076 = vunpack.c.l.b16 %v850
      %v1077 = vunpack.c.l.b16 %v851
      %v1078 = vpack.c.b16 %v1077, %v1076
      %v1080 = vsel %vm860, 0, 0
      %v1083 = vsel %vm909, %v1078, 0
      %1085 = vmatprep.subr.bf16.mxu0 0
      %1086 = vmatpush1.bf16.msra.mxu0 0
      %1087 = vmatprep.subr.bf16.mxu0 0
      %1088 = vmatpush1.bf16.msra.mxu0 0
      %1089 = vmatprep.subr.bf16.mxu0 0
      %1090 = vmatpush1.bf16.msra.mxu0 0
      %1091 = vmatprep.subr.bf16.mxu0 0
      %1092 = vmatpush1.bf16.msra.mxu0 0
      %1093 = vmatprep.subr.bf16.mxu0 0
      %1094 = vmatpush1.bf16.msra.mxu0 0
      %1095 = vmatprep.subr.bf16.mxu0 0
      %1096 = vmatpush1.bf16.msra.mxu0 0
      %1097 = vmatprep.subr.bf16.mxu0 0
      %1098 = vmatpush1.bf16.msra.mxu0 0
      %1099 = vmatprep.subr.bf16.mxu0 0
      %1100 = vmatpush1.bf16.msra.mxu0 %v1083
      %1101 = vmatprep.subr.bf16.mxu0 0
      %1102 = vmatpush2.bf16.msra.mxu0 0
      %1103 = vmatprep.subr.bf16.mxu0 0
      %1104 = vmatpush2.bf16.msra.mxu0 0
      %1105 = vmatprep.subr.bf16.mxu0 0
      %1106 = vmatpush2.bf16.msra.mxu0 0
      %1107 = vmatprep.subr.bf16.mxu0 0
      %1108 = vmatpush2.bf16.msra.mxu0 0
      %1109 = vmatprep.subr.bf16.mxu0 0
      %1110 = vmatpush2.bf16.msra.mxu0 0
      %1111 = vmatprep.subr.bf16.mxu0 0
      %1112 = vmatpush2.bf16.msra.mxu0 0
      %1113 = vmatprep.subr.bf16.mxu0 0
      %1114 = vmatpush2.bf16.msra.mxu0 0
      %1115 = vmatprep.subr.bf16.mxu0 0
      %1116 = vmatpush2.bf16.msra.mxu0 0
      %1117 = vmatprep.mubr.bf16.mxu0 0
      %1118 = vmatmul.mubr.bf16.gmra.mxu0 %v1080
      %v1119 = vpop.f32.mrf.mxu0
      %v1120 = vadd.f32 %v948, %v1119
      %v1121 = vpop.f32.mrf.mxu0
      %v1122 = vpop.f32.mrf.mxu0
      %v1123 = vadd.f32 %v951, %v1122
      %v1124 = vpop.f32.mrf.mxu0
      %1125 = vmatprep.mubr.bf16.mxu0 0
      %1126 = vmatmul.mubr.bf16.gmra.mxu0 %v862
      %v1127 = vpop.f32.mrf.mxu0
      %v1128 = vadd.f32 %v956, %v1127
      %v1129 = vpop.f32.mrf.mxu0
      %v1130 = vpop.f32.mrf.mxu0
      %v1131 = vadd.f32 %v959, %v1130
      %v1132 = vpop.f32.mrf.mxu0
      %1133 = vmatprep.mubr.bf16.mxu0 0
      %1134 = vmatmul.mubr.bf16.gmra.mxu0 %v865
      %v1135 = vpop.f32.mrf.mxu0
      %v1136 = vadd.f32 %v964, %v1135
      %v1137 = vpop.f32.mrf.mxu0
      %v1138 = vpop.f32.mrf.mxu0
      %v1139 = vadd.f32 %v967, %v1138
      %v1140 = vpop.f32.mrf.mxu0
      %1141 = vmatprep.mubr.bf16.mxu0 0
      %1142 = vmatmul.mubr.bf16.gmra.mxu0 %v868
      %v1143 = vpop.f32.mrf.mxu0
      %v1144 = vadd.f32 %v972, %v1143
      %v1145 = vpop.f32.mrf.mxu0
      %v1146 = vpop.f32.mrf.mxu0
      %v1147 = vadd.f32 %v975, %v1146
      %v1148 = vpop.f32.mrf.mxu0
      %1149 = vmatprep.mubr.bf16.mxu0 0
      %1150 = vmatmul.mubr.bf16.gmra.mxu0 %v871
      %v1151 = vpop.f32.mrf.mxu0
      %v1152 = vadd.f32 %v980, %v1151
      %v1153 = vpop.f32.mrf.mxu0
      %v1154 = vpop.f32.mrf.mxu0
      %v1155 = vadd.f32 %v983, %v1154
      %v1156 = vpop.f32.mrf.mxu0
      %1157 = vmatprep.mubr.bf16.mxu0 0
      %1158 = vmatmul.mubr.bf16.gmra.mxu0 %v874
      %v1159 = vpop.f32.mrf.mxu0
      %v1160 = vadd.f32 %v988, %v1159
      %v1161 = vpop.f32.mrf.mxu0
      %v1162 = vpop.f32.mrf.mxu0
      %v1163 = vadd.f32 %v991, %v1162
      %v1164 = vpop.f32.mrf.mxu0
      %1165 = vmatprep.mubr.bf16.mxu0 0
      %1166 = vmatmul.mubr.bf16.gmra.mxu0 %v877
      %v1167 = vpop.f32.mrf.mxu0
      %v1168 = vadd.f32 %v996, %v1167
      %v1169 = vpop.f32.mrf.mxu0
      %v1170 = vpop.f32.mrf.mxu0
      %v1171 = vadd.f32 %v999, %v1170
      %v1172 = vpop.f32.mrf.mxu0
      %1173 = vmatprep.mubr.bf16.mxu0 0
      %1174 = vmatmul.mubr.bf16.gmra.mxu0 %v880
      %v1175 = vpop.f32.mrf.mxu0
      %v1176 = vadd.f32 %v1004, %v1175
      %v1177 = vpop.f32.mrf.mxu0
      %v1178 = vpop.f32.mrf.mxu0
      %v1179 = vadd.f32 %v1007, %v1178
      %v1180 = vpop.f32.mrf.mxu0
      %1181 = vmatprep.mubr.bf16.mxu0 0
      %1182 = vmatmul.mubr.bf16.gmra.mxu0 %v883
      %v1183 = vpop.f32.mrf.mxu0
      %v1184 = vadd.f32 %v1012, %v1183
      %v1185 = vpop.f32.mrf.mxu0
      %v1186 = vpop.f32.mrf.mxu0
      %v1187 = vadd.f32 %v1015, %v1186
      %v1188 = vpop.f32.mrf.mxu0
      %1189 = vmatprep.mubr.bf16.mxu0 0
      %1190 = vmatmul.mubr.bf16.gmra.mxu0 %v886
      %v1191 = vpop.f32.mrf.mxu0
      %v1192 = vadd.f32 %v1020, %v1191
      %v1193 = vpop.f32.mrf.mxu0
      %v1194 = vpop.f32.mrf.mxu0
      %v1195 = vadd.f32 %v1023, %v1194
      %v1196 = vpop.f32.mrf.mxu0
      %1197 = vmatprep.mubr.bf16.mxu0 0
      %1198 = vmatmul.mubr.bf16.gmra.mxu0 %v889
      %v1199 = vpop.f32.mrf.mxu0
      %v1200 = vadd.f32 %v1028, %v1199
      %v1201 = vpop.f32.mrf.mxu0
      %v1202 = vpop.f32.mrf.mxu0
      %v1203 = vadd.f32 %v1031, %v1202
      %v1204 = vpop.f32.mrf.mxu0
      %1205 = vmatprep.mubr.bf16.mxu0 0
      %1206 = vmatmul.mubr.bf16.gmra.mxu0 %v892
      %v1207 = vpop.f32.mrf.mxu0
      %v1208 = vadd.f32 %v1036, %v1207
      %v1209 = vpop.f32.mrf.mxu0
      %v1210 = vpop.f32.mrf.mxu0
      %v1211 = vadd.f32 %v1039, %v1210
      %v1212 = vpop.f32.mrf.mxu0
      %1213 = vmatprep.mubr.bf16.mxu0 0
      %1214 = vmatmul.mubr.bf16.gmra.mxu0 %v895
      %v1215 = vpop.f32.mrf.mxu0
      %v1216 = vadd.f32 %v1044, %v1215
      %v1217 = vpop.f32.mrf.mxu0
      %v1218 = vpop.f32.mrf.mxu0
      %v1219 = vadd.f32 %v1047, %v1218
      %v1220 = vpop.f32.mrf.mxu0
      %1221 = vmatprep.mubr.bf16.mxu0 0
      %1222 = vmatmul.mubr.bf16.gmra.mxu0 %v898
      %v1223 = vpop.f32.mrf.mxu0
      %v1224 = vadd.f32 %v1052, %v1223
      %v1225 = vpop.f32.mrf.mxu0
      %v1226 = vpop.f32.mrf.mxu0
      %v1227 = vadd.f32 %v1055, %v1226
      %v1228 = vpop.f32.mrf.mxu0
      %1229 = vmatprep.mubr.bf16.mxu0 0
      %1230 = vmatmul.mubr.bf16.gmra.mxu0 %v901
      %v1231 = vpop.f32.mrf.mxu0
      %v1232 = vadd.f32 %v1060, %v1231
      %v1233 = vpop.f32.mrf.mxu0
      %v1234 = vpop.f32.mrf.mxu0
      %v1235 = vadd.f32 %v1063, %v1234
      %v1236 = vpop.f32.mrf.mxu0
      %1237 = vmatprep.mubr.bf16.mxu0 0
      %1238 = vmatmul.mubr.bf16.gmra.mxu0 %v904
      %v1239 = vpop.f32.mrf.mxu0
      %v1240 = vadd.f32 %v1068, %v1239
      %v1241 = vpop.f32.mrf.mxu0
      %v1242 = vpop.f32.mrf.mxu0
      %v1243 = vadd.f32 %v1071, %v1242
      %v1244 = vpop.f32.mrf.mxu0
      %1245 = vdwg.mxu0
      %s1246 = scalar_lea.vmem %s3, 16
      %v1247 = vld [vmem:[%s1246] sm:$0xf]
      %v1248 = vld [vmem:[%s1246 + $0x4] sm:$0x3]
      %v1251 = vunpack.c.l.b16 %v1247
      %v1252 = vunpack.c.l.b16 %v1248
      %v1253 = vpack.c.b16 %v1252, %v1251
      %v1255 = vsel %vm909, %v1253, 0
      %1257 = vmatprep.subr.bf16.mxu0 0
      %1258 = vmatpush1.bf16.msra.mxu0 0
      %1259 = vmatprep.subr.bf16.mxu0 0
      %1260 = vmatpush1.bf16.msra.mxu0 0
      %1261 = vmatprep.subr.bf16.mxu0 0
      %1262 = vmatpush1.bf16.msra.mxu0 0
      %1263 = vmatprep.subr.bf16.mxu0 0
      %1264 = vmatpush1.bf16.msra.mxu0 0
      %1265 = vmatprep.subr.bf16.mxu0 0
      %1266 = vmatpush1.bf16.msra.mxu0 0
      %1267 = vmatprep.subr.bf16.mxu0 0
      %1268 = vmatpush1.bf16.msra.mxu0 0
      %1269 = vmatprep.subr.bf16.mxu0 0
      %1270 = vmatpush1.bf16.msra.mxu0 0
      %1271 = vmatprep.subr.bf16.mxu0 0
      %1272 = vmatpush1.bf16.msra.mxu0 %v1255
      %1273 = vmatprep.subr.bf16.mxu0 0
      %1274 = vmatpush2.bf16.msra.mxu0 0
      %1275 = vmatprep.subr.bf16.mxu0 0
      %1276 = vmatpush2.bf16.msra.mxu0 0
      %1277 = vmatprep.subr.bf16.mxu0 0
      %1278 = vmatpush2.bf16.msra.mxu0 0
      %1279 = vmatprep.subr.bf16.mxu0 0
      %1280 = vmatpush2.bf16.msra.mxu0 0
      %1281 = vmatprep.subr.bf16.mxu0 0
      %1282 = vmatpush2.bf16.msra.mxu0 0
      %1283 = vmatprep.subr.bf16.mxu0 0
      %1284 = vmatpush2.bf16.msra.mxu0 0
      %1285 = vmatprep.subr.bf16.mxu0 0
      %1286 = vmatpush2.bf16.msra.mxu0 0
      %1287 = vmatprep.subr.bf16.mxu0 0
      %1288 = vmatpush2.bf16.msra.mxu0 0
      %1289 = vmatprep.mubr.bf16.mxu0 0
      %1290 = vmatmul.mubr.bf16.gmra.mxu0 %v865
      %v1291 = vpop.f32.mrf.mxu0
      %v1292 = vadd.f32 0.0, %v1291
      %v1293 = vpop.f32.mrf.mxu0
      %v1294 = vpop.f32.mrf.mxu0
      %v1295 = vadd.f32 0.0, %v1294
      %v1296 = vpop.f32.mrf.mxu0
      %1297 = vmatprep.mubr.bf16.mxu0 0
      %1298 = vmatmul.mubr.bf16.gmra.mxu0 %v868
      %v1299 = vpop.f32.mrf.mxu0
      %v1300 = vadd.f32 0.0, %v1299
      %v1301 = vpop.f32.mrf.mxu0
      %v1302 = vpop.f32.mrf.mxu0
      %v1303 = vadd.f32 0.0, %v1302
      %v1304 = vpop.f32.mrf.mxu0
      %1305 = vmatprep.mubr.bf16.mxu0 0
      %1306 = vmatmul.mubr.bf16.gmra.mxu0 %v871
      %v1307 = vpop.f32.mrf.mxu0
      %v1308 = vadd.f32 0.0, %v1307
      %v1309 = vpop.f32.mrf.mxu0
      %v1310 = vpop.f32.mrf.mxu0
      %v1311 = vadd.f32 0.0, %v1310
      %v1312 = vpop.f32.mrf.mxu0
      %1313 = vmatprep.mubr.bf16.mxu0 0
      %1314 = vmatmul.mubr.bf16.gmra.mxu0 %v874
      %v1315 = vpop.f32.mrf.mxu0
      %v1316 = vadd.f32 0.0, %v1315
      %v1317 = vpop.f32.mrf.mxu0
      %v1318 = vpop.f32.mrf.mxu0
      %v1319 = vadd.f32 0.0, %v1318
      %v1320 = vpop.f32.mrf.mxu0
      %1321 = vmatprep.mubr.bf16.mxu0 0
      %1322 = vmatmul.mubr.bf16.gmra.mxu0 %v877
      %v1323 = vpop.f32.mrf.mxu0
      %v1324 = vadd.f32 0.0, %v1323
      %v1325 = vpop.f32.mrf.mxu0
      %v1326 = vpop.f32.mrf.mxu0
      %v1327 = vadd.f32 0.0, %v1326
      %v1328 = vpop.f32.mrf.mxu0
      %1329 = vmatprep.mubr.bf16.mxu0 0
      %1330 = vmatmul.mubr.bf16.gmra.mxu0 %v880
      %v1331 = vpop.f32.mrf.mxu0
      %v1332 = vadd.f32 0.0, %v1331
      %v1333 = vpop.f32.mrf.mxu0
      %v1334 = vpop.f32.mrf.mxu0
      %v1335 = vadd.f32 0.0, %v1334
      %v1336 = vpop.f32.mrf.mxu0
      %1337 = vmatprep.mubr.bf16.mxu0 0
      %1338 = vmatmul.mubr.bf16.gmra.mxu0 %v883
      %v1339 = vpop.f32.mrf.mxu0
      %v1340 = vadd.f32 0.0, %v1339
      %v1341 = vpop.f32.mrf.mxu0
      %v1342 = vpop.f32.mrf.mxu0
      %v1343 = vadd.f32 0.0, %v1342
      %v1344 = vpop.f32.mrf.mxu0
      %1345 = vmatprep.mubr.bf16.mxu0 0
      %1346 = vmatmul.mubr.bf16.gmra.mxu0 %v886
      %v1347 = vpop.f32.mrf.mxu0
      %v1348 = vadd.f32 0.0, %v1347
      %v1349 = vpop.f32.mrf.mxu0
      %v1350 = vpop.f32.mrf.mxu0
      %v1351 = vadd.f32 0.0, %v1350
      %v1352 = vpop.f32.mrf.mxu0
      %1353 = vmatprep.mubr.bf16.mxu0 0
      %1354 = vmatmul.mubr.bf16.gmra.mxu0 %v889
      %v1355 = vpop.f32.mrf.mxu0
      %v1356 = vadd.f32 0.0, %v1355
      %v1357 = vpop.f32.mrf.mxu0
      %v1358 = vpop.f32.mrf.mxu0
      %v1359 = vadd.f32 0.0, %v1358
      %v1360 = vpop.f32.mrf.mxu0
      %1361 = vmatprep.mubr.bf16.mxu0 0
      %1362 = vmatmul.mubr.bf16.gmra.mxu0 %v892
      %v1363 = vpop.f32.mrf.mxu0
      %v1364 = vadd.f32 0.0, %v1363
      %v1365 = vpop.f32.mrf.mxu0
      %v1366 = vpop.f32.mrf.mxu0
      %v1367 = vadd.f32 0.0, %v1366
      %v1368 = vpop.f32.mrf.mxu0
      %1369 = vmatprep.mubr.bf16.mxu0 0
      %1370 = vmatmul.mubr.bf16.gmra.mxu0 %v895
      %v1371 = vpop.f32.mrf.mxu0
      %v1372 = vadd.f32 0.0, %v1371
      %v1373 = vpop.f32.mrf.mxu0
      %v1374 = vpop.f32.mrf.mxu0
      %v1375 = vadd.f32 0.0, %v1374
      %v1376 = vpop.f32.mrf.mxu0
      %1377 = vmatprep.mubr.bf16.mxu0 0
      %1378 = vmatmul.mubr.bf16.gmra.mxu0 %v898
      %v1379 = vpop.f32.mrf.mxu0
      %v1380 = vadd.f32 0.0, %v1379
      %v1381 = vpop.f32.mrf.mxu0
      %v1382 = vpop.f32.mrf.mxu0
      %v1383 = vadd.f32 0.0, %v1382
      %v1384 = vpop.f32.mrf.mxu0
      %1385 = vmatprep.mubr.bf16.mxu0 0
      %1386 = vmatmul.mubr.bf16.gmra.mxu0 %v901
      %v1387 = vpop.f32.mrf.mxu0
      %v1388 = vadd.f32 0.0, %v1387
      %v1389 = vpop.f32.mrf.mxu0
      %v1390 = vpop.f32.mrf.mxu0
      %v1391 = vadd.f32 0.0, %v1390
      %v1392 = vpop.f32.mrf.mxu0
      %1393 = vmatprep.mubr.bf16.mxu0 0
      %1394 = vmatmul.mubr.bf16.gmra.mxu0 %v904
      %v1395 = vpop.f32.mrf.mxu0
      %v1396 = vadd.f32 0.0, %v1395
      %v1397 = vpop.f32.mrf.mxu0
      %v1398 = vpop.f32.mrf.mxu0
      %v1399 = vadd.f32 0.0, %v1398
      %v1400 = vpop.f32.mrf.mxu0
      %1401 = vmatprep.mubr.bf16.mxu0 0
      %1402 = vmatmul.mubr.bf16.gmra.mxu0 %v907
      %v1403 = vpop.f32.mrf.mxu0
      %v1404 = vadd.f32 0.0, %v1403
      %v1405 = vpop.f32.mrf.mxu0
      %v1406 = vpop.f32.mrf.mxu0
      %v1407 = vadd.f32 0.0, %v1406
      %v1408 = vpop.f32.mrf.mxu0
      %1409 = vmatprep.mubr.bf16.mxu0 0
      %1410 = vmatmul.mubr.bf16.gmra.mxu0 %v1080
      %v1411 = vpop.f32.mrf.mxu0
      %v1412 = vadd.f32 0.0, %v1411
      %v1413 = vpop.f32.mrf.mxu0
      %v1414 = vpop.f32.mrf.mxu0
      %v1415 = vadd.f32 0.0, %v1414
      %v1416 = vpop.f32.mrf.mxu0
      %1417 = vdwg.mxu0
      %v1418 = vadd.f32 %v1120, %v1292
      %v1419 = vadd.f32 %v1123, %v1295
      %v1420 = vadd.f32 %v1128, %v1300
      %v1421 = vadd.f32 %v1131, %v1303
      %v1422 = vadd.f32 %v1136, %v1308
      %v1423 = vadd.f32 %v1139, %v1311
      %v1424 = vadd.f32 %v1144, %v1316
      %v1425 = vadd.f32 %v1147, %v1319
      %v1426 = vadd.f32 %v1152, %v1324
      %v1427 = vadd.f32 %v1155, %v1327
      %v1428 = vadd.f32 %v1160, %v1332
      %v1429 = vadd.f32 %v1163, %v1335
      %v1430 = vadd.f32 %v1168, %v1340
      %v1431 = vadd.f32 %v1171, %v1343
      %v1432 = vadd.f32 %v1176, %v1348
      %v1433 = vadd.f32 %v1179, %v1351
      %v1434 = vadd.f32 %v1184, %v1356
      %v1435 = vadd.f32 %v1187, %v1359
      %v1436 = vadd.f32 %v1192, %v1364
      %v1437 = vadd.f32 %v1195, %v1367
      %v1438 = vadd.f32 %v1200, %v1372
      %v1439 = vadd.f32 %v1203, %v1375
      %v1440 = vadd.f32 %v1208, %v1380
      %v1441 = vadd.f32 %v1211, %v1383
      %v1442 = vadd.f32 %v1216, %v1388
      %v1443 = vadd.f32 %v1219, %v1391
      %v1444 = vadd.f32 %v1224, %v1396
      %v1445 = vadd.f32 %v1227, %v1399
      %v1446 = vadd.f32 %v1232, %v1404
      %v1447 = vadd.f32 %v1235, %v1407
      %v1448 = vadd.f32 %v1240, %v1412
      %v1449 = vadd.f32 %v1243, %v1415
      %1450 = vst.msk [vmem:[%s231] sm:$0xff] %vm416, %v1418
      %1451 = vst.msk [vmem:[%s231 + $0x8] sm:$0xff] %vm416, %v1419
      %1452 = vst.msk [vmem:[%s231 + $0x10] sm:$0xff] %vm416, %v1420
      %1453 = vst.msk [vmem:[%s231 + $0x18] sm:$0xff] %vm416, %v1421
      %1454 = vst.msk [vmem:[%s231 + $0x20] sm:$0xff] %vm416, %v1422
      %1455 = vst.msk [vmem:[%s231 + $0x28] sm:$0xff] %vm416, %v1423
      %1456 = vst.msk [vmem:[%s231 + $0x30] sm:$0xff] %vm416, %v1424
      %1457 = vst.msk [vmem:[%s231 + $0x38] sm:$0xff] %vm416, %v1425
      %1458 = vst.msk [vmem:[%s231 + $0x40] sm:$0xff] %vm416, %v1426
      %1459 = vst.msk [vmem:[%s231 + $0x48] sm:$0xff] %vm416, %v1427
      %1460 = vst.msk [vmem:[%s231 + $0x50] sm:$0xff] %vm416, %v1428
      %1461 = vst.msk [vmem:[%s231 + $0x58] sm:$0xff] %vm416, %v1429
      %1462 = vst.msk [vmem:[%s231 + $0x60] sm:$0xff] %vm416, %v1430
      %1463 = vst.msk [vmem:[%s231 + $0x68] sm:$0xff] %vm416, %v1431
      %1464 = vst.msk [vmem:[%s231 + $0x70] sm:$0xff] %vm416, %v1432
      %1465 = vst.msk [vmem:[%s231 + $0x78] sm:$0xff] %vm416, %v1433
      %1466 = vst.msk [vmem:[%s231 + $0x80] sm:$0xff] %vm416, %v1434
      %1467 = vst.msk [vmem:[%s231 + $0x88] sm:$0xff] %vm416, %v1435
      %1468 = vst.msk [vmem:[%s231 + $0x90] sm:$0xff] %vm416, %v1436
      %1469 = vst.msk [vmem:[%s231 + $0x98] sm:$0xff] %vm416, %v1437
      %1470 = vst.msk [vmem:[%s231 + $0xa0] sm:$0xff] %vm416, %v1438
      %1471 = vst.msk [vmem:[%s231 + $0xa8] sm:$0xff] %vm416, %v1439
      %1472 = vst.msk [vmem:[%s231 + $0xb0] sm:$0xff] %vm416, %v1440
      %1473 = vst.msk [vmem:[%s231 + $0xb8] sm:$0xff] %vm416, %v1441
      %1474 = vst.msk [vmem:[%s231 + $0xc0] sm:$0xff] %vm416, %v1442
      %1475 = vst.msk [vmem:[%s231 + $0xc8] sm:$0xff] %vm416, %v1443
      %1476 = vst.msk [vmem:[%s231 + $0xd0] sm:$0xff] %vm416, %v1444
      %1477 = vst.msk [vmem:[%s231 + $0xd8] sm:$0xff] %vm416, %v1445
      %1478 = vst.msk [vmem:[%s231 + $0xe0] sm:$0xff] %vm416, %v1446
      %1479 = vst.msk [vmem:[%s231 + $0xe8] sm:$0xff] %vm416, %v1447
      %1480 = vst.msk [vmem:[%s231 + $0xf0] sm:$0xff] %vm416, %v1448
      %1481 = vst.msk [vmem:[%s231 + $0xf8] sm:$0xff] %vm416, %v1449
      %v1482 = vsel %vm416, %v1418, 0.0
      %v1483 = vsel %vm416, %v1419, 0.0
      %v1484 = vadd.f32 %v1482, %v1483
      %v1485 = vsel %vm416, %v1420, 0.0
      %v1486 = vadd.f32 %v1484, %v1485
      %v1487 = vsel %vm416, %v1421, 0.0
      %v1488 = vadd.f32 %v1486, %v1487
      %v1489 = vsel %vm416, %v1422, 0.0
      %v1490 = vadd.f32 %v1488, %v1489
      %v1491 = vsel %vm416, %v1423, 0.0
      %v1492 = vadd.f32 %v1490, %v1491
      %v1493 = vsel %vm416, %v1424, 0.0
      %v1494 = vadd.f32 %v1492, %v1493
      %v1495 = vsel %vm416, %v1425, 0.0
      %v1496 = vadd.f32 %v1494, %v1495
      %v1497 = vsel %vm416, %v1426, 0.0
      %v1498 = vadd.f32 %v1496, %v1497
      %v1499 = vsel %vm416, %v1427, 0.0
      %v1500 = vadd.f32 %v1498, %v1499
      %v1501 = vsel %vm416, %v1428, 0.0
      %v1502 = vadd.f32 %v1500, %v1501
      %v1503 = vsel %vm416, %v1429, 0.0
      %v1504 = vadd.f32 %v1502, %v1503
      %v1505 = vsel %vm416, %v1430, 0.0
      %v1506 = vadd.f32 %v1504, %v1505
      %v1507 = vsel %vm416, %v1431, 0.0
      %v1508 = vadd.f32 %v1506, %v1507
      %v1509 = vsel %vm416, %v1432, 0.0
      %v1510 = vadd.f32 %v1508, %v1509
      %v1511 = vsel %vm416, %v1433, 0.0
      %v1512 = vadd.f32 %v1510, %v1511
      %v1513 = vsel %vm416, %v1434, 0.0
      %v1514 = vadd.f32 %v1512, %v1513
      %v1515 = vsel %vm416, %v1435, 0.0
      %v1516 = vadd.f32 %v1514, %v1515
      %v1517 = vsel %vm416, %v1436, 0.0
      %v1518 = vadd.f32 %v1516, %v1517
      %v1519 = vsel %vm416, %v1437, 0.0
      %v1520 = vadd.f32 %v1518, %v1519
      %v1521 = vsel %vm416, %v1438, 0.0
      %v1522 = vadd.f32 %v1520, %v1521
      %v1523 = vsel %vm416, %v1439, 0.0
      %v1524 = vadd.f32 %v1522, %v1523
      %v1525 = vsel %vm416, %v1440, 0.0
      %v1526 = vadd.f32 %v1524, %v1525
      %v1527 = vsel %vm416, %v1441, 0.0
      %v1528 = vadd.f32 %v1526, %v1527
      %v1529 = vsel %vm416, %v1442, 0.0
      %v1530 = vadd.f32 %v1528, %v1529
      %v1531 = vsel %vm416, %v1443, 0.0
      %v1532 = vadd.f32 %v1530, %v1531
      %v1533 = vsel %vm416, %v1444, 0.0
      %v1534 = vadd.f32 %v1532, %v1533
      %v1535 = vsel %vm416, %v1445, 0.0
      %v1536 = vadd.f32 %v1534, %v1535
      %v1537 = vsel %vm416, %v1446, 0.0
      %v1538 = vadd.f32 %v1536, %v1537
      %v1539 = vsel %vm416, %v1447, 0.0
      %v1540 = vadd.f32 %v1538, %v1539
      %v1541 = vsel %vm416, %v1448, 0.0
      %v1542 = vadd.f32 %v1540, %v1541
      %v1543 = vsel %vm416, %v1449, 0.0
      %v1544 = vadd.f32 %v1542, %v1543
      %v1545 = vrot.slane %v1544, 4
      %v1546 = vadd.f32 %v1544, %v1545
      %v1547 = vrot.slane %v1546, 2
      %v1548 = vadd.f32 %v1546, %v1547
      %v1549 = vrot.slane %v1548, 1
      %v1550 = vadd.f32 %v1548, %v1549
      %v1551 = vmul.f32 %v1418, %v1418
      %v1552 = vmul.f32 %v1419, %v1419
      %v1553 = vmul.f32 %v1420, %v1420
      %v1554 = vmul.f32 %v1421, %v1421
      %v1555 = vmul.f32 %v1422, %v1422
      %v1556 = vmul.f32 %v1423, %v1423
      %v1557 = vmul.f32 %v1424, %v1424
      %v1558 = vmul.f32 %v1425, %v1425
      %v1559 = vmul.f32 %v1426, %v1426
      %v1560 = vmul.f32 %v1427, %v1427
      %v1561 = vmul.f32 %v1428, %v1428
      %v1562 = vmul.f32 %v1429, %v1429
      %v1563 = vmul.f32 %v1430, %v1430
      %v1564 = vmul.f32 %v1431, %v1431
      %v1565 = vmul.f32 %v1432, %v1432
      %v1566 = vmul.f32 %v1433, %v1433
      %v1567 = vmul.f32 %v1434, %v1434
      %v1568 = vmul.f32 %v1435, %v1435
      %v1569 = vmul.f32 %v1436, %v1436
      %v1570 = vmul.f32 %v1437, %v1437
      %v1571 = vmul.f32 %v1438, %v1438
      %v1572 = vmul.f32 %v1439, %v1439
      %v1573 = vmul.f32 %v1440, %v1440
      %v1574 = vmul.f32 %v1441, %v1441
      %v1575 = vmul.f32 %v1442, %v1442
      %v1576 = vmul.f32 %v1443, %v1443
      %v1577 = vmul.f32 %v1444, %v1444
      %v1578 = vmul.f32 %v1445, %v1445
      %v1579 = vmul.f32 %v1446, %v1446
      %v1580 = vmul.f32 %v1447, %v1447
      %v1581 = vmul.f32 %v1448, %v1448
      %v1582 = vmul.f32 %v1449, %v1449
      %v1583 = vsel %vm416, %v1551, 0.0
      %v1584 = vsel %vm416, %v1552, 0.0
      %v1585 = vadd.f32 %v1583, %v1584
      %v1586 = vsel %vm416, %v1553, 0.0
      %v1587 = vadd.f32 %v1585, %v1586
      %v1588 = vsel %vm416, %v1554, 0.0
      %v1589 = vadd.f32 %v1587, %v1588
      %v1590 = vsel %vm416, %v1555, 0.0
      %v1591 = vadd.f32 %v1589, %v1590
      %v1592 = vsel %vm416, %v1556, 0.0
      %v1593 = vadd.f32 %v1591, %v1592
      %v1594 = vsel %vm416, %v1557, 0.0
      %v1595 = vadd.f32 %v1593, %v1594
      %v1596 = vsel %vm416, %v1558, 0.0
      %v1597 = vadd.f32 %v1595, %v1596
      %v1598 = vsel %vm416, %v1559, 0.0
      %v1599 = vadd.f32 %v1597, %v1598
      %v1600 = vsel %vm416, %v1560, 0.0
      %v1601 = vadd.f32 %v1599, %v1600
      %v1602 = vsel %vm416, %v1561, 0.0
      %v1603 = vadd.f32 %v1601, %v1602
      %v1604 = vsel %vm416, %v1562, 0.0
      %v1605 = vadd.f32 %v1603, %v1604
      %v1606 = vsel %vm416, %v1563, 0.0
      %v1607 = vadd.f32 %v1605, %v1606
      %v1608 = vsel %vm416, %v1564, 0.0
      %v1609 = vadd.f32 %v1607, %v1608
      %v1610 = vsel %vm416, %v1565, 0.0
      %v1611 = vadd.f32 %v1609, %v1610
      %v1612 = vsel %vm416, %v1566, 0.0
      %v1613 = vadd.f32 %v1611, %v1612
      %v1614 = vsel %vm416, %v1567, 0.0
      %v1615 = vadd.f32 %v1613, %v1614
      %v1616 = vsel %vm416, %v1568, 0.0
      %v1617 = vadd.f32 %v1615, %v1616
      %v1618 = vsel %vm416, %v1569, 0.0
      %v1619 = vadd.f32 %v1617, %v1618
      %v1620 = vsel %vm416, %v1570, 0.0
      %v1621 = vadd.f32 %v1619, %v1620
      %v1622 = vsel %vm416, %v1571, 0.0
      %v1623 = vadd.f32 %v1621, %v1622
      %v1624 = vsel %vm416, %v1572, 0.0
      %v1625 = vadd.f32 %v1623, %v1624
      %v1626 = vsel %vm416, %v1573, 0.0
      %v1627 = vadd.f32 %v1625, %v1626
      %v1628 = vsel %vm416, %v1574, 0.0
      %v1629 = vadd.f32 %v1627, %v1628
      %v1630 = vsel %vm416, %v1575, 0.0
      %v1631 = vadd.f32 %v1629, %v1630
      %v1632 = vsel %vm416, %v1576, 0.0
      %v1633 = vadd.f32 %v1631, %v1632
      %v1634 = vsel %vm416, %v1577, 0.0
      %v1635 = vadd.f32 %v1633, %v1634
      %v1636 = vsel %vm416, %v1578, 0.0
      %v1637 = vadd.f32 %v1635, %v1636
      %v1638 = vsel %vm416, %v1579, 0.0
      %v1639 = vadd.f32 %v1637, %v1638
      %v1640 = vsel %vm416, %v1580, 0.0
      %v1641 = vadd.f32 %v1639, %v1640
      %v1642 = vsel %vm416, %v1581, 0.0
      %v1643 = vadd.f32 %v1641, %v1642
      %v1644 = vsel %vm416, %v1582, 0.0
      %v1645 = vadd.f32 %v1643, %v1644
      %v1646 = vrot.slane %v1645, 4
      %v1647 = vadd.f32 %v1645, %v1646
      %v1648 = vrot.slane %v1647, 2
      %v1649 = vadd.f32 %v1647, %v1648
      %v1650 = vrot.slane %v1649, 1
      %v1651 = vadd.f32 %v1649, %v1650
      %vm1652 = vcmask 1040384
      %v1653 = vsel %vm1652, %v1550, %v1651
      %vm1654 = vcmask 25600
      %1655 = vst.msk [vmem:[%s235] sm:$0x3] %vm1654, %v1653
      %p1656 = scmp.lt.s32.totalorder %s17, 1
      %s1657 = scalar_select %p1656, %s17, 1
      %s1658 = smul.addr %s1657, 32
      %s1659 = smul.addr %s1658, 8
      %s1660 = scalar_lea.vmem %s4, %s1659
      %p1661 = scmp.lt.s32.totalorder %s17, 1
      %s1662 = scalar_select %p1661, %s17, 1
      %s1663 = smul.addr %s1662, 2
      %s1664 = scalar_lea.vmem %s5, %s1663
      // Predicated region
      $region41: #{bottleneck_block_nhwc.5} parent=35 // pred_check
        %p1665 = pneg %p124
      $region42: #{bottleneck_block_nhwc.5} parent=35 // pred_check_branch
        %1667 = sbr.rel (%p1665) target = $region44
      $region43: #{bottleneck_block_nhwc.5} parent=35 // pred_region
        _
      $region44: #{bottleneck_block_nhwc.5} parent=35 // pred_fallthru
        _
      // Predicated region
      $region45: #{bottleneck_block_nhwc.5} parent=35 // pred_check
        %p1668 = pneg %p150
      $region46: #{bottleneck_block_nhwc.5} parent=35 // pred_check_branch
        %1670 = sbr.rel (%p1668) target = $region48
      $region47: #{bottleneck_block_nhwc.5} parent=35 // pred_region
        _
      $region48: #{bottleneck_block_nhwc.5} parent=35 // pred_fallthru
        _
    $region36: #{bottleneck_block_nhwc.5} parent=5 // pred_fallthru
      _
    %p1671 = scmp.le.s32.totalorder 2, %s12
    // Predicated region
    $region49: #{bottleneck_block_nhwc.5} parent=5 // pred_check
      %p1672 = pneg %p1671
    $region50: #{bottleneck_block_nhwc.5} parent=5 // pred_check_branch
      %1674 = sbr.rel (%p1672) target = $region52
    $region51: #{bottleneck_block_nhwc.5} parent=5 // pred_region
      %s1675 = ssub.s32 %s12, 2
      // Predicated region
      $region53: #{bottleneck_block_nhwc.5} parent=51 // pred_check
        %p1676 = pneg %p130
      $region54: #{bottleneck_block_nhwc.5} parent=51 // pred_check_branch
        %1678 = sbr.rel (%p1676) target = $region56
      $region55: #{bottleneck_block_nhwc.5} parent=51 // pred_region
        %p1679 = scmp.lt.s32.totalorder %s18, 1
        %s1680 = scalar_select %p1679, %s18, 1
        %s1681 = smul.addr %s1680, 32
        %s1682 = smul.addr %s1681, 8
        %s1683 = scalar_lea.vmem %s4, %s1682
      $region56: #{bottleneck_block_nhwc.5} parent=51 // pred_fallthru
        _
      // Predicated region
      $region57: #{bottleneck_block_nhwc.5} parent=51 // pred_check
        %p1684 = pneg %p156
      $region58: #{bottleneck_block_nhwc.5} parent=51 // pred_check_branch
        %1686 = sbr.rel (%p1684) target = $region60
      $region59: #{bottleneck_block_nhwc.5} parent=51 // pred_region
        %p1687 = scmp.lt.s32.totalorder %s18, 1
        %s1688 = scalar_select %p1687, %s18, 1
        %s1689 = smul.addr %s1688, 2
        %s1690 = scalar_lea.vmem %s5, %s1689
      $region60: #{bottleneck_block_nhwc.5} parent=51 // pred_fallthru
        _
    $region52: #{bottleneck_block_nhwc.5} parent=5 // pred_fallthru
      _
  $region6: #{bottleneck_block_nhwc.5} parent=0 // loop_footer
    %s16 = sadd.s32 1, %s12
  $region7: #{bottleneck_block_nhwc.5} parent=0 // loop_footer_branch
    %11 = sbr.rel target = $region3
  $region8: #{bottleneck_block_nhwc.5} parent=0 // loop_exit
    _

</llo_original>
